<compile_context>
chip_gen: v6e
topology: v6e:2x2x1
jax: 0.10.0
libtpu: 0.0.40
codegen_flags: <defaults>
</compile_context>

<pallas_src>
import functools
import math

import jax
import jax.numpy as jnp
from jax import lax
from jax.experimental import pallas as pl
from jax.experimental.pallas import tpu as pltpu


def _round_up(x, m):
    return ((x + m - 1) // m) * m


def _sigmoid(z, approx):
    # 1/(1+exp(-z)): exp runs on the EUP; reciprocal via pl.reciprocal so the
    # bf16 path can use the (nearly free) approximate EUP reciprocal slot.
    return pl.reciprocal(1.0 + jnp.exp(-z), approx=approx)


def _set2set_kernel(x_ref, wq_ref, wr_ref, b_ref, o_ref,
                    h_sc, c_sc, r_sc, *, nin, steps, approx):
    """One grid step = one tile of TB batch elements, full T-step recurrence.

    VMEM scratch state (f32, fresh per batch tile):
      h_sc: (TB, D)  LSTM hidden state == q_t  (first half of q*)
      c_sc: (TB, D)  LSTM cell state
      r_sc: (TB, D)  attention readout r_t     (second half of q*)
    """
    d = nin
    h_sc[...] = jnp.zeros_like(h_sc)
    c_sc[...] = jnp.zeros_like(c_sc)
    r_sc[...] = jnp.zeros_like(r_sc)

    cdtype = wq_ref.dtype            # compute/storage dtype (f32 or bf16)
    wq = wq_ref[...]                 # (D, 4D)  loop-invariant, hoisted
    wr = wr_ref[...]                 # (D, 4D)
    bias = b_ref[...]                # (1, 4D)  f32 fused b_ih + b_hh

    def step(_, carry):
        q_prev = h_sc[...]           # (TB, D) f32; == q_{t-1} == h_{t-1}
        r_prev = r_sc[...]           # (TB, D) f32

        # ---- single-step LSTM, PyTorch gate order (i, f, g, o) --------------
        # W_hh is pre-folded into wq, so only two K=D matmuls per step.
        gates = (
            jnp.dot(q_prev.astype(cdtype), wq, preferred_element_type=jnp.float32)
            + jnp.dot(r_prev.astype(cdtype), wr, preferred_element_type=jnp.float32)
            + bias
        )                                                        # (TB, 4D) f32
        i_g = _sigmoid(gates[:, 0 * d:1 * d], approx)
        f_g = _sigmoid(gates[:, 1 * d:2 * d], approx)
        g_g = jnp.tanh(gates[:, 2 * d:3 * d])
        o_g = _sigmoid(gates[:, 3 * d:4 * d], approx)
        c_new = f_g * c_sc[...] + i_g * g_g
        q = o_g * jnp.tanh(c_new)                                # (TB, D) f32
        c_sc[...] = c_new
        h_sc[...] = q

        # ---- attention pooling over the set dimension N ----------------------
        # x stays in its storage dtype (no per-step full-tile cast).
        x = x_ref[...]                                           # (TB, N, D)
        qc = q.astype(x.dtype)
        e = jnp.sum(x * qc[:, None, :], axis=-1).astype(jnp.float32)   # (TB, N)
        e = e - jnp.max(e, axis=-1, keepdims=True)
        p = jnp.exp(e)
        sum_p = jnp.sum(p, axis=-1, keepdims=True)               # (TB, 1)
        pc = p.astype(x.dtype)
        r_un = jnp.sum(pc[:, :, None] * x, axis=1).astype(jnp.float32)  # (TB, D)
        # Deferred softmax normalization: one (TB,1) reciprocal + (TB,D) mul
        # instead of a (TB,N) divide. approx=True only on the bf16 path.
        r_sc[...] = r_un * pl.reciprocal(sum_p, approx=approx)
        return carry

    if steps <= 8:
        # Short fixed trip count: fully unroll at trace time.
        for _ in range(steps):
            step(0, None)
    else:
        lax.fori_loop(0, steps, step, None, unroll=4)

    # Assemble q*_T = [q_T ; r_T] once (no per-step lane concatenate).
    o_ref[:, 0:d] = h_sc[...].astype(o_ref.dtype)
    o_ref[:, d:2 * d] = r_sc[...].astype(o_ref.dtype)


def set2set_prepare_params(w_ih, w_hh, b_ih, b_hh, compute_dtype=jnp.float32):
    """One-time parameter repack (hoisted out of the per-call hot path).

    nn.LSTM(2*D, D) parameters: w_ih (4D, 2D), w_hh (4D, D), b_ih/b_hh (4D,).
    Since h_t == q*_t[:, :D] for Set2Set, W_hh folds into the first D input
    rows of W_ih:   gates = q @ (W_ih^T[:D] + W_hh^T) + r @ W_ih^T[D:] + b.
    Weights are transposed to [K, 4D] (plain x @ W on the MXU) and stored in
    `compute_dtype` (bf16 recommended on v6e/v7x); the fused bias stays f32.
    """
    n4, nhid = w_ih.shape
    d = w_hh.shape[1]
    assert nhid == 2 * d and n4 == 4 * d, "kernel assumes nhid == 2*nin"
    w_ih_t = jnp.asarray(w_ih, jnp.float32).T                    # (2D, 4D)
    w_hh_t = jnp.asarray(w_hh, jnp.float32).T                    # (D, 4D)
    w_q = (w_ih_t[:d, :] + w_hh_t).astype(compute_dtype)         # (D, 4D)
    w_r = w_ih_t[d:, :].astype(compute_dtype)                    # (D, 4D)
    b_row = (jnp.asarray(b_ih, jnp.float32)
             + jnp.asarray(b_hh, jnp.float32)).reshape(1, n4)    # (1, 4D) f32
    return w_q, w_r, b_row


def set2set_forward(x, w_q, w_r, b_row, *, steps=None,
                    x_tile_budget_bytes=12 << 20,
                    vmem_limit_bytes=48 << 20):
    """x: (B, N, D); w_q / w_r: (D, 4D) in compute dtype; b_row: (1, 4D) f32."""
    b, n, d = x.shape
    nhid = 2 * d
    t = int(steps) if steps is not None else n
    out_dtype = x.dtype
    compute_dtype = w_q.dtype
    approx = bool(compute_dtype == jnp.bfloat16)

    # Stream x in the compute dtype (bf16 halves the x-tile VMEM footprint and
    # vld traffic on v6e/v7x; keep f32 on v5e via compute_dtype at prepare).
    x_c = x.astype(compute_dtype) if x.dtype != compute_dtype else x

    # --- batch tiling --------------------------------------------------------
    # The x tile is reused for all T steps, so its DMA is fully amortized.
    # Budget ~12 MiB per tile (double-buffered ~24 MiB), under the 48 MiB vmem
    # limit (v7x has only 64 MiB physical VMEM per TensorCore).  Aim for >= 2
    # batch tiles so ("parallel",) can shard across v7x's two TensorCores, and
    # pad B so every tile is a multiple of 8 sublanes (budget always honored).
    row_bytes = n * d * x_c.dtype.itemsize
    cap_rows = max(8, (x_tile_budget_bytes // max(1, row_bytes)) // 8 * 8)
    if b <= 8:
        tb = b                    # tiny batch: one tile, blocks equal full dims
    else:
        tb = max(8, min(cap_rows, _round_up((b + 1) // 2, 8)))
    bp = _round_up(b, tb)
    nb = bp // tb
    if bp != b:
        # Zero padding is safe: padded rows softmax over zeros -> r = 0, and
        # their outputs are sliced off below.
        x_c = jnp.pad(x_c, ((0, bp - b), (0, 0), (0, 0)))
    # TODO(synk): sets so large that one 8-row tile exceeds the budget are not
    #             additionally tiled along N; they rely on the raised vmem limit.

    kernel = functools.partial(_set2set_kernel, nin=d, steps=t, approx=approx)

    flops = t * bp * (2 * 2 * d * 4 * d + 4 * n * d + 16 * d)
    transcendentals = t * bp * (6 * d + n)
    bytes_accessed = (int(x_c.size) * x_c.dtype.itemsize
                      + (int(w_q.size) + int(w_r.size)) * w_q.dtype.itemsize
                      + int(b_row.size) * 4 + bp * nhid * 4)

    out = pl.pallas_call(
        kernel,
        out_shape=jax.ShapeDtypeStruct((bp, nhid), jnp.float32),
        grid_spec=pltpu.PrefetchScalarGridSpec(
            num_scalar_prefetch=0,
            grid=(nb,),
            in_specs=[
                pl.BlockSpec((tb, n, d), lambda i: (i, 0, 0)),   # x tile (pipelined)
                pl.BlockSpec((d, 4 * d), lambda i: (0, 0)),      # W_q fused (VMEM-resident)
                pl.BlockSpec((d, 4 * d), lambda i: (0, 0)),      # W_r       (VMEM-resident)
                pl.BlockSpec((1, 4 * d), lambda i: (0, 0)),      # fused bias
            ],
            out_specs=pl.BlockSpec((tb, nhid), lambda i: (i, 0)),
            scratch_shapes=[
                pltpu.VMEM((tb, d), jnp.float32),                # h (== q)
                pltpu.VMEM((tb, d), jnp.float32),                # c
                pltpu.VMEM((tb, d), jnp.float32),                # r
            ],
        ),
        compiler_params=pltpu.CompilerParams(
            dimension_semantics=("parallel",),   # batch tiles shard across v7x's 2 TCs
            vmem_limit_bytes=vmem_limit_bytes,
        ),
        cost_estimate=pl.CostEstimate(
            flops=flops, transcendentals=transcendentals,
            bytes_accessed=bytes_accessed),
    )(x_c, w_q, w_r, b_row)

    if bp != b:
        out = out[:b]
    return out.astype(out_dtype)


def set2set_reference(x, w_ih, w_hh, b_ih, b_hh, steps):
    """Plain-JAX reference mirroring the PyTorch Set2Set forward."""
    b, n, d = x.shape
    h = jnp.zeros((b, d), jnp.float32)
    c = jnp.zeros((b, d), jnp.float32)
    q_star = jnp.zeros((b, 2 * d), jnp.float32)
    for _ in range(steps):
        gates = (jnp.dot(q_star, w_ih.T, precision='highest')
                 + jnp.dot(h, w_hh.T, precision='highest')
                 + b_ih + b_hh)
        i_g = jax.nn.sigmoid(gates[:, 0:d])
        f_g = jax.nn.sigmoid(gates[:, d:2 * d])
        g_g = jnp.tanh(gates[:, 2 * d:3 * d])
        o_g = jax.nn.sigmoid(gates[:, 3 * d:4 * d])
        c = f_g * c + i_g * g_g
        h = o_g * jnp.tanh(c)
        q = h
        e = jnp.einsum('bnd,bd->bn', x, q, precision='highest')
        a = jax.nn.softmax(e, axis=1)
        r = jnp.einsum('bn,bnd->bd', a, x, precision='highest')
        q_star = jnp.concatenate([q, r], axis=-1)
    return q_star


if __name__ == "__main__":
    nin = 32                  # input feature dim D
    nhid = 2 * nin            # Set2Set default hidden dim
    batch, n_nodes, steps = 4, 16, 6

    key = jax.random.PRNGKey(0)
    kx, k1, k2, k3, k4, kx2 = jax.random.split(key, 6)

    x = jax.random.normal(kx, (batch, n_nodes, nin), dtype=jnp.float32)

    # nn.LSTM(nhid, nin) parameters: uniform(-1/sqrt(nin), 1/sqrt(nin)),
    # gates stacked along dim 0 in order [i, f, g, o].
    bound = 1.0 / math.sqrt(nin)
    w_ih = jax.random.uniform(k1, (4 * nin, nhid), jnp.float32, -bound, bound)
    w_hh = jax.random.uniform(k2, (4 * nin, nin), jnp.float32, -bound, bound)
    b_ih = jax.random.uniform(k3, (4 * nin,), jnp.float32, -bound, bound)
    b_hh = jax.random.uniform(k4, (4 * nin,), jnp.float32, -bound, bound)

    ref = set2set_reference(x, w_ih, w_hh, b_ih, b_hh, steps)

    # --- f32 path (default): strict check -----------------------------------
    w_q, w_r, b_row = set2set_prepare_params(w_ih, w_hh, b_ih, b_hh)
    out = jax.block_until_ready(set2set_forward(x, w_q, w_r, b_row, steps=steps))
    assert out.shape == (batch, nhid)
    err = float(jnp.max(jnp.abs(out - ref)))
    assert jnp.allclose(out, ref, atol=1e-4, rtol=1e-4), \
        f"f32 mismatch vs reference (max abs err {err})"

    # --- multi-tile / padded-batch path (grid > 1, megacore sharding) -------
    x_big = jax.random.normal(kx2, (20, n_nodes, nin), dtype=jnp.float32)
    ref_big = set2set_reference(x_big, w_ih, w_hh, b_ih, b_hh, 4)
    out_big = jax.block_until_ready(set2set_forward(x_big, w_q, w_r, b_row, steps=4))
    assert out_big.shape == (20, nhid)
    err_big = float(jnp.max(jnp.abs(out_big - ref_big)))
    assert jnp.allclose(out_big, ref_big, atol=1e-4, rtol=1e-4), \
        f"multi-tile mismatch vs reference (max abs err {err_big})"

    # --- bf16 compute path (v6e/v7x fast MXU/VPU path): loose smoke check ---
    w_q16, w_r16, b_row16 = set2set_prepare_params(
        w_ih, w_hh, b_ih, b_hh, compute_dtype=jnp.bfloat16)
    out16 = jax.block_until_ready(
        set2set_forward(x, w_q16, w_r16, b_row16, steps=steps))
    assert out16.shape == (batch, nhid)
    assert bool(jnp.all(jnp.isfinite(out16)))
    err16 = float(jnp.max(jnp.abs(out16 - ref)))
    assert jnp.allclose(out16, ref, atol=0.25, rtol=0.25), \
        f"bf16 path diverged (max abs err {err16})"

    print("KERNEL_OK")
</pallas_src>

<mosaic_0001>
module attributes {stable_mosaic.version = 11 : i64} {
  func.func @_set2set_kernel(%arg0: i32, %arg1: memref<4x16x32xf32, #tpu.memory_space<vmem>>, %arg2: memref<32x128xf32, #tpu.memory_space<vmem>>, %arg3: memref<32x128xf32, #tpu.memory_space<vmem>>, %arg4: memref<1x128xf32, #tpu.memory_space<vmem>>, %arg5: memref<4x64xf32, #tpu.memory_space<vmem>>, %arg6: memref<4x32xf32, #tpu.memory_space<vmem>>, %arg7: memref<4x32xf32, #tpu.memory_space<vmem>>, %arg8: memref<4x32xf32, #tpu.memory_space<vmem>>) attributes {dimension_semantics = [#tpu.dimension_semantics<parallel>], iteration_bounds = array<i64: 1>, scalar_prefetch = 0 : i64, scratch_operands = 3 : i64, tpu.core_type = #tpu.core_type<tc>, window_params = [{transform_indices = @transform_0, window_bounds = array<i64: 4, 16, 32>}, {pipeline_mode = #tpu.pipeline_mode<synchronous>, transform_indices = @transform_1, window_bounds = array<i64: 32, 128>}, {pipeline_mode = #tpu.pipeline_mode<synchronous>, transform_indices = @transform_2, window_bounds = array<i64: 32, 128>}, {pipeline_mode = #tpu.pipeline_mode<synchronous>, transform_indices = @transform_3, window_bounds = array<i64: 1, 128>}, {transform_indices = @transform_4, window_bounds = array<i64: 4, 64>}]} {
    %cst = arith.constant 0.000000e+00 : f32
    %0 = vector.broadcast %cst : f32 to vector<4x32xf32>
    %c0 = arith.constant 0 : index
    %c0_0 = arith.constant 0 : index
    %1 = vector.load %arg6[%c0, %c0_0] : memref<4x32xf32, #tpu.memory_space<vmem>>, vector<4x32xf32>
    tpu.vector_store %arg6[%c0, %c0_0], %0 {strides = array<i32>} : memref<4x32xf32, #tpu.memory_space<vmem>>, vector<4x32xf32>,
    %cst_1 = arith.constant 0.000000e+00 : f32
    %2 = vector.broadcast %cst_1 : f32 to vector<4x32xf32>
    %c0_2 = arith.constant 0 : index
    %c0_3 = arith.constant 0 : index
    %3 = vector.load %arg7[%c0_2, %c0_3] : memref<4x32xf32, #tpu.memory_space<vmem>>, vector<4x32xf32>
    tpu.vector_store %arg7[%c0_2, %c0_3], %2 {strides = array<i32>} : memref<4x32xf32, #tpu.memory_space<vmem>>, vector<4x32xf32>,
    %cst_4 = arith.constant 0.000000e+00 : f32
    %4 = vector.broadcast %cst_4 : f32 to vector<4x32xf32>
    %c0_5 = arith.constant 0 : index
    %c0_6 = arith.constant 0 : index
    %5 = vector.load %arg8[%c0_5, %c0_6] : memref<4x32xf32, #tpu.memory_space<vmem>>, vector<4x32xf32>
    tpu.vector_store %arg8[%c0_5, %c0_6], %4 {strides = array<i32>} : memref<4x32xf32, #tpu.memory_space<vmem>>, vector<4x32xf32>,
    %c0_7 = arith.constant 0 : index
    %c0_8 = arith.constant 0 : index
    %6 = vector.load %arg2[%c0_7, %c0_8] : memref<32x128xf32, #tpu.memory_space<vmem>>, vector<32x128xf32>
    %c0_9 = arith.constant 0 : index
    %c0_10 = arith.constant 0 : index
    %7 = vector.load %arg3[%c0_9, %c0_10] : memref<32x128xf32, #tpu.memory_space<vmem>>, vector<32x128xf32>
    %c0_11 = arith.constant 0 : index
    %c0_12 = arith.constant 0 : index
    %8 = vector.load %arg4[%c0_11, %c0_12] : memref<1x128xf32, #tpu.memory_space<vmem>>, vector<1x128xf32>
    %c0_13 = arith.constant 0 : index
    %c0_14 = arith.constant 0 : index
    %9 = vector.load %arg6[%c0_13, %c0_14] : memref<4x32xf32, #tpu.memory_space<vmem>>, vector<4x32xf32>
    %c0_15 = arith.constant 0 : index
    %c0_16 = arith.constant 0 : index
    %10 = vector.load %arg8[%c0_15, %c0_16] : memref<4x32xf32, #tpu.memory_space<vmem>>, vector<4x32xf32>
    %cst_17 = arith.constant dense<0.000000e+00> : vector<4x128xf32>
    %11 = tpu.matmul %9, %6, %cst_17 {dimension_numbers = #tpu.dot_dimension_numbers<[1], [0], [0], [1], [0, 0, 1, 1], [], []>} : vector<4x32xf32>, vector<32x128xf32>, vector<4x128xf32> -> vector<4x128xf32>
    %cst_18 = arith.constant dense<0.000000e+00> : vector<4x128xf32>
    %12 = tpu.matmul %10, %7, %cst_18 {dimension_numbers = #tpu.dot_dimension_numbers<[1], [0], [0], [1], [0, 0, 1, 1], [], []>} : vector<4x32xf32>, vector<32x128xf32>, vector<4x128xf32> -> vector<4x128xf32>
    %13 = arith.addf %11, %12 : vector<4x128xf32>
    %14 = vector.broadcast %8 : vector<1x128xf32> to vector<4x128xf32>
    %15 = arith.addf %13, %14 : vector<4x128xf32>
    %16 = vector.extract_strided_slice %15 {offsets = [0, 0], sizes = [4, 32], strides = [1, 1]} : vector<4x128xf32> to vector<4x32xf32>
    %cst_19 = arith.constant 0.000000e+00 : f32
    %17 = vector.broadcast %cst_19 : f32 to vector<4x32xf32>
    %18 = arith.subf %17, %16 : vector<4x32xf32>
    %19 = math.exp %18 : vector<4x32xf32>
    %cst_20 = arith.constant 1.000000e+00 : f32
    %20 = vector.broadcast %cst_20 : f32 to vector<4x32xf32>
    %21 = arith.addf %20, %19 : vector<4x32xf32>
    %22 = tpu.reciprocal %21 : vector<4x32xf32> -> vector<4x32xf32>
    %23 = vector.extract_strided_slice %15 {offsets = [0, 32], sizes = [4, 32], strides = [1, 1]} : vector<4x128xf32> to vector<4x32xf32>
    %cst_21 = arith.constant 0.000000e+00 : f32
    %24 = vector.broadcast %cst_21 : f32 to vector<4x32xf32>
    %25 = arith.subf %24, %23 : vector<4x32xf32>
    %26 = math.exp %25 : vector<4x32xf32>
    %cst_22 = arith.constant 1.000000e+00 : f32
    %27 = vector.broadcast %cst_22 : f32 to vector<4x32xf32>
    %28 = arith.addf %27, %26 : vector<4x32xf32>
    %29 = tpu.reciprocal %28 : vector<4x32xf32> -> vector<4x32xf32>
    %30 = vector.extract_strided_slice %15 {offsets = [0, 64], sizes = [4, 32], strides = [1, 1]} : vector<4x128xf32> to vector<4x32xf32>
    %31 = math.tanh %30 : vector<4x32xf32>
    %32 = vector.extract_strided_slice %15 {offsets = [0, 96], sizes = [4, 32], strides = [1, 1]} : vector<4x128xf32> to vector<4x32xf32>
    %cst_23 = arith.constant 0.000000e+00 : f32
    %33 = vector.broadcast %cst_23 : f32 to vector<4x32xf32>
    %34 = arith.subf %33, %32 : vector<4x32xf32>
    %35 = math.exp %34 : vector<4x32xf32>
    %cst_24 = arith.constant 1.000000e+00 : f32
    %36 = vector.broadcast %cst_24 : f32 to vector<4x32xf32>
    %37 = arith.addf %36, %35 : vector<4x32xf32>
    %38 = tpu.reciprocal %37 : vector<4x32xf32> -> vector<4x32xf32>
    %c0_25 = arith.constant 0 : index
    %c0_26 = arith.constant 0 : index
    %39 = vector.load %arg7[%c0_25, %c0_26] : memref<4x32xf32, #tpu.memory_space<vmem>>, vector<4x32xf32>
    %40 = arith.mulf %29, %39 : vector<4x32xf32>
    %41 = arith.mulf %22, %31 : vector<4x32xf32>
    %42 = arith.addf %40, %41 : vector<4x32xf32>
    %43 = math.tanh %42 : vector<4x32xf32>
    %44 = arith.mulf %38, %43 : vector<4x32xf32>
    %c0_27 = arith.constant 0 : index
    %c0_28 = arith.constant 0 : index
    %45 = vector.load %arg7[%c0_27, %c0_28] : memref<4x32xf32, #tpu.memory_space<vmem>>, vector<4x32xf32>
    tpu.vector_store %arg7[%c0_27, %c0_28], %42 {strides = array<i32>} : memref<4x32xf32, #tpu.memory_space<vmem>>, vector<4x32xf32>,
    %c0_29 = arith.constant 0 : index
    %c0_30 = arith.constant 0 : index
    %46 = vector.load %arg6[%c0_29, %c0_30] : memref<4x32xf32, #tpu.memory_space<vmem>>, vector<4x32xf32>
    tpu.vector_store %arg6[%c0_29, %c0_30], %44 {strides = array<i32>} : memref<4x32xf32, #tpu.memory_space<vmem>>, vector<4x32xf32>,
    %c0_31 = arith.constant 0 : index
    %c0_32 = arith.constant 0 : index
    %c0_33 = arith.constant 0 : index
    %47 = vector.load %arg1[%c0_31, %c0_32, %c0_33] : memref<4x16x32xf32, #tpu.memory_space<vmem>>, vector<4x16x32xf32>
    %48 = vector.shape_cast %44 : vector<4x32xf32> to vector<4x1x32xf32>
    %49 = vector.broadcast %48 : vector<4x1x32xf32> to vector<4x16x32xf32>
    %50 = arith.mulf %47, %49 : vector<4x16x32xf32>
    %cst_34 = arith.constant dense<0.000000e+00> : vector<4x16xf32>
    %51 = vector.multi_reduction <add>, %50, %cst_34 [2] : vector<4x16x32xf32> to vector<4x16xf32>
    %cst_35 = arith.constant dense<0xFF800000> : vector<4xf32>
    %52 = vector.multi_reduction <maximumf>, %51, %cst_35 [1] : vector<4x16xf32> to vector<4xf32>
    %53 = vector.shape_cast %52 : vector<4xf32> to vector<4x1xf32>
    %54 = vector.broadcast %53 : vector<4x1xf32> to vector<4x16xf32>
    %55 = arith.subf %51, %54 : vector<4x16xf32>
    %56 = math.exp %55 : vector<4x16xf32>
    %cst_36 = arith.constant dense<0.000000e+00> : vector<4xf32>
    %57 = vector.multi_reduction <add>, %56, %cst_36 [1] : vector<4x16xf32> to vector<4xf32>
    %58 = vector.shape_cast %57 : vector<4xf32> to vector<4x1xf32>
    %59 = vector.shape_cast %56 : vector<4x16xf32> to vector<4x16x1xf32>
    %60 = vector.broadcast %59 : vector<4x16x1xf32> to vector<4x16x32xf32>
    %61 = arith.mulf %60, %47 : vector<4x16x32xf32>
    %cst_37 = arith.constant dense<0.000000e+00> : vector<4x32xf32>
    %62 = vector.multi_reduction <add>, %61, %cst_37 [1] : vector<4x16x32xf32> to vector<4x32xf32>
    %63 = tpu.reciprocal %58 : vector<4x1xf32> -> vector<4x1xf32>
    %64 = vector.broadcast %63 : vector<4x1xf32> to vector<4x32xf32>
    %65 = arith.mulf %62, %64 : vector<4x32xf32>
    %c0_38 = arith.constant 0 : index
    %c0_39 = arith.constant 0 : index
    %66 = vector.load %arg8[%c0_38, %c0_39] : memref<4x32xf32, #tpu.memory_space<vmem>>, vector<4x32xf32>
    tpu.vector_store %arg8[%c0_38, %c0_39], %65 {strides = array<i32>} : memref<4x32xf32, #tpu.memory_space<vmem>>, vector<4x32xf32>,
    %c0_40 = arith.constant 0 : index
    %c0_41 = arith.constant 0 : index
    %67 = vector.load %arg6[%c0_40, %c0_41] : memref<4x32xf32, #tpu.memory_space<vmem>>, vector<4x32xf32>
    %c0_42 = arith.constant 0 : index
    %c0_43 = arith.constant 0 : index
    %68 = vector.load %arg8[%c0_42, %c0_43] : memref<4x32xf32, #tpu.memory_space<vmem>>, vector<4x32xf32>
    %cst_44 = arith.constant dense<0.000000e+00> : vector<4x128xf32>
    %69 = tpu.matmul %67, %6, %cst_44 {dimension_numbers = #tpu.dot_dimension_numbers<[1], [0], [0], [1], [0, 0, 1, 1], [], []>} : vector<4x32xf32>, vector<32x128xf32>, vector<4x128xf32> -> vector<4x128xf32>
    %cst_45 = arith.constant dense<0.000000e+00> : vector<4x128xf32>
    %70 = tpu.matmul %68, %7, %cst_45 {dimension_numbers = #tpu.dot_dimension_numbers<[1], [0], [0], [1], [0, 0, 1, 1], [], []>} : vector<4x32xf32>, vector<32x128xf32>, vector<4x128xf32> -> vector<4x128xf32>
    %71 = arith.addf %69, %70 : vector<4x128xf32>
    %72 = vector.broadcast %8 : vector<1x128xf32> to vector<4x128xf32>
    %73 = arith.addf %71, %72 : vector<4x128xf32>
    %74 = vector.extract_strided_slice %73 {offsets = [0, 0], sizes = [4, 32], strides = [1, 1]} : vector<4x128xf32> to vector<4x32xf32>
    %cst_46 = arith.constant 0.000000e+00 : f32
    %75 = vector.broadcast %cst_46 : f32 to vector<4x32xf32>
    %76 = arith.subf %75, %74 : vector<4x32xf32>
    %77 = math.exp %76 : vector<4x32xf32>
    %cst_47 = arith.constant 1.000000e+00 : f32
    %78 = vector.broadcast %cst_47 : f32 to vector<4x32xf32>
    %79 = arith.addf %78, %77 : vector<4x32xf32>
    %80 = tpu.reciprocal %79 : vector<4x32xf32> -> vector<4x32xf32>
    %81 = vector.extract_strided_slice %73 {offsets = [0, 32], sizes = [4, 32], strides = [1, 1]} : vector<4x128xf32> to vector<4x32xf32>
    %cst_48 = arith.constant 0.000000e+00 : f32
    %82 = vector.broadcast %cst_48 : f32 to vector<4x32xf32>
    %83 = arith.subf %82, %81 : vector<4x32xf32>
    %84 = math.exp %83 : vector<4x32xf32>
    %cst_49 = arith.constant 1.000000e+00 : f32
    %85 = vector.broadcast %cst_49 : f32 to vector<4x32xf32>
    %86 = arith.addf %85, %84 : vector<4x32xf32>
    %87 = tpu.reciprocal %86 : vector<4x32xf32> -> vector<4x32xf32>
    %88 = vector.extract_strided_slice %73 {offsets = [0, 64], sizes = [4, 32], strides = [1, 1]} : vector<4x128xf32> to vector<4x32xf32>
    %89 = math.tanh %88 : vector<4x32xf32>
    %90 = vector.extract_strided_slice %73 {offsets = [0, 96], sizes = [4, 32], strides = [1, 1]} : vector<4x128xf32> to vector<4x32xf32>
    %cst_50 = arith.constant 0.000000e+00 : f32
    %91 = vector.broadcast %cst_50 : f32 to vector<4x32xf32>
    %92 = arith.subf %91, %90 : vector<4x32xf32>
    %93 = math.exp %92 : vector<4x32xf32>
    %cst_51 = arith.constant 1.000000e+00 : f32
    %94 = vector.broadcast %cst_51 : f32 to vector<4x32xf32>
    %95 = arith.addf %94, %93 : vector<4x32xf32>
    %96 = tpu.reciprocal %95 : vector<4x32xf32> -> vector<4x32xf32>
    %c0_52 = arith.constant 0 : index
    %c0_53 = arith.constant 0 : index
    %97 = vector.load %arg7[%c0_52, %c0_53] : memref<4x32xf32, #tpu.memory_space<vmem>>, vector<4x32xf32>
    %98 = arith.mulf %87, %97 : vector<4x32xf32>
    %99 = arith.mulf %80, %89 : vector<4x32xf32>
    %100 = arith.addf %98, %99 : vector<4x32xf32>
    %101 = math.tanh %100 : vector<4x32xf32>
    %102 = arith.mulf %96, %101 : vector<4x32xf32>
    %c0_54 = arith.constant 0 : index
    %c0_55 = arith.constant 0 : index
    %103 = vector.load %arg7[%c0_54, %c0_55] : memref<4x32xf32, #tpu.memory_space<vmem>>, vector<4x32xf32>
    tpu.vector_store %arg7[%c0_54, %c0_55], %100 {strides = array<i32>} : memref<4x32xf32, #tpu.memory_space<vmem>>, vector<4x32xf32>,
    %c0_56 = arith.constant 0 : index
    %c0_57 = arith.constant 0 : index
    %104 = vector.load %arg6[%c0_56, %c0_57] : memref<4x32xf32, #tpu.memory_space<vmem>>, vector<4x32xf32>
    tpu.vector_store %arg6[%c0_56, %c0_57], %102 {strides = array<i32>} : memref<4x32xf32, #tpu.memory_space<vmem>>, vector<4x32xf32>,
    %c0_58 = arith.constant 0 : index
    %c0_59 = arith.constant 0 : index
    %c0_60 = arith.constant 0 : index
    %105 = vector.load %arg1[%c0_58, %c0_59, %c0_60] : memref<4x16x32xf32, #tpu.memory_space<vmem>>, vector<4x16x32xf32>
    %106 = vector.shape_cast %102 : vector<4x32xf32> to vector<4x1x32xf32>
    %107 = vector.broadcast %106 : vector<4x1x32xf32> to vector<4x16x32xf32>
    %108 = arith.mulf %105, %107 : vector<4x16x32xf32>
    %cst_61 = arith.constant dense<0.000000e+00> : vector<4x16xf32>
    %109 = vector.multi_reduction <add>, %108, %cst_61 [2] : vector<4x16x32xf32> to vector<4x16xf32>
    %cst_62 = arith.constant dense<0xFF800000> : vector<4xf32>
    %110 = vector.multi_reduction <maximumf>, %109, %cst_62 [1] : vector<4x16xf32> to vector<4xf32>
    %111 = vector.shape_cast %110 : vector<4xf32> to vector<4x1xf32>
    %112 = vector.broadcast %111 : vector<4x1xf32> to vector<4x16xf32>
    %113 = arith.subf %109, %112 : vector<4x16xf32>
    %114 = math.exp %113 : vector<4x16xf32>
    %cst_63 = arith.constant dense<0.000000e+00> : vector<4xf32>
    %115 = vector.multi_reduction <add>, %114, %cst_63 [1] : vector<4x16xf32> to vector<4xf32>
    %116 = vector.shape_cast %115 : vector<4xf32> to vector<4x1xf32>
    %117 = vector.shape_cast %114 : vector<4x16xf32> to vector<4x16x1xf32>
    %118 = vector.broadcast %117 : vector<4x16x1xf32> to vector<4x16x32xf32>
    %119 = arith.mulf %118, %105 : vector<4x16x32xf32>
    %cst_64 = arith.constant dense<0.000000e+00> : vector<4x32xf32>
    %120 = vector.multi_reduction <add>, %119, %cst_64 [1] : vector<4x16x32xf32> to vector<4x32xf32>
    %121 = tpu.reciprocal %116 : vector<4x1xf32> -> vector<4x1xf32>
    %122 = vector.broadcast %121 : vector<4x1xf32> to vector<4x32xf32>
    %123 = arith.mulf %120, %122 : vector<4x32xf32>
    %c0_65 = arith.constant 0 : index
    %c0_66 = arith.constant 0 : index
    %124 = vector.load %arg8[%c0_65, %c0_66] : memref<4x32xf32, #tpu.memory_space<vmem>>, vector<4x32xf32>
    tpu.vector_store %arg8[%c0_65, %c0_66], %123 {strides = array<i32>} : memref<4x32xf32, #tpu.memory_space<vmem>>, vector<4x32xf32>,
    %c0_67 = arith.constant 0 : index
    %c0_68 = arith.constant 0 : index
    %125 = vector.load %arg6[%c0_67, %c0_68] : memref<4x32xf32, #tpu.memory_space<vmem>>, vector<4x32xf32>
    %c0_69 = arith.constant 0 : index
    %c0_70 = arith.constant 0 : index
    %126 = vector.load %arg8[%c0_69, %c0_70] : memref<4x32xf32, #tpu.memory_space<vmem>>, vector<4x32xf32>
    %cst_71 = arith.constant dense<0.000000e+00> : vector<4x128xf32>
    %127 = tpu.matmul %125, %6, %cst_71 {dimension_numbers = #tpu.dot_dimension_numbers<[1], [0], [0], [1], [0, 0, 1, 1], [], []>} : vector<4x32xf32>, vector<32x128xf32>, vector<4x128xf32> -> vector<4x128xf32>
    %cst_72 = arith.constant dense<0.000000e+00> : vector<4x128xf32>
    %128 = tpu.matmul %126, %7, %cst_72 {dimension_numbers = #tpu.dot_dimension_numbers<[1], [0], [0], [1], [0, 0, 1, 1], [], []>} : vector<4x32xf32>, vector<32x128xf32>, vector<4x128xf32> -> vector<4x128xf32>
    %129 = arith.addf %127, %128 : vector<4x128xf32>
    %130 = vector.broadcast %8 : vector<1x128xf32> to vector<4x128xf32>
    %131 = arith.addf %129, %130 : vector<4x128xf32>
    %132 = vector.extract_strided_slice %131 {offsets = [0, 0], sizes = [4, 32], strides = [1, 1]} : vector<4x128xf32> to vector<4x32xf32>
    %cst_73 = arith.constant 0.000000e+00 : f32
    %133 = vector.broadcast %cst_73 : f32 to vector<4x32xf32>
    %134 = arith.subf %133, %132 : vector<4x32xf32>
    %135 = math.exp %134 : vector<4x32xf32>
    %cst_74 = arith.constant 1.000000e+00 : f32
    %136 = vector.broadcast %cst_74 : f32 to vector<4x32xf32>
    %137 = arith.addf %136, %135 : vector<4x32xf32>
    %138 = tpu.reciprocal %137 : vector<4x32xf32> -> vector<4x32xf32>
    %139 = vector.extract_strided_slice %131 {offsets = [0, 32], sizes = [4, 32], strides = [1, 1]} : vector<4x128xf32> to vector<4x32xf32>
    %cst_75 = arith.constant 0.000000e+00 : f32
    %140 = vector.broadcast %cst_75 : f32 to vector<4x32xf32>
    %141 = arith.subf %140, %139 : vector<4x32xf32>
    %142 = math.exp %141 : vector<4x32xf32>
    %cst_76 = arith.constant 1.000000e+00 : f32
    %143 = vector.broadcast %cst_76 : f32 to vector<4x32xf32>
    %144 = arith.addf %143, %142 : vector<4x32xf32>
    %145 = tpu.reciprocal %144 : vector<4x32xf32> -> vector<4x32xf32>
    %146 = vector.extract_strided_slice %131 {offsets = [0, 64], sizes = [4, 32], strides = [1, 1]} : vector<4x128xf32> to vector<4x32xf32>
    %147 = math.tanh %146 : vector<4x32xf32>
    %148 = vector.extract_strided_slice %131 {offsets = [0, 96], sizes = [4, 32], strides = [1, 1]} : vector<4x128xf32> to vector<4x32xf32>
    %cst_77 = arith.constant 0.000000e+00 : f32
    %149 = vector.broadcast %cst_77 : f32 to vector<4x32xf32>
    %150 = arith.subf %149, %148 : vector<4x32xf32>
    %151 = math.exp %150 : vector<4x32xf32>
    %cst_78 = arith.constant 1.000000e+00 : f32
    %152 = vector.broadcast %cst_78 : f32 to vector<4x32xf32>
    %153 = arith.addf %152, %151 : vector<4x32xf32>
    %154 = tpu.reciprocal %153 : vector<4x32xf32> -> vector<4x32xf32>
    %c0_79 = arith.constant 0 : index
    %c0_80 = arith.constant 0 : index
    %155 = vector.load %arg7[%c0_79, %c0_80] : memref<4x32xf32, #tpu.memory_space<vmem>>, vector<4x32xf32>
    %156 = arith.mulf %145, %155 : vector<4x32xf32>
    %157 = arith.mulf %138, %147 : vector<4x32xf32>
    %158 = arith.addf %156, %157 : vector<4x32xf32>
    %159 = math.tanh %158 : vector<4x32xf32>
    %160 = arith.mulf %154, %159 : vector<4x32xf32>
    %c0_81 = arith.constant 0 : index
    %c0_82 = arith.constant 0 : index
    %161 = vector.load %arg7[%c0_81, %c0_82] : memref<4x32xf32, #tpu.memory_space<vmem>>, vector<4x32xf32>
    tpu.vector_store %arg7[%c0_81, %c0_82], %158 {strides = array<i32>} : memref<4x32xf32, #tpu.memory_space<vmem>>, vector<4x32xf32>,
    %c0_83 = arith.constant 0 : index
    %c0_84 = arith.constant 0 : index
    %162 = vector.load %arg6[%c0_83, %c0_84] : memref<4x32xf32, #tpu.memory_space<vmem>>, vector<4x32xf32>
    tpu.vector_store %arg6[%c0_83, %c0_84], %160 {strides = array<i32>} : memref<4x32xf32, #tpu.memory_space<vmem>>, vector<4x32xf32>,
    %c0_85 = arith.constant 0 : index
    %c0_86 = arith.constant 0 : index
    %c0_87 = arith.constant 0 : index
    %163 = vector.load %arg1[%c0_85, %c0_86, %c0_87] : memref<4x16x32xf32, #tpu.memory_space<vmem>>, vector<4x16x32xf32>
    %164 = vector.shape_cast %160 : vector<4x32xf32> to vector<4x1x32xf32>
    %165 = vector.broadcast %164 : vector<4x1x32xf32> to vector<4x16x32xf32>
    %166 = arith.mulf %163, %165 : vector<4x16x32xf32>
    %cst_88 = arith.constant dense<0.000000e+00> : vector<4x16xf32>
    %167 = vector.multi_reduction <add>, %166, %cst_88 [2] : vector<4x16x32xf32> to vector<4x16xf32>
    %cst_89 = arith.constant dense<0xFF800000> : vector<4xf32>
    %168 = vector.multi_reduction <maximumf>, %167, %cst_89 [1] : vector<4x16xf32> to vector<4xf32>
    %169 = vector.shape_cast %168 : vector<4xf32> to vector<4x1xf32>
    %170 = vector.broadcast %169 : vector<4x1xf32> to vector<4x16xf32>
    %171 = arith.subf %167, %170 : vector<4x16xf32>
    %172 = math.exp %171 : vector<4x16xf32>
    %cst_90 = arith.constant dense<0.000000e+00> : vector<4xf32>
    %173 = vector.multi_reduction <add>, %172, %cst_90 [1] : vector<4x16xf32> to vector<4xf32>
    %174 = vector.shape_cast %173 : vector<4xf32> to vector<4x1xf32>
    %175 = vector.shape_cast %172 : vector<4x16xf32> to vector<4x16x1xf32>
    %176 = vector.broadcast %175 : vector<4x16x1xf32> to vector<4x16x32xf32>
    %177 = arith.mulf %176, %163 : vector<4x16x32xf32>
    %cst_91 = arith.constant dense<0.000000e+00> : vector<4x32xf32>
    %178 = vector.multi_reduction <add>, %177, %cst_91 [1] : vector<4x16x32xf32> to vector<4x32xf32>
    %179 = tpu.reciprocal %174 : vector<4x1xf32> -> vector<4x1xf32>
    %180 = vector.broadcast %179 : vector<4x1xf32> to vector<4x32xf32>
    %181 = arith.mulf %178, %180 : vector<4x32xf32>
    %c0_92 = arith.constant 0 : index
    %c0_93 = arith.constant 0 : index
    %182 = vector.load %arg8[%c0_92, %c0_93] : memref<4x32xf32, #tpu.memory_space<vmem>>, vector<4x32xf32>
    tpu.vector_store %arg8[%c0_92, %c0_93], %181 {strides = array<i32>} : memref<4x32xf32, #tpu.memory_space<vmem>>, vector<4x32xf32>,
    %c0_94 = arith.constant 0 : index
    %c0_95 = arith.constant 0 : index
    %183 = vector.load %arg6[%c0_94, %c0_95] : memref<4x32xf32, #tpu.memory_space<vmem>>, vector<4x32xf32>
    %c0_96 = arith.constant 0 : index
    %c0_97 = arith.constant 0 : index
    %184 = vector.load %arg8[%c0_96, %c0_97] : memref<4x32xf32, #tpu.memory_space<vmem>>, vector<4x32xf32>
    %cst_98 = arith.constant dense<0.000000e+00> : vector<4x128xf32>
    %185 = tpu.matmul %183, %6, %cst_98 {dimension_numbers = #tpu.dot_dimension_numbers<[1], [0], [0], [1], [0, 0, 1, 1], [], []>} : vector<4x32xf32>, vector<32x128xf32>, vector<4x128xf32> -> vector<4x128xf32>
    %cst_99 = arith.constant dense<0.000000e+00> : vector<4x128xf32>
    %186 = tpu.matmul %184, %7, %cst_99 {dimension_numbers = #tpu.dot_dimension_numbers<[1], [0], [0], [1], [0, 0, 1, 1], [], []>} : vector<4x32xf32>, vector<32x128xf32>, vector<4x128xf32> -> vector<4x128xf32>
    %187 = arith.addf %185, %186 : vector<4x128xf32>
    %188 = vector.broadcast %8 : vector<1x128xf32> to vector<4x128xf32>
    %189 = arith.addf %187, %188 : vector<4x128xf32>
    %190 = vector.extract_strided_slice %189 {offsets = [0, 0], sizes = [4, 32], strides = [1, 1]} : vector<4x128xf32> to vector<4x32xf32>
    %cst_100 = arith.constant 0.000000e+00 : f32
    %191 = vector.broadcast %cst_100 : f32 to vector<4x32xf32>
    %192 = arith.subf %191, %190 : vector<4x32xf32>
    %193 = math.exp %192 : vector<4x32xf32>
    %cst_101 = arith.constant 1.000000e+00 : f32
    %194 = vector.broadcast %cst_101 : f32 to vector<4x32xf32>
    %195 = arith.addf %194, %193 : vector<4x32xf32>
    %196 = tpu.reciprocal %195 : vector<4x32xf32> -> vector<4x32xf32>
    %197 = vector.extract_strided_slice %189 {offsets = [0, 32], sizes = [4, 32], strides = [1, 1]} : vector<4x128xf32> to vector<4x32xf32>
    %cst_102 = arith.constant 0.000000e+00 : f32
    %198 = vector.broadcast %cst_102 : f32 to vector<4x32xf32>
    %199 = arith.subf %198, %197 : vector<4x32xf32>
    %200 = math.exp %199 : vector<4x32xf32>
    %cst_103 = arith.constant 1.000000e+00 : f32
    %201 = vector.broadcast %cst_103 : f32 to vector<4x32xf32>
    %202 = arith.addf %201, %200 : vector<4x32xf32>
    %203 = tpu.reciprocal %202 : vector<4x32xf32> -> vector<4x32xf32>
    %204 = vector.extract_strided_slice %189 {offsets = [0, 64], sizes = [4, 32], strides = [1, 1]} : vector<4x128xf32> to vector<4x32xf32>
    %205 = math.tanh %204 : vector<4x32xf32>
    %206 = vector.extract_strided_slice %189 {offsets = [0, 96], sizes = [4, 32], strides = [1, 1]} : vector<4x128xf32> to vector<4x32xf32>
    %cst_104 = arith.constant 0.000000e+00 : f32
    %207 = vector.broadcast %cst_104 : f32 to vector<4x32xf32>
    %208 = arith.subf %207, %206 : vector<4x32xf32>
    %209 = math.exp %208 : vector<4x32xf32>
    %cst_105 = arith.constant 1.000000e+00 : f32
    %210 = vector.broadcast %cst_105 : f32 to vector<4x32xf32>
    %211 = arith.addf %210, %209 : vector<4x32xf32>
    %212 = tpu.reciprocal %211 : vector<4x32xf32> -> vector<4x32xf32>
    %c0_106 = arith.constant 0 : index
    %c0_107 = arith.constant 0 : index
    %213 = vector.load %arg7[%c0_106, %c0_107] : memref<4x32xf32, #tpu.memory_space<vmem>>, vector<4x32xf32>
    %214 = arith.mulf %203, %213 : vector<4x32xf32>
    %215 = arith.mulf %196, %205 : vector<4x32xf32>
    %216 = arith.addf %214, %215 : vector<4x32xf32>
    %217 = math.tanh %216 : vector<4x32xf32>
    %218 = arith.mulf %212, %217 : vector<4x32xf32>
    %c0_108 = arith.constant 0 : index
    %c0_109 = arith.constant 0 : index
    %219 = vector.load %arg7[%c0_108, %c0_109] : memref<4x32xf32, #tpu.memory_space<vmem>>, vector<4x32xf32>
    tpu.vector_store %arg7[%c0_108, %c0_109], %216 {strides = array<i32>} : memref<4x32xf32, #tpu.memory_space<vmem>>, vector<4x32xf32>,
    %c0_110 = arith.constant 0 : index
    %c0_111 = arith.constant 0 : index
    %220 = vector.load %arg6[%c0_110, %c0_111] : memref<4x32xf32, #tpu.memory_space<vmem>>, vector<4x32xf32>
    tpu.vector_store %arg6[%c0_110, %c0_111], %218 {strides = array<i32>} : memref<4x32xf32, #tpu.memory_space<vmem>>, vector<4x32xf32>,
    %c0_112 = arith.constant 0 : index
    %c0_113 = arith.constant 0 : index
    %c0_114 = arith.constant 0 : index
    %221 = vector.load %arg1[%c0_112, %c0_113, %c0_114] : memref<4x16x32xf32, #tpu.memory_space<vmem>>, vector<4x16x32xf32>
    %222 = vector.shape_cast %218 : vector<4x32xf32> to vector<4x1x32xf32>
    %223 = vector.broadcast %222 : vector<4x1x32xf32> to vector<4x16x32xf32>
    %224 = arith.mulf %221, %223 : vector<4x16x32xf32>
    %cst_115 = arith.constant dense<0.000000e+00> : vector<4x16xf32>
    %225 = vector.multi_reduction <add>, %224, %cst_115 [2] : vector<4x16x32xf32> to vector<4x16xf32>
    %cst_116 = arith.constant dense<0xFF800000> : vector<4xf32>
    %226 = vector.multi_reduction <maximumf>, %225, %cst_116 [1] : vector<4x16xf32> to vector<4xf32>
    %227 = vector.shape_cast %226 : vector<4xf32> to vector<4x1xf32>
    %228 = vector.broadcast %227 : vector<4x1xf32> to vector<4x16xf32>
    %229 = arith.subf %225, %228 : vector<4x16xf32>
    %230 = math.exp %229 : vector<4x16xf32>
    %cst_117 = arith.constant dense<0.000000e+00> : vector<4xf32>
    %231 = vector.multi_reduction <add>, %230, %cst_117 [1] : vector<4x16xf32> to vector<4xf32>
    %232 = vector.shape_cast %231 : vector<4xf32> to vector<4x1xf32>
    %233 = vector.shape_cast %230 : vector<4x16xf32> to vector<4x16x1xf32>
    %234 = vector.broadcast %233 : vector<4x16x1xf32> to vector<4x16x32xf32>
    %235 = arith.mulf %234, %221 : vector<4x16x32xf32>
    %cst_118 = arith.constant dense<0.000000e+00> : vector<4x32xf32>
    %236 = vector.multi_reduction <add>, %235, %cst_118 [1] : vector<4x16x32xf32> to vector<4x32xf32>
    %237 = tpu.reciprocal %232 : vector<4x1xf32> -> vector<4x1xf32>
    %238 = vector.broadcast %237 : vector<4x1xf32> to vector<4x32xf32>
    %239 = arith.mulf %236, %238 : vector<4x32xf32>
    %c0_119 = arith.constant 0 : index
    %c0_120 = arith.constant 0 : index
    %240 = vector.load %arg8[%c0_119, %c0_120] : memref<4x32xf32, #tpu.memory_space<vmem>>, vector<4x32xf32>
    tpu.vector_store %arg8[%c0_119, %c0_120], %239 {strides = array<i32>} : memref<4x32xf32, #tpu.memory_space<vmem>>, vector<4x32xf32>,
    %c0_121 = arith.constant 0 : index
    %c0_122 = arith.constant 0 : index
    %241 = vector.load %arg6[%c0_121, %c0_122] : memref<4x32xf32, #tpu.memory_space<vmem>>, vector<4x32xf32>
    %c0_123 = arith.constant 0 : index
    %c0_124 = arith.constant 0 : index
    %242 = vector.load %arg8[%c0_123, %c0_124] : memref<4x32xf32, #tpu.memory_space<vmem>>, vector<4x32xf32>
    %cst_125 = arith.constant dense<0.000000e+00> : vector<4x128xf32>
    %243 = tpu.matmul %241, %6, %cst_125 {dimension_numbers = #tpu.dot_dimension_numbers<[1], [0], [0], [1], [0, 0, 1, 1], [], []>} : vector<4x32xf32>, vector<32x128xf32>, vector<4x128xf32> -> vector<4x128xf32>
    %cst_126 = arith.constant dense<0.000000e+00> : vector<4x128xf32>
    %244 = tpu.matmul %242, %7, %cst_126 {dimension_numbers = #tpu.dot_dimension_numbers<[1], [0], [0], [1], [0, 0, 1, 1], [], []>} : vector<4x32xf32>, vector<32x128xf32>, vector<4x128xf32> -> vector<4x128xf32>
    %245 = arith.addf %243, %244 : vector<4x128xf32>
    %246 = vector.broadcast %8 : vector<1x128xf32> to vector<4x128xf32>
    %247 = arith.addf %245, %246 : vector<4x128xf32>
    %248 = vector.extract_strided_slice %247 {offsets = [0, 0], sizes = [4, 32], strides = [1, 1]} : vector<4x128xf32> to vector<4x32xf32>
    %cst_127 = arith.constant 0.000000e+00 : f32
    %249 = vector.broadcast %cst_127 : f32 to vector<4x32xf32>
    %250 = arith.subf %249, %248 : vector<4x32xf32>
    %251 = math.exp %250 : vector<4x32xf32>
    %cst_128 = arith.constant 1.000000e+00 : f32
    %252 = vector.broadcast %cst_128 : f32 to vector<4x32xf32>
    %253 = arith.addf %252, %251 : vector<4x32xf32>
    %254 = tpu.reciprocal %253 : vector<4x32xf32> -> vector<4x32xf32>
    %255 = vector.extract_strided_slice %247 {offsets = [0, 32], sizes = [4, 32], strides = [1, 1]} : vector<4x128xf32> to vector<4x32xf32>
    %cst_129 = arith.constant 0.000000e+00 : f32
    %256 = vector.broadcast %cst_129 : f32 to vector<4x32xf32>
    %257 = arith.subf %256, %255 : vector<4x32xf32>
    %258 = math.exp %257 : vector<4x32xf32>
    %cst_130 = arith.constant 1.000000e+00 : f32
    %259 = vector.broadcast %cst_130 : f32 to vector<4x32xf32>
    %260 = arith.addf %259, %258 : vector<4x32xf32>
    %261 = tpu.reciprocal %260 : vector<4x32xf32> -> vector<4x32xf32>
    %262 = vector.extract_strided_slice %247 {offsets = [0, 64], sizes = [4, 32], strides = [1, 1]} : vector<4x128xf32> to vector<4x32xf32>
    %263 = math.tanh %262 : vector<4x32xf32>
    %264 = vector.extract_strided_slice %247 {offsets = [0, 96], sizes = [4, 32], strides = [1, 1]} : vector<4x128xf32> to vector<4x32xf32>
    %cst_131 = arith.constant 0.000000e+00 : f32
    %265 = vector.broadcast %cst_131 : f32 to vector<4x32xf32>
    %266 = arith.subf %265, %264 : vector<4x32xf32>
    %267 = math.exp %266 : vector<4x32xf32>
    %cst_132 = arith.constant 1.000000e+00 : f32
    %268 = vector.broadcast %cst_132 : f32 to vector<4x32xf32>
    %269 = arith.addf %268, %267 : vector<4x32xf32>
    %270 = tpu.reciprocal %269 : vector<4x32xf32> -> vector<4x32xf32>
    %c0_133 = arith.constant 0 : index
    %c0_134 = arith.constant 0 : index
    %271 = vector.load %arg7[%c0_133, %c0_134] : memref<4x32xf32, #tpu.memory_space<vmem>>, vector<4x32xf32>
    %272 = arith.mulf %261, %271 : vector<4x32xf32>
    %273 = arith.mulf %254, %263 : vector<4x32xf32>
    %274 = arith.addf %272, %273 : vector<4x32xf32>
    %275 = math.tanh %274 : vector<4x32xf32>
    %276 = arith.mulf %270, %275 : vector<4x32xf32>
    %c0_135 = arith.constant 0 : index
    %c0_136 = arith.constant 0 : index
    %277 = vector.load %arg7[%c0_135, %c0_136] : memref<4x32xf32, #tpu.memory_space<vmem>>, vector<4x32xf32>
    tpu.vector_store %arg7[%c0_135, %c0_136], %274 {strides = array<i32>} : memref<4x32xf32, #tpu.memory_space<vmem>>, vector<4x32xf32>,
    %c0_137 = arith.constant 0 : index
    %c0_138 = arith.constant 0 : index
    %278 = vector.load %arg6[%c0_137, %c0_138] : memref<4x32xf32, #tpu.memory_space<vmem>>, vector<4x32xf32>
    tpu.vector_store %arg6[%c0_137, %c0_138], %276 {strides = array<i32>} : memref<4x32xf32, #tpu.memory_space<vmem>>, vector<4x32xf32>,
    %c0_139 = arith.constant 0 : index
    %c0_140 = arith.constant 0 : index
    %c0_141 = arith.constant 0 : index
    %279 = vector.load %arg1[%c0_139, %c0_140, %c0_141] : memref<4x16x32xf32, #tpu.memory_space<vmem>>, vector<4x16x32xf32>
    %280 = vector.shape_cast %276 : vector<4x32xf32> to vector<4x1x32xf32>
    %281 = vector.broadcast %280 : vector<4x1x32xf32> to vector<4x16x32xf32>
    %282 = arith.mulf %279, %281 : vector<4x16x32xf32>
    %cst_142 = arith.constant dense<0.000000e+00> : vector<4x16xf32>
    %283 = vector.multi_reduction <add>, %282, %cst_142 [2] : vector<4x16x32xf32> to vector<4x16xf32>
    %cst_143 = arith.constant dense<0xFF800000> : vector<4xf32>
    %284 = vector.multi_reduction <maximumf>, %283, %cst_143 [1] : vector<4x16xf32> to vector<4xf32>
    %285 = vector.shape_cast %284 : vector<4xf32> to vector<4x1xf32>
    %286 = vector.broadcast %285 : vector<4x1xf32> to vector<4x16xf32>
    %287 = arith.subf %283, %286 : vector<4x16xf32>
    %288 = math.exp %287 : vector<4x16xf32>
    %cst_144 = arith.constant dense<0.000000e+00> : vector<4xf32>
    %289 = vector.multi_reduction <add>, %288, %cst_144 [1] : vector<4x16xf32> to vector<4xf32>
    %290 = vector.shape_cast %289 : vector<4xf32> to vector<4x1xf32>
    %291 = vector.shape_cast %288 : vector<4x16xf32> to vector<4x16x1xf32>
    %292 = vector.broadcast %291 : vector<4x16x1xf32> to vector<4x16x32xf32>
    %293 = arith.mulf %292, %279 : vector<4x16x32xf32>
    %cst_145 = arith.constant dense<0.000000e+00> : vector<4x32xf32>
    %294 = vector.multi_reduction <add>, %293, %cst_145 [1] : vector<4x16x32xf32> to vector<4x32xf32>
    %295 = tpu.reciprocal %290 : vector<4x1xf32> -> vector<4x1xf32>
    %296 = vector.broadcast %295 : vector<4x1xf32> to vector<4x32xf32>
    %297 = arith.mulf %294, %296 : vector<4x32xf32>
    %c0_146 = arith.constant 0 : index
    %c0_147 = arith.constant 0 : index
    %298 = vector.load %arg8[%c0_146, %c0_147] : memref<4x32xf32, #tpu.memory_space<vmem>>, vector<4x32xf32>
    tpu.vector_store %arg8[%c0_146, %c0_147], %297 {strides = array<i32>} : memref<4x32xf32, #tpu.memory_space<vmem>>, vector<4x32xf32>,
    %c0_148 = arith.constant 0 : index
    %c0_149 = arith.constant 0 : index
    %299 = vector.load %arg6[%c0_148, %c0_149] : memref<4x32xf32, #tpu.memory_space<vmem>>, vector<4x32xf32>
    %c0_150 = arith.constant 0 : index
    %c0_151 = arith.constant 0 : index
    %300 = vector.load %arg8[%c0_150, %c0_151] : memref<4x32xf32, #tpu.memory_space<vmem>>, vector<4x32xf32>
    %cst_152 = arith.constant dense<0.000000e+00> : vector<4x128xf32>
    %301 = tpu.matmul %299, %6, %cst_152 {dimension_numbers = #tpu.dot_dimension_numbers<[1], [0], [0], [1], [0, 0, 1, 1], [], []>} : vector<4x32xf32>, vector<32x128xf32>, vector<4x128xf32> -> vector<4x128xf32>
    %cst_153 = arith.constant dense<0.000000e+00> : vector<4x128xf32>
    %302 = tpu.matmul %300, %7, %cst_153 {dimension_numbers = #tpu.dot_dimension_numbers<[1], [0], [0], [1], [0, 0, 1, 1], [], []>} : vector<4x32xf32>, vector<32x128xf32>, vector<4x128xf32> -> vector<4x128xf32>
    %303 = arith.addf %301, %302 : vector<4x128xf32>
    %304 = vector.broadcast %8 : vector<1x128xf32> to vector<4x128xf32>
    %305 = arith.addf %303, %304 : vector<4x128xf32>
    %306 = vector.extract_strided_slice %305 {offsets = [0, 0], sizes = [4, 32], strides = [1, 1]} : vector<4x128xf32> to vector<4x32xf32>
    %cst_154 = arith.constant 0.000000e+00 : f32
    %307 = vector.broadcast %cst_154 : f32 to vector<4x32xf32>
    %308 = arith.subf %307, %306 : vector<4x32xf32>
    %309 = math.exp %308 : vector<4x32xf32>
    %cst_155 = arith.constant 1.000000e+00 : f32
    %310 = vector.broadcast %cst_155 : f32 to vector<4x32xf32>
    %311 = arith.addf %310, %309 : vector<4x32xf32>
    %312 = tpu.reciprocal %311 : vector<4x32xf32> -> vector<4x32xf32>
    %313 = vector.extract_strided_slice %305 {offsets = [0, 32], sizes = [4, 32], strides = [1, 1]} : vector<4x128xf32> to vector<4x32xf32>
    %cst_156 = arith.constant 0.000000e+00 : f32
    %314 = vector.broadcast %cst_156 : f32 to vector<4x32xf32>
    %315 = arith.subf %314, %313 : vector<4x32xf32>
    %316 = math.exp %315 : vector<4x32xf32>
    %cst_157 = arith.constant 1.000000e+00 : f32
    %317 = vector.broadcast %cst_157 : f32 to vector<4x32xf32>
    %318 = arith.addf %317, %316 : vector<4x32xf32>
    %319 = tpu.reciprocal %318 : vector<4x32xf32> -> vector<4x32xf32>
    %320 = vector.extract_strided_slice %305 {offsets = [0, 64], sizes = [4, 32], strides = [1, 1]} : vector<4x128xf32> to vector<4x32xf32>
    %321 = math.tanh %320 : vector<4x32xf32>
    %322 = vector.extract_strided_slice %305 {offsets = [0, 96], sizes = [4, 32], strides = [1, 1]} : vector<4x128xf32> to vector<4x32xf32>
    %cst_158 = arith.constant 0.000000e+00 : f32
    %323 = vector.broadcast %cst_158 : f32 to vector<4x32xf32>
    %324 = arith.subf %323, %322 : vector<4x32xf32>
    %325 = math.exp %324 : vector<4x32xf32>
    %cst_159 = arith.constant 1.000000e+00 : f32
    %326 = vector.broadcast %cst_159 : f32 to vector<4x32xf32>
    %327 = arith.addf %326, %325 : vector<4x32xf32>
    %328 = tpu.reciprocal %327 : vector<4x32xf32> -> vector<4x32xf32>
    %c0_160 = arith.constant 0 : index
    %c0_161 = arith.constant 0 : index
    %329 = vector.load %arg7[%c0_160, %c0_161] : memref<4x32xf32, #tpu.memory_space<vmem>>, vector<4x32xf32>
    %330 = arith.mulf %319, %329 : vector<4x32xf32>
    %331 = arith.mulf %312, %321 : vector<4x32xf32>
    %332 = arith.addf %330, %331 : vector<4x32xf32>
    %333 = math.tanh %332 : vector<4x32xf32>
    %334 = arith.mulf %328, %333 : vector<4x32xf32>
    %c0_162 = arith.constant 0 : index
    %c0_163 = arith.constant 0 : index
    %335 = vector.load %arg7[%c0_162, %c0_163] : memref<4x32xf32, #tpu.memory_space<vmem>>, vector<4x32xf32>
    tpu.vector_store %arg7[%c0_162, %c0_163], %332 {strides = array<i32>} : memref<4x32xf32, #tpu.memory_space<vmem>>, vector<4x32xf32>,
    %c0_164 = arith.constant 0 : index
    %c0_165 = arith.constant 0 : index
    %336 = vector.load %arg6[%c0_164, %c0_165] : memref<4x32xf32, #tpu.memory_space<vmem>>, vector<4x32xf32>
    tpu.vector_store %arg6[%c0_164, %c0_165], %334 {strides = array<i32>} : memref<4x32xf32, #tpu.memory_space<vmem>>, vector<4x32xf32>,
    %c0_166 = arith.constant 0 : index
    %c0_167 = arith.constant 0 : index
    %c0_168 = arith.constant 0 : index
    %337 = vector.load %arg1[%c0_166, %c0_167, %c0_168] : memref<4x16x32xf32, #tpu.memory_space<vmem>>, vector<4x16x32xf32>
    %338 = vector.shape_cast %334 : vector<4x32xf32> to vector<4x1x32xf32>
    %339 = vector.broadcast %338 : vector<4x1x32xf32> to vector<4x16x32xf32>
    %340 = arith.mulf %337, %339 : vector<4x16x32xf32>
    %cst_169 = arith.constant dense<0.000000e+00> : vector<4x16xf32>
    %341 = vector.multi_reduction <add>, %340, %cst_169 [2] : vector<4x16x32xf32> to vector<4x16xf32>
    %cst_170 = arith.constant dense<0xFF800000> : vector<4xf32>
    %342 = vector.multi_reduction <maximumf>, %341, %cst_170 [1] : vector<4x16xf32> to vector<4xf32>
    %343 = vector.shape_cast %342 : vector<4xf32> to vector<4x1xf32>
    %344 = vector.broadcast %343 : vector<4x1xf32> to vector<4x16xf32>
    %345 = arith.subf %341, %344 : vector<4x16xf32>
    %346 = math.exp %345 : vector<4x16xf32>
    %cst_171 = arith.constant dense<0.000000e+00> : vector<4xf32>
    %347 = vector.multi_reduction <add>, %346, %cst_171 [1] : vector<4x16xf32> to vector<4xf32>
    %348 = vector.shape_cast %347 : vector<4xf32> to vector<4x1xf32>
    %349 = vector.shape_cast %346 : vector<4x16xf32> to vector<4x16x1xf32>
    %350 = vector.broadcast %349 : vector<4x16x1xf32> to vector<4x16x32xf32>
    %351 = arith.mulf %350, %337 : vector<4x16x32xf32>
    %cst_172 = arith.constant dense<0.000000e+00> : vector<4x32xf32>
    %352 = vector.multi_reduction <add>, %351, %cst_172 [1] : vector<4x16x32xf32> to vector<4x32xf32>
    %353 = tpu.reciprocal %348 : vector<4x1xf32> -> vector<4x1xf32>
    %354 = vector.broadcast %353 : vector<4x1xf32> to vector<4x32xf32>
    %355 = arith.mulf %352, %354 : vector<4x32xf32>
    %c0_173 = arith.constant 0 : index
    %c0_174 = arith.constant 0 : index
    %356 = vector.load %arg8[%c0_173, %c0_174] : memref<4x32xf32, #tpu.memory_space<vmem>>, vector<4x32xf32>
    tpu.vector_store %arg8[%c0_173, %c0_174], %355 {strides = array<i32>} : memref<4x32xf32, #tpu.memory_space<vmem>>, vector<4x32xf32>,
    %c0_175 = arith.constant 0 : index
    %c0_176 = arith.constant 0 : index
    %357 = vector.load %arg6[%c0_175, %c0_176] : memref<4x32xf32, #tpu.memory_space<vmem>>, vector<4x32xf32>
    %c0_177 = arith.constant 0 : index
    %c0_178 = arith.constant 0 : index
    %358 = vector.load %arg5[%c0_177, %c0_178] : memref<4x64xf32, #tpu.memory_space<vmem>>, vector<4x32xf32>
    tpu.vector_store %arg5[%c0_177, %c0_178], %357 {strides = array<i32>} : memref<4x64xf32, #tpu.memory_space<vmem>>, vector<4x32xf32>,
    %c0_179 = arith.constant 0 : index
    %c0_180 = arith.constant 0 : index
    %359 = vector.load %arg8[%c0_179, %c0_180] : memref<4x32xf32, #tpu.memory_space<vmem>>, vector<4x32xf32>
    %c0_181 = arith.constant 0 : index
    %c32 = arith.constant 32 : index
    %360 = vector.load %arg5[%c0_181, %c32] : memref<4x64xf32, #tpu.memory_space<vmem>>, vector<4x32xf32>
    tpu.vector_store %arg5[%c0_181, %c32], %359 {strides = array<i32>} : memref<4x64xf32, #tpu.memory_space<vmem>>, vector<4x32xf32>,
    return
  }
  func.func @transform_0(%arg0: i32) -> (i32, i32, i32) {
    %c0_i32 = arith.constant 0 : i32
    %c0_i32_0 = arith.constant 0 : i32
    %c0_i32_1 = arith.constant 0 : i32
    return %arg0, %c0_i32, %c0_i32_0 : i32, i32, i32
  }
  func.func @transform_1(%arg0: i32) -> (i32, i32) {
    %c0_i32 = arith.constant 0 : i32
    %c0_i32_0 = arith.constant 0 : i32
    %c0_i32_1 = arith.constant 0 : i32
    return %c0_i32, %c0_i32_0 : i32, i32
  }
  func.func @transform_2(%arg0: i32) -> (i32, i32) {
    %c0_i32 = arith.constant 0 : i32
    %c0_i32_0 = arith.constant 0 : i32
    %c0_i32_1 = arith.constant 0 : i32
    return %c0_i32, %c0_i32_0 : i32, i32
  }
  func.func @transform_3(%arg0: i32) -> (i32, i32) {
    %c0_i32 = arith.constant 0 : i32
    %c0_i32_0 = arith.constant 0 : i32
    %c0_i32_1 = arith.constant 0 : i32
    return %c0_i32, %c0_i32_0 : i32, i32
  }
  func.func @transform_4(%arg0: i32) -> (i32, i32) {
    %c0_i32 = arith.constant 0 : i32
    %c0_i32_0 = arith.constant 0 : i32
    return %arg0, %c0_i32 : i32, i32
  }
}

</mosaic_0001>

<llo_original>
// kernel: tpu_custom_call.1
$region0: #{tpu_custom_call.1}
  #allocation0 [shape = 'u32[]', space=smem, size = 0x4, offset = 0x4, fixed_abs, tag = 'smem constant byte address 0x4 - core index']
  #allocation1 [shape = 'u32[144,128]{1,0:T(1,128)}', space=vmem, size = 0x12000, scoped, tag = 'internal scratch']
  #allocation2 [shape = 'f32[4,32]{1,0:T(4,128)}', space=vmem, size = 0x800, scoped, tag = 'scratch operand']
  #allocation3 [shape = 'f32[4,32]{1,0:T(4,128)}', space=vmem, size = 0x800, scoped, tag = 'scratch operand']
  #allocation4 [shape = 'f32[4,32]{1,0:T(4,128)}', space=vmem, size = 0x800, scoped, tag = 'scratch operand']
  %s0 = inlined_call_operand.hbm [shape: f32[4,16,32], index: 0, kind: input, shape index: {}]
  %s1 = inlined_call_operand.hbm [shape: f32[32,128], index: 1, kind: input, shape index: {}]
  %s2 = inlined_call_operand.hbm [shape: f32[32,128], index: 2, kind: input, shape index: {}]
  %s3 = inlined_call_operand.vmem [shape: f32[1,128], index: 3, kind: input, shape index: {}]
  %s4 = inlined_call_operand.hbm [shape: f32[4,64], index: 4, kind: output, shape index: {}]
  %s5 = sld [smem:[#allocation0]]
  $region38: #{tpu_custom_call.1} parent=0
    _
  %s7 = ssub.s32 1, %s5
  %s8 = scalar_select 0, %s7, %s5
  $region1: #{tpu_custom_call.1} parent=0
    #allocation5 [shape = 'u8[32768]{0}', space=vmem, size = 0x8000, scoped, tag = 'input window, operand 0, single buffered']
    #allocation6 [shape = 's32[1]{0}', space=sflag, size = 0x4, scoped, tag = 'scoped memory for tpu_custom_call.1']
    #allocation7 [shape = 's32[1]{0}', space=sflag, size = 0x4, scoped, tag = 'scoped memory for tpu_custom_call.1']
    #allocation8 [shape = 'u8[16384]{0}', space=vmem, size = 0x4000, scoped, tag = 'input window, operand 1, single buffered']
    #allocation9 [shape = 's32[1]{0}', space=sflag, size = 0x4, scoped, tag = 'scoped memory for tpu_custom_call.1']
    #allocation10 [shape = 'u8[16384]{0}', space=vmem, size = 0x4000, scoped, tag = 'input window, operand 2, single buffered']
    #allocation11 [shape = 'u8[2048]{0}', space=vmem, size = 0x800, scoped, tag = 'output window, operand 0, single buffered']
    %9 = vsyncpa [#allocation6], 0
    %10 = vsyncpa [#allocation9], 0
    %11 = vsyncpa [#allocation7], 0
    // Predicated region
    $region2: #{tpu_custom_call.1} parent=1 // pred_check
      _
    $region3: #{tpu_custom_call.1} parent=1 // pred_check_branch
      %13 = sbr.rel (0) target = $region5
    $region4: #{tpu_custom_call.1} parent=1 // pred_region
      %s15 = ssub.s32 1024, 1024
      %16 = vsyncadd [#allocation6], %s15
      %s17 = sshll.u32 [#allocation5], 4
      %s18 = int_to_ptr.vmem [resolvable:$true] %s17
      %23 = dma.hbm_to_vmem [thread:$0]  %s0, 1024, %s18, [#allocation6], 128, 128, 8
    $region5: #{tpu_custom_call.1} parent=1 // pred_fallthru
      _
    // Predicated region
    $region6: #{tpu_custom_call.1} parent=1 // pred_check
      _
    $region7: #{tpu_custom_call.1} parent=1 // pred_check_branch
      %25 = sbr.rel (0) target = $region9
    $region8: #{tpu_custom_call.1} parent=1 // pred_region
      %s27 = ssub.s32 512, 512
      %28 = vsyncadd [#allocation9], %s27
      %s29 = sshll.u32 [#allocation8], 4
      %s30 = int_to_ptr.vmem [resolvable:$true] %s29
      %35 = dma.hbm_to_vmem [thread:$0]  %s1, 512, %s30, [#allocation9], 128, 128, 8
    $region9: #{tpu_custom_call.1} parent=1 // pred_fallthru
      _
    // Predicated region
    $region10: #{tpu_custom_call.1} parent=1 // pred_check
      _
    $region11: #{tpu_custom_call.1} parent=1 // pred_check_branch
      %37 = sbr.rel (0) target = $region13
    $region12: #{tpu_custom_call.1} parent=1 // pred_region
      %s39 = ssub.s32 512, 512
      %40 = vsyncadd [#allocation9], %s39
      %s41 = sshll.u32 [#allocation10], 4
      %s42 = int_to_ptr.vmem [resolvable:$true] %s41
      %47 = dma.hbm_to_vmem [thread:$0]  %s2, 512, %s42, [#allocation9], 128, 128, 8
    $region13: #{tpu_custom_call.1} parent=1 // pred_fallthru
      _
    // Predicated region
    $region14: #{tpu_custom_call.1} parent=1 // pred_check
      _
    $region15: #{tpu_custom_call.1} parent=1 // pred_check_branch
      %49 = sbr.rel (0) target = $region17
    $region16: #{tpu_custom_call.1} parent=1 // pred_region
      _
    $region17: #{tpu_custom_call.1} parent=1 // pred_fallthru
      _
    // Predicated region
    $region18: #{tpu_custom_call.1} parent=1 // pred_check
      _
    $region19: #{tpu_custom_call.1} parent=1 // pred_check_branch
      %51 = sbr.rel (0) target = $region21
    $region20: #{tpu_custom_call.1} parent=1 // pred_region
      %52 = dma.done [#allocation6], 1024
    $region21: #{tpu_custom_call.1} parent=1 // pred_fallthru
      _
    // Predicated region
    $region22: #{tpu_custom_call.1} parent=1 // pred_check
      _
    $region23: #{tpu_custom_call.1} parent=1 // pred_check_branch
      %54 = sbr.rel (0) target = $region25
    $region24: #{tpu_custom_call.1} parent=1 // pred_region
      %55 = dma.done [#allocation9], 512
    $region25: #{tpu_custom_call.1} parent=1 // pred_fallthru
      _
    // Predicated region
    $region26: #{tpu_custom_call.1} parent=1 // pred_check
      _
    $region27: #{tpu_custom_call.1} parent=1 // pred_check_branch
      %57 = sbr.rel (0) target = $region29
    $region28: #{tpu_custom_call.1} parent=1 // pred_region
      %58 = dma.done [#allocation9], 512
    $region29: #{tpu_custom_call.1} parent=1 // pred_fallthru
      _
    %vm59 = vcmask 257024
    %60 = vst.msk [vmem:[#allocation2] sm:$0xf] %vm59, 0.0
    %61 = vst.msk [vmem:[#allocation3] sm:$0xf] %vm59, 0.0
    %62 = vst.msk [vmem:[#allocation4] sm:$0xf] %vm59, 0.0
    %v63 = vld [vmem:[#allocation8] sm:$0xff]
    %v64 = vld [vmem:[#allocation8 + $0x8] sm:$0xff]
    %v65 = vld [vmem:[#allocation8 + $0x10] sm:$0xff]
    %v66 = vld [vmem:[#allocation8 + $0x18] sm:$0xff]
    %v67 = vld [vmem:[#allocation10] sm:$0xff]
    %v68 = vld [vmem:[#allocation10 + $0x8] sm:$0xff]
    %v69 = vld [vmem:[#allocation10 + $0x10] sm:$0xff]
    %v70 = vld [vmem:[#allocation10 + $0x18] sm:$0xff]
    %v71 = vld [vmem:[%s3] sm:$0x1]
    %v72 = vld [vmem:[#allocation2] sm:$0xf]
    %v73 = vld [vmem:[#allocation4] sm:$0xf]
    %vm74 = vcmask 261120
    %v76 = vsel %vm74, %v73, 0
    %78 = vmatprep.subr.mxu0 0.0
    %79 = vmatpush1.msra.mxu0 0.0
    %80 = vmatprep.subr.mxu0 0.0
    %81 = vmatpush1.msra.mxu0 0.0
    %82 = vmatprep.subr.mxu0 0.0
    %83 = vmatpush1.msra.mxu0 0.0
    %84 = vmatprep.subr.mxu0 0.0
    %85 = vmatpush1.msra.mxu0 0.0
    %86 = vmatprep.subr.mxu0 0.0
    %87 = vmatpush1.msra.mxu0 0.0
    %88 = vmatprep.subr.mxu0 0.0
    %89 = vmatpush1.msra.mxu0 0.0
    %90 = vmatprep.subr.mxu0 0.0
    %91 = vmatpush1.msra.mxu0 0.0
    %92 = vmatprep.subr.mxu0 0.0
    %93 = vmatpush1.msra.mxu0 0.0
    %94 = vmatprep.subr.mxu0 0.0
    %95 = vmatpush1.msra.mxu0 0.0
    %96 = vmatprep.subr.mxu0 0.0
    %97 = vmatpush1.msra.mxu0 0.0
    %98 = vmatprep.subr.mxu0 0.0
    %99 = vmatpush1.msra.mxu0 0.0
    %100 = vmatprep.subr.mxu0 0.0
    %101 = vmatpush1.msra.mxu0 0.0
    %102 = vmatprep.subr.mxu0 0.0
    %103 = vmatpush1.msra.mxu0 %v70
    %104 = vmatprep.subr.mxu0 0.0
    %105 = vmatpush1.msra.mxu0 %v69
    %106 = vmatprep.subr.mxu0 0.0
    %107 = vmatpush1.msra.mxu0 %v68
    %108 = vmatprep.subr.mxu0 0.0
    %109 = vmatpush1.msra.mxu0 %v67
    %110 = vmatprep.subr.mxu0 0.0
    %111 = vmatpush2.msra.mxu0 0.0
    %112 = vmatprep.subr.mxu0 0.0
    %113 = vmatpush2.msra.mxu0 0.0
    %114 = vmatprep.subr.mxu0 0.0
    %115 = vmatpush2.msra.mxu0 0.0
    %116 = vmatprep.subr.mxu0 0.0
    %117 = vmatpush2.msra.mxu0 0.0
    %118 = vmatprep.subr.mxu0 0.0
    %119 = vmatpush2.msra.mxu0 0.0
    %120 = vmatprep.subr.mxu0 0.0
    %121 = vmatpush2.msra.mxu0 0.0
    %122 = vmatprep.subr.mxu0 0.0
    %123 = vmatpush2.msra.mxu0 0.0
    %124 = vmatprep.subr.mxu0 0.0
    %125 = vmatpush2.msra.mxu0 0.0
    %126 = vmatprep.subr.mxu0 0.0
    %127 = vmatpush2.msra.mxu0 0.0
    %128 = vmatprep.subr.mxu0 0.0
    %129 = vmatpush2.msra.mxu0 0.0
    %130 = vmatprep.subr.mxu0 0.0
    %131 = vmatpush2.msra.mxu0 0.0
    %132 = vmatprep.subr.mxu0 0.0
    %133 = vmatpush2.msra.mxu0 0.0
    %134 = vmatprep.subr.mxu0 0.0
    %135 = vmatpush2.msra.mxu0 0.0
    %136 = vmatprep.subr.mxu0 0.0
    %137 = vmatpush2.msra.mxu0 0.0
    %138 = vmatprep.subr.mxu0 0.0
    %139 = vmatpush2.msra.mxu0 0.0
    %140 = vmatprep.subr.mxu0 0.0
    %141 = vmatpush2.msra.mxu0 0.0
    %142 = vmatprep.mubr.f32.mxu0 0.0
    %143 = vmatmul.mubr.f32.gmra.mxu0 %v76
    %v144 = vpop.f32.mrf.mxu0
    %v145 = vadd.f32 0.0, %v144
    %v146 = vpop.f32.mrf.mxu0
    %147 = vdwg.mxu0
    %v149 = vsel %vm74, %v72, 0
    %151 = vmatprep.subr.mxu0 0.0
    %152 = vmatpush1.msra.mxu0 0.0
    %153 = vmatprep.subr.mxu0 0.0
    %154 = vmatpush1.msra.mxu0 0.0
    %155 = vmatprep.subr.mxu0 0.0
    %156 = vmatpush1.msra.mxu0 0.0
    %157 = vmatprep.subr.mxu0 0.0
    %158 = vmatpush1.msra.mxu0 0.0
    %159 = vmatprep.subr.mxu0 0.0
    %160 = vmatpush1.msra.mxu0 0.0
    %161 = vmatprep.subr.mxu0 0.0
    %162 = vmatpush1.msra.mxu0 0.0
    %163 = vmatprep.subr.mxu0 0.0
    %164 = vmatpush1.msra.mxu0 0.0
    %165 = vmatprep.subr.mxu0 0.0
    %166 = vmatpush1.msra.mxu0 0.0
    %167 = vmatprep.subr.mxu0 0.0
    %168 = vmatpush1.msra.mxu0 0.0
    %169 = vmatprep.subr.mxu0 0.0
    %170 = vmatpush1.msra.mxu0 0.0
    %171 = vmatprep.subr.mxu0 0.0
    %172 = vmatpush1.msra.mxu0 0.0
    %173 = vmatprep.subr.mxu0 0.0
    %174 = vmatpush1.msra.mxu0 0.0
    %175 = vmatprep.subr.mxu0 0.0
    %176 = vmatpush1.msra.mxu0 %v66
    %177 = vmatprep.subr.mxu0 0.0
    %178 = vmatpush1.msra.mxu0 %v65
    %179 = vmatprep.subr.mxu0 0.0
    %180 = vmatpush1.msra.mxu0 %v64
    %181 = vmatprep.subr.mxu0 0.0
    %182 = vmatpush1.msra.mxu0 %v63
    %183 = vmatprep.subr.mxu0 0.0
    %184 = vmatpush2.msra.mxu0 0.0
    %185 = vmatprep.subr.mxu0 0.0
    %186 = vmatpush2.msra.mxu0 0.0
    %187 = vmatprep.subr.mxu0 0.0
    %188 = vmatpush2.msra.mxu0 0.0
    %189 = vmatprep.subr.mxu0 0.0
    %190 = vmatpush2.msra.mxu0 0.0
    %191 = vmatprep.subr.mxu0 0.0
    %192 = vmatpush2.msra.mxu0 0.0
    %193 = vmatprep.subr.mxu0 0.0
    %194 = vmatpush2.msra.mxu0 0.0
    %195 = vmatprep.subr.mxu0 0.0
    %196 = vmatpush2.msra.mxu0 0.0
    %197 = vmatprep.subr.mxu0 0.0
    %198 = vmatpush2.msra.mxu0 0.0
    %199 = vmatprep.subr.mxu0 0.0
    %200 = vmatpush2.msra.mxu0 0.0
    %201 = vmatprep.subr.mxu0 0.0
    %202 = vmatpush2.msra.mxu0 0.0
    %203 = vmatprep.subr.mxu0 0.0
    %204 = vmatpush2.msra.mxu0 0.0
    %205 = vmatprep.subr.mxu0 0.0
    %206 = vmatpush2.msra.mxu0 0.0
    %207 = vmatprep.subr.mxu0 0.0
    %208 = vmatpush2.msra.mxu0 0.0
    %209 = vmatprep.subr.mxu0 0.0
    %210 = vmatpush2.msra.mxu0 0.0
    %211 = vmatprep.subr.mxu0 0.0
    %212 = vmatpush2.msra.mxu0 0.0
    %213 = vmatprep.subr.mxu0 0.0
    %214 = vmatpush2.msra.mxu0 0.0
    %215 = vmatprep.mubr.f32.mxu0 0.0
    %216 = vmatmul.mubr.f32.gmra.mxu0 %v149
    %v217 = vpop.f32.mrf.mxu0
    %v218 = vadd.f32 %v145, %v217
    %v219 = vpop.f32.mrf.mxu0
    %220 = vdwg.mxu0
    %v222 = vlaneseq
    %v223 = vshrl.u32 %v222, 7
    %v224 = vsub.s32 0, %v223
    %v225 = vrot.slane %v71, %v224
    %v227 = vadd.f32 %v218, %v225
    %v228 = vsub.f32 0.0, %v227
    %v229 = vmul.f32 %v228, 1.442695
    %v230 = vpow.pop %v229
    %v231 = vadd.f32 %v230, 1.0
    %v232 = vrcp.pop %v231
    %v233 = vtanh.pop %v227
    %v234 = vld [vmem:[#allocation3] sm:$0xf]
    %236 = vrot.lane.b32.xlu0 %v234, 32
    %v237 = vpop.permute.xlu0 %236
    %v239 = vmul.f32 %v232, %v237
    %241 = vrot.lane.b32.xlu0 %v233, 64
    %v242 = vpop.permute.xlu0 %241
    %v244 = vmul.f32 %v232, %v242
    %246 = vrot.lane.b32.xlu0 %v244, 32
    %v247 = vpop.permute.xlu0 %246
    %v249 = vadd.f32 %v239, %v247
    %v250 = vtanh.pop %v249
    %252 = vrot.lane.b32.xlu0 %v250, 64
    %v253 = vpop.permute.xlu0 %252
    %v255 = vmul.f32 %v232, %v253
    %257 = vrot.lane.b32.xlu0 %v249, 96
    %v258 = vpop.permute.xlu0 %257
    %260 = vst.msk [vmem:[#allocation3] sm:$0xf] %vm59, %v258
    %262 = vrot.lane.b32.xlu0 %v255, 32
    %v263 = vpop.permute.xlu0 %262
    %265 = vst.msk [vmem:[#allocation2] sm:$0xf] %vm59, %v263
    %v266 = vld [vmem:[#allocation5] sm:$0xff]
    %v267 = vld [vmem:[#allocation5 + $0x8] sm:$0xff]
    %v268 = vld [vmem:[#allocation5 + $0x10] sm:$0xff]
    %v269 = vld [vmem:[#allocation5 + $0x18] sm:$0xff]
    %v270 = vld [vmem:[#allocation5 + $0x20] sm:$0xff]
    %v271 = vld [vmem:[#allocation5 + $0x28] sm:$0xff]
    %v272 = vld [vmem:[#allocation5 + $0x30] sm:$0xff]
    %v273 = vld [vmem:[#allocation5 + $0x38] sm:$0xff]
    %v275 = vunpack.c.l.s4 1966171168
    %v276 = vunpack.c.0.s8 %v275
    %v277 = vlaneseq
    %v278 = vshrl.u32 %v277, 7
    %v279 = vsub.s32 %v276, %v278
    %v280 = vrot.slane %v255, %v279
    %v281 = vcombine.high %v280, %v280
    %v283 = vunpack.c.l.s4 1966171168
    %v284 = vunpack.c.0.s8 %v283
    %v285 = vlaneseq
    %v286 = vshrl.u32 %v285, 7
    %v287 = vsub.s32 %v284, %v286
    %v288 = vrot.slane %v280, %v287
    %v290 = vunpack.c.l.s4 1966171168
    %v291 = vunpack.c.0.s8 %v290
    %v292 = vlaneseq
    %v293 = vshrl.u32 %v292, 7
    %v294 = vsub.s32 %v291, %v293
    %v295 = vrot.slane %v281, %v294
    %v296 = vcombine.high %v288, %v288
    %v297 = vcombine.high %v295, %v295
    %v298 = vlaneseq
    %v299 = vshrl.u32 %v298, 7
    %v300 = vsub.s32 0, %v299
    %v301 = vrot.slane %v288, %v300
    %v302 = vlaneseq
    %v303 = vshrl.u32 %v302, 7
    %v304 = vsub.s32 0, %v303
    %v305 = vrot.slane %v295, %v304
    %v306 = vlaneseq
    %v307 = vshrl.u32 %v306, 7
    %v308 = vsub.s32 0, %v307
    %v309 = vrot.slane %v296, %v308
    %v310 = vlaneseq
    %v311 = vshrl.u32 %v310, 7
    %v312 = vsub.s32 0, %v311
    %v313 = vrot.slane %v297, %v312
    %314 = vrot.lane.b32.xlu0 %v301, 32
    %v315 = vpop.permute.xlu0 %314
    %316 = vrot.lane.b32.xlu0 %v305, 32
    %v317 = vpop.permute.xlu0 %316
    %318 = vrot.lane.b32.xlu0 %v309, 32
    %v319 = vpop.permute.xlu0 %318
    %320 = vrot.lane.b32.xlu0 %v313, 32
    %v321 = vpop.permute.xlu0 %320
    %v326 = vmul.f32 %v266, %v315
    %v327 = vmul.f32 %v267, %v315
    %v328 = vmul.f32 %v268, %v317
    %v329 = vmul.f32 %v269, %v317
    %v330 = vmul.f32 %v270, %v319
    %v331 = vmul.f32 %v271, %v319
    %v332 = vmul.f32 %v272, %v321
    %v333 = vmul.f32 %v273, %v321
    %v334 = vsel %vm74, %v326, 0.0
    %335 = vadd.xlane.f32.xlu0 %v334
    %v336 = vpop.xlane.xlu0 %335
    %v337 = vsel %vm74, %v327, 0.0
    %338 = vadd.xlane.f32.xlu0 %v337
    %v339 = vpop.xlane.xlu0 %338
    %v340 = vsel %vm74, %v328, 0.0
    %341 = vadd.xlane.f32.xlu0 %v340
    %v342 = vpop.xlane.xlu0 %341
    %v343 = vsel %vm74, %v329, 0.0
    %344 = vadd.xlane.f32.xlu0 %v343
    %v345 = vpop.xlane.xlu0 %344
    %v346 = vsel %vm74, %v330, 0.0
    %347 = vadd.xlane.f32.xlu0 %v346
    %v348 = vpop.xlane.xlu0 %347
    %v349 = vsel %vm74, %v331, 0.0
    %350 = vadd.xlane.f32.xlu0 %v349
    %v351 = vpop.xlane.xlu0 %350
    %v352 = vsel %vm74, %v332, 0.0
    %353 = vadd.xlane.f32.xlu0 %v352
    %v354 = vpop.xlane.xlu0 %353
    %v355 = vsel %vm74, %v333, 0.0
    %356 = vadd.xlane.f32.xlu0 %v355
    %v357 = vpop.xlane.xlu0 %356
    %v366 = vlaneseq
    %v367 = vand.u32 %v366, 127
    %v368 = vlaneseq
    %v369 = vshrl.u32 %v368, 7
    %v370 = vsub.s32 %v367, %v369
    %v371 = vrot.slane %v336, %v370
    %v372 = vadd.s32 %v367, 4294967288
    %v373 = vlaneseq
    %v374 = vshrl.u32 %v373, 7
    %v375 = vsub.s32 %v372, %v374
    %v376 = vrot.slane %v339, %v375
    %vm377 = vcmask 130112
    %v378 = vsel %vm377, %v376, %v371
    %v379 = vlaneseq
    %v380 = vshrl.u32 %v379, 7
    %v381 = vsub.s32 %v367, %v380
    %v382 = vrot.slane %v342, %v381
    %v383 = vlaneseq
    %v384 = vshrl.u32 %v383, 7
    %v385 = vsub.s32 %v372, %v384
    %v386 = vrot.slane %v345, %v385
    %v387 = vsel %vm377, %v386, %v382
    %v388 = vlaneseq
    %v389 = vshrl.u32 %v388, 7
    %v390 = vsub.s32 %v367, %v389
    %v391 = vrot.slane %v348, %v390
    %v392 = vlaneseq
    %v393 = vshrl.u32 %v392, 7
    %v394 = vsub.s32 %v372, %v393
    %v395 = vrot.slane %v351, %v394
    %v396 = vsel %vm377, %v395, %v391
    %v397 = vlaneseq
    %v398 = vshrl.u32 %v397, 7
    %v399 = vsub.s32 %v367, %v398
    %v400 = vrot.slane %v354, %v399
    %v401 = vlaneseq
    %v402 = vshrl.u32 %v401, 7
    %v403 = vsub.s32 %v372, %v402
    %v404 = vrot.slane %v357, %v403
    %v405 = vsel %vm377, %v404, %v400
    %vm406 = vcmask 1041409
    %v407 = vsel %vm406, %v387, %v378
    %vm408 = vcmask 1042434
    %v409 = vsel %vm408, %v396, %v407
    %vm410 = vcmask 1043459
    %v411 = vsel %vm410, %v405, %v409
    %vm413 = vcmask 125952
    %v414 = vsel %vm413, %v411, -inf
    %415 = vmax.xlane.f32.xlu0 %v414
    %v416 = vpop.xlane.xlu0 %415
    %v418 = vlaneseq
    %v419 = vshrl.u32 %v418, 7
    %v420 = vsub.s32 0, %v419
    %v421 = vrot.slane %v416, %v420
    %v422 = vlaneseq
    %v423 = vshrl.u32 %v422, 7
    %v424 = vsub.s32 1, %v423
    %v425 = vrot.slane %v416, %v424
    %v426 = vlaneseq
    %v427 = vshrl.u32 %v426, 7
    %v428 = vsub.s32 2, %v427
    %v429 = vrot.slane %v416, %v428
    %v430 = vlaneseq
    %v431 = vshrl.u32 %v430, 7
    %v432 = vsub.s32 3, %v431
    %v433 = vrot.slane %v416, %v432
    %v438 = vsub.f32 %v336, %v421
    %v439 = vsub.f32 %v339, %v421
    %v440 = vsub.f32 %v342, %v425
    %v441 = vsub.f32 %v345, %v425
    %v442 = vsub.f32 %v348, %v429
    %v443 = vsub.f32 %v351, %v429
    %v444 = vsub.f32 %v354, %v433
    %v445 = vsub.f32 %v357, %v433
    %v446 = vmul.f32 %v438, 1.442695
    %v447 = vpow.pop %v446
    %v448 = vmul.f32 %v439, 1.442695
    %v449 = vpow.pop %v448
    %v450 = vmul.f32 %v440, 1.442695
    %v451 = vpow.pop %v450
    %v452 = vmul.f32 %v441, 1.442695
    %v453 = vpow.pop %v452
    %v454 = vmul.f32 %v442, 1.442695
    %v455 = vpow.pop %v454
    %v456 = vmul.f32 %v443, 1.442695
    %v457 = vpow.pop %v456
    %v458 = vmul.f32 %v444, 1.442695
    %v459 = vpow.pop %v458
    %v460 = vmul.f32 %v445, 1.442695
    %v461 = vpow.pop %v460
    %470 = vset.pattern.permute.xlu0 0
    %471 = vperm.xlu0 %470, %v447
    %v472 = vpop.permute.xlu0 %471
    %473 = vset.pattern.permute.xlu0 0
    %474 = vperm.xlu0 %473, %v449
    %v475 = vpop.permute.xlu0 %474
    %476 = vset.pattern.permute.xlu0 0
    %477 = vperm.xlu0 %476, %v451
    %v478 = vpop.permute.xlu0 %477
    %479 = vset.pattern.permute.xlu0 0
    %480 = vperm.xlu0 %479, %v453
    %v481 = vpop.permute.xlu0 %480
    %482 = vset.pattern.permute.xlu0 0
    %483 = vperm.xlu0 %482, %v455
    %v484 = vpop.permute.xlu0 %483
    %485 = vset.pattern.permute.xlu0 0
    %486 = vperm.xlu0 %485, %v457
    %v487 = vpop.permute.xlu0 %486
    %488 = vset.pattern.permute.xlu0 0
    %489 = vperm.xlu0 %488, %v459
    %v490 = vpop.permute.xlu0 %489
    %491 = vset.pattern.permute.xlu0 0
    %492 = vperm.xlu0 %491, %v461
    %v493 = vpop.permute.xlu0 %492
    %v494 = vlaneseq
    %v495 = vshrl.u32 %v494, 7
    %v496 = vsub.s32 %v367, %v495
    %v497 = vrot.slane %v472, %v496
    %v498 = vlaneseq
    %v499 = vshrl.u32 %v498, 7
    %v500 = vsub.s32 %v372, %v499
    %v501 = vrot.slane %v475, %v500
    %v502 = vsel %vm377, %v501, %v497
    %v503 = vlaneseq
    %v504 = vshrl.u32 %v503, 7
    %v505 = vsub.s32 %v367, %v504
    %v506 = vrot.slane %v478, %v505
    %v507 = vlaneseq
    %v508 = vshrl.u32 %v507, 7
    %v509 = vsub.s32 %v372, %v508
    %v510 = vrot.slane %v481, %v509
    %v511 = vsel %vm377, %v510, %v506
    %v512 = vlaneseq
    %v513 = vshrl.u32 %v512, 7
    %v514 = vsub.s32 %v367, %v513
    %v515 = vrot.slane %v484, %v514
    %v516 = vlaneseq
    %v517 = vshrl.u32 %v516, 7
    %v518 = vsub.s32 %v372, %v517
    %v519 = vrot.slane %v487, %v518
    %v520 = vsel %vm377, %v519, %v515
    %v521 = vlaneseq
    %v522 = vshrl.u32 %v521, 7
    %v523 = vsub.s32 %v367, %v522
    %v524 = vrot.slane %v490, %v523
    %v525 = vlaneseq
    %v526 = vshrl.u32 %v525, 7
    %v527 = vsub.s32 %v372, %v526
    %v528 = vrot.slane %v493, %v527
    %v529 = vsel %vm377, %v528, %v524
    %v530 = vsel %vm406, %v511, %v502
    %v531 = vsel %vm408, %v520, %v530
    %v532 = vsel %vm410, %v529, %v531
    %v534 = vsel %vm413, %v532, 0.0
    %535 = vadd.xlane.f32.xlu0 %v534
    %v536 = vpop.xlane.xlu0 %535
    %v545 = vmul.f32 %v472, %v266
    %v546 = vmul.f32 %v475, %v267
    %v547 = vmul.f32 %v478, %v268
    %v548 = vmul.f32 %v481, %v269
    %v549 = vmul.f32 %v484, %v270
    %v550 = vmul.f32 %v487, %v271
    %v551 = vmul.f32 %v490, %v272
    %v552 = vmul.f32 %v493, %v273
    %v553 = vsel %vm74, %v545, 0.0
    %v554 = vsel %vm74, %v546, 0.0
    %v555 = vadd.f32 %v553, %v554
    %v556 = vrot.slane %v555, 4
    %v557 = vadd.f32 %v555, %v556
    %v558 = vrot.slane %v557, 2
    %v559 = vadd.f32 %v557, %v558
    %v560 = vrot.slane %v559, 1
    %v561 = vadd.f32 %v559, %v560
    %v562 = vsel %vm74, %v547, 0.0
    %v563 = vsel %vm74, %v548, 0.0
    %v564 = vadd.f32 %v562, %v563
    %v565 = vrot.slane %v564, 4
    %v566 = vadd.f32 %v564, %v565
    %v567 = vrot.slane %v566, 2
    %v568 = vadd.f32 %v566, %v567
    %v569 = vrot.slane %v568, 1
    %v570 = vadd.f32 %v568, %v569
    %v571 = vsel %vm74, %v549, 0.0
    %v572 = vsel %vm74, %v550, 0.0
    %v573 = vadd.f32 %v571, %v572
    %v574 = vrot.slane %v573, 4
    %v575 = vadd.f32 %v573, %v574
    %v576 = vrot.slane %v575, 2
    %v577 = vadd.f32 %v575, %v576
    %v578 = vrot.slane %v577, 1
    %v579 = vadd.f32 %v577, %v578
    %v580 = vsel %vm74, %v551, 0.0
    %v581 = vsel %vm74, %v552, 0.0
    %v582 = vadd.f32 %v580, %v581
    %v583 = vrot.slane %v582, 4
    %v584 = vadd.f32 %v582, %v583
    %v585 = vrot.slane %v584, 2
    %v586 = vadd.f32 %v584, %v585
    %v587 = vrot.slane %v586, 1
    %v588 = vadd.f32 %v586, %v587
    %v589 = vrcp.pop %v536
    %v591 = vrot.slane %v589, 1
    %v592 = vrot.slane %v589, 2
    %v593 = vrot.slane %v589, 3
    %v598 = vmul.f32 %v561, %v589
    %v599 = vmul.f32 %v570, %v591
    %v600 = vmul.f32 %v579, %v592
    %v601 = vmul.f32 %v588, %v593
    %v606 = vrot.slane %v599, 7
    %v607 = vsel %vm406, %v606, %v598
    %v608 = vrot.slane %v600, 6
    %v609 = vsel %vm408, %v608, %v607
    %v610 = vrot.slane %v601, 5
    %v611 = vsel %vm410, %v610, %v609
    %613 = vst.msk [vmem:[#allocation4] sm:$0xf] %vm59, %v611
    %v614 = vld [vmem:[#allocation2] sm:$0xf]
    %v615 = vld [vmem:[#allocation4] sm:$0xf]
    %v617 = vsel %vm74, %v615, 0
    %619 = vmatprep.subr.mxu0 0.0
    %620 = vmatpush1.msra.mxu0 0.0
    %621 = vmatprep.subr.mxu0 0.0
    %622 = vmatpush1.msra.mxu0 0.0
    %623 = vmatprep.subr.mxu0 0.0
    %624 = vmatpush1.msra.mxu0 0.0
    %625 = vmatprep.subr.mxu0 0.0
    %626 = vmatpush1.msra.mxu0 0.0
    %627 = vmatprep.subr.mxu0 0.0
    %628 = vmatpush1.msra.mxu0 0.0
    %629 = vmatprep.subr.mxu0 0.0
    %630 = vmatpush1.msra.mxu0 0.0
    %631 = vmatprep.subr.mxu0 0.0
    %632 = vmatpush1.msra.mxu0 0.0
    %633 = vmatprep.subr.mxu0 0.0
    %634 = vmatpush1.msra.mxu0 0.0
    %635 = vmatprep.subr.mxu0 0.0
    %636 = vmatpush1.msra.mxu0 0.0
    %637 = vmatprep.subr.mxu0 0.0
    %638 = vmatpush1.msra.mxu0 0.0
    %639 = vmatprep.subr.mxu0 0.0
    %640 = vmatpush1.msra.mxu0 0.0
    %641 = vmatprep.subr.mxu0 0.0
    %642 = vmatpush1.msra.mxu0 0.0
    %643 = vmatprep.subr.mxu0 0.0
    %644 = vmatpush1.msra.mxu0 %v70
    %645 = vmatprep.subr.mxu0 0.0
    %646 = vmatpush1.msra.mxu0 %v69
    %647 = vmatprep.subr.mxu0 0.0
    %648 = vmatpush1.msra.mxu0 %v68
    %649 = vmatprep.subr.mxu0 0.0
    %650 = vmatpush1.msra.mxu0 %v67
    %651 = vmatprep.subr.mxu0 0.0
    %652 = vmatpush2.msra.mxu0 0.0
    %653 = vmatprep.subr.mxu0 0.0
    %654 = vmatpush2.msra.mxu0 0.0
    %655 = vmatprep.subr.mxu0 0.0
    %656 = vmatpush2.msra.mxu0 0.0
    %657 = vmatprep.subr.mxu0 0.0
    %658 = vmatpush2.msra.mxu0 0.0
    %659 = vmatprep.subr.mxu0 0.0
    %660 = vmatpush2.msra.mxu0 0.0
    %661 = vmatprep.subr.mxu0 0.0
    %662 = vmatpush2.msra.mxu0 0.0
    %663 = vmatprep.subr.mxu0 0.0
    %664 = vmatpush2.msra.mxu0 0.0
    %665 = vmatprep.subr.mxu0 0.0
    %666 = vmatpush2.msra.mxu0 0.0
    %667 = vmatprep.subr.mxu0 0.0
    %668 = vmatpush2.msra.mxu0 0.0
    %669 = vmatprep.subr.mxu0 0.0
    %670 = vmatpush2.msra.mxu0 0.0
    %671 = vmatprep.subr.mxu0 0.0
    %672 = vmatpush2.msra.mxu0 0.0
    %673 = vmatprep.subr.mxu0 0.0
    %674 = vmatpush2.msra.mxu0 0.0
    %675 = vmatprep.subr.mxu0 0.0
    %676 = vmatpush2.msra.mxu0 0.0
    %677 = vmatprep.subr.mxu0 0.0
    %678 = vmatpush2.msra.mxu0 0.0
    %679 = vmatprep.subr.mxu0 0.0
    %680 = vmatpush2.msra.mxu0 0.0
    %681 = vmatprep.subr.mxu0 0.0
    %682 = vmatpush2.msra.mxu0 0.0
    %683 = vmatprep.mubr.f32.mxu0 0.0
    %684 = vmatmul.mubr.f32.gmra.mxu0 %v617
    %v685 = vpop.f32.mrf.mxu0
    %v686 = vadd.f32 0.0, %v685
    %v687 = vpop.f32.mrf.mxu0
    %688 = vdwg.mxu0
    %v690 = vsel %vm74, %v614, 0
    %692 = vmatprep.subr.mxu0 0.0
    %693 = vmatpush1.msra.mxu0 0.0
    %694 = vmatprep.subr.mxu0 0.0
    %695 = vmatpush1.msra.mxu0 0.0
    %696 = vmatprep.subr.mxu0 0.0
    %697 = vmatpush1.msra.mxu0 0.0
    %698 = vmatprep.subr.mxu0 0.0
    %699 = vmatpush1.msra.mxu0 0.0
    %700 = vmatprep.subr.mxu0 0.0
    %701 = vmatpush1.msra.mxu0 0.0
    %702 = vmatprep.subr.mxu0 0.0
    %703 = vmatpush1.msra.mxu0 0.0
    %704 = vmatprep.subr.mxu0 0.0
    %705 = vmatpush1.msra.mxu0 0.0
    %706 = vmatprep.subr.mxu0 0.0
    %707 = vmatpush1.msra.mxu0 0.0
    %708 = vmatprep.subr.mxu0 0.0
    %709 = vmatpush1.msra.mxu0 0.0
    %710 = vmatprep.subr.mxu0 0.0
    %711 = vmatpush1.msra.mxu0 0.0
    %712 = vmatprep.subr.mxu0 0.0
    %713 = vmatpush1.msra.mxu0 0.0
    %714 = vmatprep.subr.mxu0 0.0
    %715 = vmatpush1.msra.mxu0 0.0
    %716 = vmatprep.subr.mxu0 0.0
    %717 = vmatpush1.msra.mxu0 %v66
    %718 = vmatprep.subr.mxu0 0.0
    %719 = vmatpush1.msra.mxu0 %v65
    %720 = vmatprep.subr.mxu0 0.0
    %721 = vmatpush1.msra.mxu0 %v64
    %722 = vmatprep.subr.mxu0 0.0
    %723 = vmatpush1.msra.mxu0 %v63
    %724 = vmatprep.subr.mxu0 0.0
    %725 = vmatpush2.msra.mxu0 0.0
    %726 = vmatprep.subr.mxu0 0.0
    %727 = vmatpush2.msra.mxu0 0.0
    %728 = vmatprep.subr.mxu0 0.0
    %729 = vmatpush2.msra.mxu0 0.0
    %730 = vmatprep.subr.mxu0 0.0
    %731 = vmatpush2.msra.mxu0 0.0
    %732 = vmatprep.subr.mxu0 0.0
    %733 = vmatpush2.msra.mxu0 0.0
    %734 = vmatprep.subr.mxu0 0.0
    %735 = vmatpush2.msra.mxu0 0.0
    %736 = vmatprep.subr.mxu0 0.0
    %737 = vmatpush2.msra.mxu0 0.0
    %738 = vmatprep.subr.mxu0 0.0
    %739 = vmatpush2.msra.mxu0 0.0
    %740 = vmatprep.subr.mxu0 0.0
    %741 = vmatpush2.msra.mxu0 0.0
    %742 = vmatprep.subr.mxu0 0.0
    %743 = vmatpush2.msra.mxu0 0.0
    %744 = vmatprep.subr.mxu0 0.0
    %745 = vmatpush2.msra.mxu0 0.0
    %746 = vmatprep.subr.mxu0 0.0
    %747 = vmatpush2.msra.mxu0 0.0
    %748 = vmatprep.subr.mxu0 0.0
    %749 = vmatpush2.msra.mxu0 0.0
    %750 = vmatprep.subr.mxu0 0.0
    %751 = vmatpush2.msra.mxu0 0.0
    %752 = vmatprep.subr.mxu0 0.0
    %753 = vmatpush2.msra.mxu0 0.0
    %754 = vmatprep.subr.mxu0 0.0
    %755 = vmatpush2.msra.mxu0 0.0
    %756 = vmatprep.mubr.f32.mxu0 0.0
    %757 = vmatmul.mubr.f32.gmra.mxu0 %v690
    %v758 = vpop.f32.mrf.mxu0
    %v759 = vadd.f32 %v686, %v758
    %v760 = vpop.f32.mrf.mxu0
    %761 = vdwg.mxu0
    %v762 = vadd.f32 %v759, %v225
    %v763 = vsub.f32 0.0, %v762
    %v764 = vmul.f32 %v763, 1.442695
    %v765 = vpow.pop %v764
    %v766 = vadd.f32 %v765, 1.0
    %v767 = vrcp.pop %v766
    %v768 = vtanh.pop %v762
    %v769 = vld [vmem:[#allocation3] sm:$0xf]
    %771 = vrot.lane.b32.xlu0 %v769, 32
    %v772 = vpop.permute.xlu0 %771
    %v774 = vmul.f32 %v767, %v772
    %776 = vrot.lane.b32.xlu0 %v768, 64
    %v777 = vpop.permute.xlu0 %776
    %v779 = vmul.f32 %v767, %v777
    %781 = vrot.lane.b32.xlu0 %v779, 32
    %v782 = vpop.permute.xlu0 %781
    %v784 = vadd.f32 %v774, %v782
    %v785 = vtanh.pop %v784
    %787 = vrot.lane.b32.xlu0 %v785, 64
    %v788 = vpop.permute.xlu0 %787
    %v790 = vmul.f32 %v767, %v788
    %792 = vrot.lane.b32.xlu0 %v784, 96
    %v793 = vpop.permute.xlu0 %792
    %795 = vst.msk [vmem:[#allocation3] sm:$0xf] %vm59, %v793
    %797 = vrot.lane.b32.xlu0 %v790, 32
    %v798 = vpop.permute.xlu0 %797
    %800 = vst.msk [vmem:[#allocation2] sm:$0xf] %vm59, %v798
    %v801 = vld [vmem:[#allocation5] sm:$0xff]
    %v802 = vld [vmem:[#allocation5 + $0x8] sm:$0xff]
    %v803 = vld [vmem:[#allocation5 + $0x10] sm:$0xff]
    %v804 = vld [vmem:[#allocation5 + $0x18] sm:$0xff]
    %v805 = vld [vmem:[#allocation5 + $0x20] sm:$0xff]
    %v806 = vld [vmem:[#allocation5 + $0x28] sm:$0xff]
    %v807 = vld [vmem:[#allocation5 + $0x30] sm:$0xff]
    %v808 = vld [vmem:[#allocation5 + $0x38] sm:$0xff]
    %v810 = vunpack.c.l.s4 1966171168
    %v811 = vunpack.c.0.s8 %v810
    %v812 = vlaneseq
    %v813 = vshrl.u32 %v812, 7
    %v814 = vsub.s32 %v811, %v813
    %v815 = vrot.slane %v790, %v814
    %v816 = vcombine.high %v815, %v815
    %v818 = vunpack.c.l.s4 1966171168
    %v819 = vunpack.c.0.s8 %v818
    %v820 = vlaneseq
    %v821 = vshrl.u32 %v820, 7
    %v822 = vsub.s32 %v819, %v821
    %v823 = vrot.slane %v815, %v822
    %v825 = vunpack.c.l.s4 1966171168
    %v826 = vunpack.c.0.s8 %v825
    %v827 = vlaneseq
    %v828 = vshrl.u32 %v827, 7
    %v829 = vsub.s32 %v826, %v828
    %v830 = vrot.slane %v816, %v829
    %v831 = vcombine.high %v823, %v823
    %v832 = vcombine.high %v830, %v830
    %v833 = vlaneseq
    %v834 = vshrl.u32 %v833, 7
    %v835 = vsub.s32 0, %v834
    %v836 = vrot.slane %v823, %v835
    %v837 = vlaneseq
    %v838 = vshrl.u32 %v837, 7
    %v839 = vsub.s32 0, %v838
    %v840 = vrot.slane %v830, %v839
    %v841 = vlaneseq
    %v842 = vshrl.u32 %v841, 7
    %v843 = vsub.s32 0, %v842
    %v844 = vrot.slane %v831, %v843
    %v845 = vlaneseq
    %v846 = vshrl.u32 %v845, 7
    %v847 = vsub.s32 0, %v846
    %v848 = vrot.slane %v832, %v847
    %849 = vrot.lane.b32.xlu0 %v836, 32
    %v850 = vpop.permute.xlu0 %849
    %851 = vrot.lane.b32.xlu0 %v840, 32
    %v852 = vpop.permute.xlu0 %851
    %853 = vrot.lane.b32.xlu0 %v844, 32
    %v854 = vpop.permute.xlu0 %853
    %855 = vrot.lane.b32.xlu0 %v848, 32
    %v856 = vpop.permute.xlu0 %855
    %v861 = vmul.f32 %v801, %v850
    %v862 = vmul.f32 %v802, %v850
    %v863 = vmul.f32 %v803, %v852
    %v864 = vmul.f32 %v804, %v852
    %v865 = vmul.f32 %v805, %v854
    %v866 = vmul.f32 %v806, %v854
    %v867 = vmul.f32 %v807, %v856
    %v868 = vmul.f32 %v808, %v856
    %v869 = vsel %vm74, %v861, 0.0
    %870 = vadd.xlane.f32.xlu0 %v869
    %v871 = vpop.xlane.xlu0 %870
    %v872 = vsel %vm74, %v862, 0.0
    %873 = vadd.xlane.f32.xlu0 %v872
    %v874 = vpop.xlane.xlu0 %873
    %v875 = vsel %vm74, %v863, 0.0
    %876 = vadd.xlane.f32.xlu0 %v875
    %v877 = vpop.xlane.xlu0 %876
    %v878 = vsel %vm74, %v864, 0.0
    %879 = vadd.xlane.f32.xlu0 %v878
    %v880 = vpop.xlane.xlu0 %879
    %v881 = vsel %vm74, %v865, 0.0
    %882 = vadd.xlane.f32.xlu0 %v881
    %v883 = vpop.xlane.xlu0 %882
    %v884 = vsel %vm74, %v866, 0.0
    %885 = vadd.xlane.f32.xlu0 %v884
    %v886 = vpop.xlane.xlu0 %885
    %v887 = vsel %vm74, %v867, 0.0
    %888 = vadd.xlane.f32.xlu0 %v887
    %v889 = vpop.xlane.xlu0 %888
    %v890 = vsel %vm74, %v868, 0.0
    %891 = vadd.xlane.f32.xlu0 %v890
    %v892 = vpop.xlane.xlu0 %891
    %v901 = vlaneseq
    %v902 = vshrl.u32 %v901, 7
    %v903 = vsub.s32 %v367, %v902
    %v904 = vrot.slane %v871, %v903
    %v905 = vlaneseq
    %v906 = vshrl.u32 %v905, 7
    %v907 = vsub.s32 %v372, %v906
    %v908 = vrot.slane %v874, %v907
    %v909 = vsel %vm377, %v908, %v904
    %v910 = vlaneseq
    %v911 = vshrl.u32 %v910, 7
    %v912 = vsub.s32 %v367, %v911
    %v913 = vrot.slane %v877, %v912
    %v914 = vlaneseq
    %v915 = vshrl.u32 %v914, 7
    %v916 = vsub.s32 %v372, %v915
    %v917 = vrot.slane %v880, %v916
    %v918 = vsel %vm377, %v917, %v913
    %v919 = vlaneseq
    %v920 = vshrl.u32 %v919, 7
    %v921 = vsub.s32 %v367, %v920
    %v922 = vrot.slane %v883, %v921
    %v923 = vlaneseq
    %v924 = vshrl.u32 %v923, 7
    %v925 = vsub.s32 %v372, %v924
    %v926 = vrot.slane %v886, %v925
    %v927 = vsel %vm377, %v926, %v922
    %v928 = vlaneseq
    %v929 = vshrl.u32 %v928, 7
    %v930 = vsub.s32 %v367, %v929
    %v931 = vrot.slane %v889, %v930
    %v932 = vlaneseq
    %v933 = vshrl.u32 %v932, 7
    %v934 = vsub.s32 %v372, %v933
    %v935 = vrot.slane %v892, %v934
    %v936 = vsel %vm377, %v935, %v931
    %v937 = vsel %vm406, %v918, %v909
    %v938 = vsel %vm408, %v927, %v937
    %v939 = vsel %vm410, %v936, %v938
    %v941 = vsel %vm413, %v939, -inf
    %942 = vmax.xlane.f32.xlu0 %v941
    %v943 = vpop.xlane.xlu0 %942
    %v945 = vlaneseq
    %v946 = vshrl.u32 %v945, 7
    %v947 = vsub.s32 0, %v946
    %v948 = vrot.slane %v943, %v947
    %v949 = vlaneseq
    %v950 = vshrl.u32 %v949, 7
    %v951 = vsub.s32 1, %v950
    %v952 = vrot.slane %v943, %v951
    %v953 = vlaneseq
    %v954 = vshrl.u32 %v953, 7
    %v955 = vsub.s32 2, %v954
    %v956 = vrot.slane %v943, %v955
    %v957 = vlaneseq
    %v958 = vshrl.u32 %v957, 7
    %v959 = vsub.s32 3, %v958
    %v960 = vrot.slane %v943, %v959
    %v965 = vsub.f32 %v871, %v948
    %v966 = vsub.f32 %v874, %v948
    %v967 = vsub.f32 %v877, %v952
    %v968 = vsub.f32 %v880, %v952
    %v969 = vsub.f32 %v883, %v956
    %v970 = vsub.f32 %v886, %v956
    %v971 = vsub.f32 %v889, %v960
    %v972 = vsub.f32 %v892, %v960
    %v973 = vmul.f32 %v965, 1.442695
    %v974 = vpow.pop %v973
    %v975 = vmul.f32 %v966, 1.442695
    %v976 = vpow.pop %v975
    %v977 = vmul.f32 %v967, 1.442695
    %v978 = vpow.pop %v977
    %v979 = vmul.f32 %v968, 1.442695
    %v980 = vpow.pop %v979
    %v981 = vmul.f32 %v969, 1.442695
    %v982 = vpow.pop %v981
    %v983 = vmul.f32 %v970, 1.442695
    %v984 = vpow.pop %v983
    %v985 = vmul.f32 %v971, 1.442695
    %v986 = vpow.pop %v985
    %v987 = vmul.f32 %v972, 1.442695
    %v988 = vpow.pop %v987
    %997 = vset.pattern.permute.xlu0 0
    %998 = vperm.xlu0 %997, %v974
    %v999 = vpop.permute.xlu0 %998
    %1000 = vset.pattern.permute.xlu0 0
    %1001 = vperm.xlu0 %1000, %v976
    %v1002 = vpop.permute.xlu0 %1001
    %1003 = vset.pattern.permute.xlu0 0
    %1004 = vperm.xlu0 %1003, %v978
    %v1005 = vpop.permute.xlu0 %1004
    %1006 = vset.pattern.permute.xlu0 0
    %1007 = vperm.xlu0 %1006, %v980
    %v1008 = vpop.permute.xlu0 %1007
    %1009 = vset.pattern.permute.xlu0 0
    %1010 = vperm.xlu0 %1009, %v982
    %v1011 = vpop.permute.xlu0 %1010
    %1012 = vset.pattern.permute.xlu0 0
    %1013 = vperm.xlu0 %1012, %v984
    %v1014 = vpop.permute.xlu0 %1013
    %1015 = vset.pattern.permute.xlu0 0
    %1016 = vperm.xlu0 %1015, %v986
    %v1017 = vpop.permute.xlu0 %1016
    %1018 = vset.pattern.permute.xlu0 0
    %1019 = vperm.xlu0 %1018, %v988
    %v1020 = vpop.permute.xlu0 %1019
    %v1021 = vlaneseq
    %v1022 = vshrl.u32 %v1021, 7
    %v1023 = vsub.s32 %v367, %v1022
    %v1024 = vrot.slane %v999, %v1023
    %v1025 = vlaneseq
    %v1026 = vshrl.u32 %v1025, 7
    %v1027 = vsub.s32 %v372, %v1026
    %v1028 = vrot.slane %v1002, %v1027
    %v1029 = vsel %vm377, %v1028, %v1024
    %v1030 = vlaneseq
    %v1031 = vshrl.u32 %v1030, 7
    %v1032 = vsub.s32 %v367, %v1031
    %v1033 = vrot.slane %v1005, %v1032
    %v1034 = vlaneseq
    %v1035 = vshrl.u32 %v1034, 7
    %v1036 = vsub.s32 %v372, %v1035
    %v1037 = vrot.slane %v1008, %v1036
    %v1038 = vsel %vm377, %v1037, %v1033
    %v1039 = vlaneseq
    %v1040 = vshrl.u32 %v1039, 7
    %v1041 = vsub.s32 %v367, %v1040
    %v1042 = vrot.slane %v1011, %v1041
    %v1043 = vlaneseq
    %v1044 = vshrl.u32 %v1043, 7
    %v1045 = vsub.s32 %v372, %v1044
    %v1046 = vrot.slane %v1014, %v1045
    %v1047 = vsel %vm377, %v1046, %v1042
    %v1048 = vlaneseq
    %v1049 = vshrl.u32 %v1048, 7
    %v1050 = vsub.s32 %v367, %v1049
    %v1051 = vrot.slane %v1017, %v1050
    %v1052 = vlaneseq
    %v1053 = vshrl.u32 %v1052, 7
    %v1054 = vsub.s32 %v372, %v1053
    %v1055 = vrot.slane %v1020, %v1054
    %v1056 = vsel %vm377, %v1055, %v1051
    %v1057 = vsel %vm406, %v1038, %v1029
    %v1058 = vsel %vm408, %v1047, %v1057
    %v1059 = vsel %vm410, %v1056, %v1058
    %v1061 = vsel %vm413, %v1059, 0.0
    %1062 = vadd.xlane.f32.xlu0 %v1061
    %v1063 = vpop.xlane.xlu0 %1062
    %v1072 = vmul.f32 %v999, %v801
    %v1073 = vmul.f32 %v1002, %v802
    %v1074 = vmul.f32 %v1005, %v803
    %v1075 = vmul.f32 %v1008, %v804
    %v1076 = vmul.f32 %v1011, %v805
    %v1077 = vmul.f32 %v1014, %v806
    %v1078 = vmul.f32 %v1017, %v807
    %v1079 = vmul.f32 %v1020, %v808
    %v1080 = vsel %vm74, %v1072, 0.0
    %v1081 = vsel %vm74, %v1073, 0.0
    %v1082 = vadd.f32 %v1080, %v1081
    %v1083 = vrot.slane %v1082, 4
    %v1084 = vadd.f32 %v1082, %v1083
    %v1085 = vrot.slane %v1084, 2
    %v1086 = vadd.f32 %v1084, %v1085
    %v1087 = vrot.slane %v1086, 1
    %v1088 = vadd.f32 %v1086, %v1087
    %v1089 = vsel %vm74, %v1074, 0.0
    %v1090 = vsel %vm74, %v1075, 0.0
    %v1091 = vadd.f32 %v1089, %v1090
    %v1092 = vrot.slane %v1091, 4
    %v1093 = vadd.f32 %v1091, %v1092
    %v1094 = vrot.slane %v1093, 2
    %v1095 = vadd.f32 %v1093, %v1094
    %v1096 = vrot.slane %v1095, 1
    %v1097 = vadd.f32 %v1095, %v1096
    %v1098 = vsel %vm74, %v1076, 0.0
    %v1099 = vsel %vm74, %v1077, 0.0
    %v1100 = vadd.f32 %v1098, %v1099
    %v1101 = vrot.slane %v1100, 4
    %v1102 = vadd.f32 %v1100, %v1101
    %v1103 = vrot.slane %v1102, 2
    %v1104 = vadd.f32 %v1102, %v1103
    %v1105 = vrot.slane %v1104, 1
    %v1106 = vadd.f32 %v1104, %v1105
    %v1107 = vsel %vm74, %v1078, 0.0
    %v1108 = vsel %vm74, %v1079, 0.0
    %v1109 = vadd.f32 %v1107, %v1108
    %v1110 = vrot.slane %v1109, 4
    %v1111 = vadd.f32 %v1109, %v1110
    %v1112 = vrot.slane %v1111, 2
    %v1113 = vadd.f32 %v1111, %v1112
    %v1114 = vrot.slane %v1113, 1
    %v1115 = vadd.f32 %v1113, %v1114
    %v1116 = vrcp.pop %v1063
    %v1118 = vrot.slane %v1116, 1
    %v1119 = vrot.slane %v1116, 2
    %v1120 = vrot.slane %v1116, 3
    %v1125 = vmul.f32 %v1088, %v1116
    %v1126 = vmul.f32 %v1097, %v1118
    %v1127 = vmul.f32 %v1106, %v1119
    %v1128 = vmul.f32 %v1115, %v1120
    %v1133 = vrot.slane %v1126, 7
    %v1134 = vsel %vm406, %v1133, %v1125
    %v1135 = vrot.slane %v1127, 6
    %v1136 = vsel %vm408, %v1135, %v1134
    %v1137 = vrot.slane %v1128, 5
    %v1138 = vsel %vm410, %v1137, %v1136
    %1140 = vst.msk [vmem:[#allocation4] sm:$0xf] %vm59, %v1138
    %v1141 = vld [vmem:[#allocation2] sm:$0xf]
    %v1142 = vld [vmem:[#allocation4] sm:$0xf]
    %v1144 = vsel %vm74, %v1142, 0
    %1146 = vmatprep.subr.mxu0 0.0
    %1147 = vmatpush1.msra.mxu0 0.0
    %1148 = vmatprep.subr.mxu0 0.0
    %1149 = vmatpush1.msra.mxu0 0.0
    %1150 = vmatprep.subr.mxu0 0.0
    %1151 = vmatpush1.msra.mxu0 0.0
    %1152 = vmatprep.subr.mxu0 0.0
    %1153 = vmatpush1.msra.mxu0 0.0
    %1154 = vmatprep.subr.mxu0 0.0
    %1155 = vmatpush1.msra.mxu0 0.0
    %1156 = vmatprep.subr.mxu0 0.0
    %1157 = vmatpush1.msra.mxu0 0.0
    %1158 = vmatprep.subr.mxu0 0.0
    %1159 = vmatpush1.msra.mxu0 0.0
    %1160 = vmatprep.subr.mxu0 0.0
    %1161 = vmatpush1.msra.mxu0 0.0
    %1162 = vmatprep.subr.mxu0 0.0
    %1163 = vmatpush1.msra.mxu0 0.0
    %1164 = vmatprep.subr.mxu0 0.0
    %1165 = vmatpush1.msra.mxu0 0.0
    %1166 = vmatprep.subr.mxu0 0.0
    %1167 = vmatpush1.msra.mxu0 0.0
    %1168 = vmatprep.subr.mxu0 0.0
    %1169 = vmatpush1.msra.mxu0 0.0
    %1170 = vmatprep.subr.mxu0 0.0
    %1171 = vmatpush1.msra.mxu0 %v70
    %1172 = vmatprep.subr.mxu0 0.0
    %1173 = vmatpush1.msra.mxu0 %v69
    %1174 = vmatprep.subr.mxu0 0.0
    %1175 = vmatpush1.msra.mxu0 %v68
    %1176 = vmatprep.subr.mxu0 0.0
    %1177 = vmatpush1.msra.mxu0 %v67
    %1178 = vmatprep.subr.mxu0 0.0
    %1179 = vmatpush2.msra.mxu0 0.0
    %1180 = vmatprep.subr.mxu0 0.0
    %1181 = vmatpush2.msra.mxu0 0.0
    %1182 = vmatprep.subr.mxu0 0.0
    %1183 = vmatpush2.msra.mxu0 0.0
    %1184 = vmatprep.subr.mxu0 0.0
    %1185 = vmatpush2.msra.mxu0 0.0
    %1186 = vmatprep.subr.mxu0 0.0
    %1187 = vmatpush2.msra.mxu0 0.0
    %1188 = vmatprep.subr.mxu0 0.0
    %1189 = vmatpush2.msra.mxu0 0.0
    %1190 = vmatprep.subr.mxu0 0.0
    %1191 = vmatpush2.msra.mxu0 0.0
    %1192 = vmatprep.subr.mxu0 0.0
    %1193 = vmatpush2.msra.mxu0 0.0
    %1194 = vmatprep.subr.mxu0 0.0
    %1195 = vmatpush2.msra.mxu0 0.0
    %1196 = vmatprep.subr.mxu0 0.0
    %1197 = vmatpush2.msra.mxu0 0.0
    %1198 = vmatprep.subr.mxu0 0.0
    %1199 = vmatpush2.msra.mxu0 0.0
    %1200 = vmatprep.subr.mxu0 0.0
    %1201 = vmatpush2.msra.mxu0 0.0
    %1202 = vmatprep.subr.mxu0 0.0
    %1203 = vmatpush2.msra.mxu0 0.0
    %1204 = vmatprep.subr.mxu0 0.0
    %1205 = vmatpush2.msra.mxu0 0.0
    %1206 = vmatprep.subr.mxu0 0.0
    %1207 = vmatpush2.msra.mxu0 0.0
    %1208 = vmatprep.subr.mxu0 0.0
    %1209 = vmatpush2.msra.mxu0 0.0
    %1210 = vmatprep.mubr.f32.mxu0 0.0
    %1211 = vmatmul.mubr.f32.gmra.mxu0 %v1144
    %v1212 = vpop.f32.mrf.mxu0
    %v1213 = vadd.f32 0.0, %v1212
    %v1214 = vpop.f32.mrf.mxu0
    %1215 = vdwg.mxu0
    %v1217 = vsel %vm74, %v1141, 0
    %1219 = vmatprep.subr.mxu0 0.0
    %1220 = vmatpush1.msra.mxu0 0.0
    %1221 = vmatprep.subr.mxu0 0.0
    %1222 = vmatpush1.msra.mxu0 0.0
    %1223 = vmatprep.subr.mxu0 0.0
    %1224 = vmatpush1.msra.mxu0 0.0
    %1225 = vmatprep.subr.mxu0 0.0
    %1226 = vmatpush1.msra.mxu0 0.0
    %1227 = vmatprep.subr.mxu0 0.0
    %1228 = vmatpush1.msra.mxu0 0.0
    %1229 = vmatprep.subr.mxu0 0.0
    %1230 = vmatpush1.msra.mxu0 0.0
    %1231 = vmatprep.subr.mxu0 0.0
    %1232 = vmatpush1.msra.mxu0 0.0
    %1233 = vmatprep.subr.mxu0 0.0
    %1234 = vmatpush1.msra.mxu0 0.0
    %1235 = vmatprep.subr.mxu0 0.0
    %1236 = vmatpush1.msra.mxu0 0.0
    %1237 = vmatprep.subr.mxu0 0.0
    %1238 = vmatpush1.msra.mxu0 0.0
    %1239 = vmatprep.subr.mxu0 0.0
    %1240 = vmatpush1.msra.mxu0 0.0
    %1241 = vmatprep.subr.mxu0 0.0
    %1242 = vmatpush1.msra.mxu0 0.0
    %1243 = vmatprep.subr.mxu0 0.0
    %1244 = vmatpush1.msra.mxu0 %v66
    %1245 = vmatprep.subr.mxu0 0.0
    %1246 = vmatpush1.msra.mxu0 %v65
    %1247 = vmatprep.subr.mxu0 0.0
    %1248 = vmatpush1.msra.mxu0 %v64
    %1249 = vmatprep.subr.mxu0 0.0
    %1250 = vmatpush1.msra.mxu0 %v63
    %1251 = vmatprep.subr.mxu0 0.0
    %1252 = vmatpush2.msra.mxu0 0.0
    %1253 = vmatprep.subr.mxu0 0.0
    %1254 = vmatpush2.msra.mxu0 0.0
    %1255 = vmatprep.subr.mxu0 0.0
    %1256 = vmatpush2.msra.mxu0 0.0
    %1257 = vmatprep.subr.mxu0 0.0
    %1258 = vmatpush2.msra.mxu0 0.0
    %1259 = vmatprep.subr.mxu0 0.0
    %1260 = vmatpush2.msra.mxu0 0.0
    %1261 = vmatprep.subr.mxu0 0.0
    %1262 = vmatpush2.msra.mxu0 0.0
    %1263 = vmatprep.subr.mxu0 0.0
    %1264 = vmatpush2.msra.mxu0 0.0
    %1265 = vmatprep.subr.mxu0 0.0
    %1266 = vmatpush2.msra.mxu0 0.0
    %1267 = vmatprep.subr.mxu0 0.0
    %1268 = vmatpush2.msra.mxu0 0.0
    %1269 = vmatprep.subr.mxu0 0.0
    %1270 = vmatpush2.msra.mxu0 0.0
    %1271 = vmatprep.subr.mxu0 0.0
    %1272 = vmatpush2.msra.mxu0 0.0
    %1273 = vmatprep.subr.mxu0 0.0
    %1274 = vmatpush2.msra.mxu0 0.0
    %1275 = vmatprep.subr.mxu0 0.0
    %1276 = vmatpush2.msra.mxu0 0.0
    %1277 = vmatprep.subr.mxu0 0.0
    %1278 = vmatpush2.msra.mxu0 0.0
    %1279 = vmatprep.subr.mxu0 0.0
    %1280 = vmatpush2.msra.mxu0 0.0
    %1281 = vmatprep.subr.mxu0 0.0
    %1282 = vmatpush2.msra.mxu0 0.0
    %1283 = vmatprep.mubr.f32.mxu0 0.0
    %1284 = vmatmul.mubr.f32.gmra.mxu0 %v1217
    %v1285 = vpop.f32.mrf.mxu0
    %v1286 = vadd.f32 %v1213, %v1285
    %v1287 = vpop.f32.mrf.mxu0
    %1288 = vdwg.mxu0
    %v1289 = vadd.f32 %v1286, %v225
    %v1290 = vsub.f32 0.0, %v1289
    %v1291 = vmul.f32 %v1290, 1.442695
    %v1292 = vpow.pop %v1291
    %v1293 = vadd.f32 %v1292, 1.0
    %v1294 = vrcp.pop %v1293
    %v1295 = vtanh.pop %v1289
    %v1296 = vld [vmem:[#allocation3] sm:$0xf]
    %1298 = vrot.lane.b32.xlu0 %v1296, 32
    %v1299 = vpop.permute.xlu0 %1298
    %v1301 = vmul.f32 %v1294, %v1299
    %1303 = vrot.lane.b32.xlu0 %v1295, 64
    %v1304 = vpop.permute.xlu0 %1303
    %v1306 = vmul.f32 %v1294, %v1304
    %1308 = vrot.lane.b32.xlu0 %v1306, 32
    %v1309 = vpop.permute.xlu0 %1308
    %v1311 = vadd.f32 %v1301, %v1309
    %v1312 = vtanh.pop %v1311
    %1314 = vrot.lane.b32.xlu0 %v1312, 64
    %v1315 = vpop.permute.xlu0 %1314
    %v1317 = vmul.f32 %v1294, %v1315
    %1319 = vrot.lane.b32.xlu0 %v1311, 96
    %v1320 = vpop.permute.xlu0 %1319
    %1322 = vst.msk [vmem:[#allocation3] sm:$0xf] %vm59, %v1320
    %1324 = vrot.lane.b32.xlu0 %v1317, 32
    %v1325 = vpop.permute.xlu0 %1324
    %1327 = vst.msk [vmem:[#allocation2] sm:$0xf] %vm59, %v1325
    %v1328 = vld [vmem:[#allocation5] sm:$0xff]
    %v1329 = vld [vmem:[#allocation5 + $0x8] sm:$0xff]
    %v1330 = vld [vmem:[#allocation5 + $0x10] sm:$0xff]
    %v1331 = vld [vmem:[#allocation5 + $0x18] sm:$0xff]
    %v1332 = vld [vmem:[#allocation5 + $0x20] sm:$0xff]
    %v1333 = vld [vmem:[#allocation5 + $0x28] sm:$0xff]
    %v1334 = vld [vmem:[#allocation5 + $0x30] sm:$0xff]
    %v1335 = vld [vmem:[#allocation5 + $0x38] sm:$0xff]
    %v1337 = vunpack.c.l.s4 1966171168
    %v1338 = vunpack.c.0.s8 %v1337
    %v1339 = vlaneseq
    %v1340 = vshrl.u32 %v1339, 7
    %v1341 = vsub.s32 %v1338, %v1340
    %v1342 = vrot.slane %v1317, %v1341
    %v1343 = vcombine.high %v1342, %v1342
    %v1345 = vunpack.c.l.s4 1966171168
    %v1346 = vunpack.c.0.s8 %v1345
    %v1347 = vlaneseq
    %v1348 = vshrl.u32 %v1347, 7
    %v1349 = vsub.s32 %v1346, %v1348
    %v1350 = vrot.slane %v1342, %v1349
    %v1352 = vunpack.c.l.s4 1966171168
    %v1353 = vunpack.c.0.s8 %v1352
    %v1354 = vlaneseq
    %v1355 = vshrl.u32 %v1354, 7
    %v1356 = vsub.s32 %v1353, %v1355
    %v1357 = vrot.slane %v1343, %v1356
    %v1358 = vcombine.high %v1350, %v1350
    %v1359 = vcombine.high %v1357, %v1357
    %v1360 = vlaneseq
    %v1361 = vshrl.u32 %v1360, 7
    %v1362 = vsub.s32 0, %v1361
    %v1363 = vrot.slane %v1350, %v1362
    %v1364 = vlaneseq
    %v1365 = vshrl.u32 %v1364, 7
    %v1366 = vsub.s32 0, %v1365
    %v1367 = vrot.slane %v1357, %v1366
    %v1368 = vlaneseq
    %v1369 = vshrl.u32 %v1368, 7
    %v1370 = vsub.s32 0, %v1369
    %v1371 = vrot.slane %v1358, %v1370
    %v1372 = vlaneseq
    %v1373 = vshrl.u32 %v1372, 7
    %v1374 = vsub.s32 0, %v1373
    %v1375 = vrot.slane %v1359, %v1374
    %1376 = vrot.lane.b32.xlu0 %v1363, 32
    %v1377 = vpop.permute.xlu0 %1376
    %1378 = vrot.lane.b32.xlu0 %v1367, 32
    %v1379 = vpop.permute.xlu0 %1378
    %1380 = vrot.lane.b32.xlu0 %v1371, 32
    %v1381 = vpop.permute.xlu0 %1380
    %1382 = vrot.lane.b32.xlu0 %v1375, 32
    %v1383 = vpop.permute.xlu0 %1382
    %v1388 = vmul.f32 %v1328, %v1377
    %v1389 = vmul.f32 %v1329, %v1377
    %v1390 = vmul.f32 %v1330, %v1379
    %v1391 = vmul.f32 %v1331, %v1379
    %v1392 = vmul.f32 %v1332, %v1381
    %v1393 = vmul.f32 %v1333, %v1381
    %v1394 = vmul.f32 %v1334, %v1383
    %v1395 = vmul.f32 %v1335, %v1383
    %v1396 = vsel %vm74, %v1388, 0.0
    %1397 = vadd.xlane.f32.xlu0 %v1396
    %v1398 = vpop.xlane.xlu0 %1397
    %v1399 = vsel %vm74, %v1389, 0.0
    %1400 = vadd.xlane.f32.xlu0 %v1399
    %v1401 = vpop.xlane.xlu0 %1400
    %v1402 = vsel %vm74, %v1390, 0.0
    %1403 = vadd.xlane.f32.xlu0 %v1402
    %v1404 = vpop.xlane.xlu0 %1403
    %v1405 = vsel %vm74, %v1391, 0.0
    %1406 = vadd.xlane.f32.xlu0 %v1405
    %v1407 = vpop.xlane.xlu0 %1406
    %v1408 = vsel %vm74, %v1392, 0.0
    %1409 = vadd.xlane.f32.xlu0 %v1408
    %v1410 = vpop.xlane.xlu0 %1409
    %v1411 = vsel %vm74, %v1393, 0.0
    %1412 = vadd.xlane.f32.xlu0 %v1411
    %v1413 = vpop.xlane.xlu0 %1412
    %v1414 = vsel %vm74, %v1394, 0.0
    %1415 = vadd.xlane.f32.xlu0 %v1414
    %v1416 = vpop.xlane.xlu0 %1415
    %v1417 = vsel %vm74, %v1395, 0.0
    %1418 = vadd.xlane.f32.xlu0 %v1417
    %v1419 = vpop.xlane.xlu0 %1418
    %v1428 = vlaneseq
    %v1429 = vshrl.u32 %v1428, 7
    %v1430 = vsub.s32 %v367, %v1429
    %v1431 = vrot.slane %v1398, %v1430
    %v1432 = vlaneseq
    %v1433 = vshrl.u32 %v1432, 7
    %v1434 = vsub.s32 %v372, %v1433
    %v1435 = vrot.slane %v1401, %v1434
    %v1436 = vsel %vm377, %v1435, %v1431
    %v1437 = vlaneseq
    %v1438 = vshrl.u32 %v1437, 7
    %v1439 = vsub.s32 %v367, %v1438
    %v1440 = vrot.slane %v1404, %v1439
    %v1441 = vlaneseq
    %v1442 = vshrl.u32 %v1441, 7
    %v1443 = vsub.s32 %v372, %v1442
    %v1444 = vrot.slane %v1407, %v1443
    %v1445 = vsel %vm377, %v1444, %v1440
    %v1446 = vlaneseq
    %v1447 = vshrl.u32 %v1446, 7
    %v1448 = vsub.s32 %v367, %v1447
    %v1449 = vrot.slane %v1410, %v1448
    %v1450 = vlaneseq
    %v1451 = vshrl.u32 %v1450, 7
    %v1452 = vsub.s32 %v372, %v1451
    %v1453 = vrot.slane %v1413, %v1452
    %v1454 = vsel %vm377, %v1453, %v1449
    %v1455 = vlaneseq
    %v1456 = vshrl.u32 %v1455, 7
    %v1457 = vsub.s32 %v367, %v1456
    %v1458 = vrot.slane %v1416, %v1457
    %v1459 = vlaneseq
    %v1460 = vshrl.u32 %v1459, 7
    %v1461 = vsub.s32 %v372, %v1460
    %v1462 = vrot.slane %v1419, %v1461
    %v1463 = vsel %vm377, %v1462, %v1458
    %v1464 = vsel %vm406, %v1445, %v1436
    %v1465 = vsel %vm408, %v1454, %v1464
    %v1466 = vsel %vm410, %v1463, %v1465
    %v1468 = vsel %vm413, %v1466, -inf
    %1469 = vmax.xlane.f32.xlu0 %v1468
    %v1470 = vpop.xlane.xlu0 %1469
    %v1472 = vlaneseq
    %v1473 = vshrl.u32 %v1472, 7
    %v1474 = vsub.s32 0, %v1473
    %v1475 = vrot.slane %v1470, %v1474
    %v1476 = vlaneseq
    %v1477 = vshrl.u32 %v1476, 7
    %v1478 = vsub.s32 1, %v1477
    %v1479 = vrot.slane %v1470, %v1478
    %v1480 = vlaneseq
    %v1481 = vshrl.u32 %v1480, 7
    %v1482 = vsub.s32 2, %v1481
    %v1483 = vrot.slane %v1470, %v1482
    %v1484 = vlaneseq
    %v1485 = vshrl.u32 %v1484, 7
    %v1486 = vsub.s32 3, %v1485
    %v1487 = vrot.slane %v1470, %v1486
    %v1492 = vsub.f32 %v1398, %v1475
    %v1493 = vsub.f32 %v1401, %v1475
    %v1494 = vsub.f32 %v1404, %v1479
    %v1495 = vsub.f32 %v1407, %v1479
    %v1496 = vsub.f32 %v1410, %v1483
    %v1497 = vsub.f32 %v1413, %v1483
    %v1498 = vsub.f32 %v1416, %v1487
    %v1499 = vsub.f32 %v1419, %v1487
    %v1500 = vmul.f32 %v1492, 1.442695
    %v1501 = vpow.pop %v1500
    %v1502 = vmul.f32 %v1493, 1.442695
    %v1503 = vpow.pop %v1502
    %v1504 = vmul.f32 %v1494, 1.442695
    %v1505 = vpow.pop %v1504
    %v1506 = vmul.f32 %v1495, 1.442695
    %v1507 = vpow.pop %v1506
    %v1508 = vmul.f32 %v1496, 1.442695
    %v1509 = vpow.pop %v1508
    %v1510 = vmul.f32 %v1497, 1.442695
    %v1511 = vpow.pop %v1510
    %v1512 = vmul.f32 %v1498, 1.442695
    %v1513 = vpow.pop %v1512
    %v1514 = vmul.f32 %v1499, 1.442695
    %v1515 = vpow.pop %v1514
    %1524 = vset.pattern.permute.xlu0 0
    %1525 = vperm.xlu0 %1524, %v1501
    %v1526 = vpop.permute.xlu0 %1525
    %1527 = vset.pattern.permute.xlu0 0
    %1528 = vperm.xlu0 %1527, %v1503
    %v1529 = vpop.permute.xlu0 %1528
    %1530 = vset.pattern.permute.xlu0 0
    %1531 = vperm.xlu0 %1530, %v1505
    %v1532 = vpop.permute.xlu0 %1531
    %1533 = vset.pattern.permute.xlu0 0
    %1534 = vperm.xlu0 %1533, %v1507
    %v1535 = vpop.permute.xlu0 %1534
    %1536 = vset.pattern.permute.xlu0 0
    %1537 = vperm.xlu0 %1536, %v1509
    %v1538 = vpop.permute.xlu0 %1537
    %1539 = vset.pattern.permute.xlu0 0
    %1540 = vperm.xlu0 %1539, %v1511
    %v1541 = vpop.permute.xlu0 %1540
    %1542 = vset.pattern.permute.xlu0 0
    %1543 = vperm.xlu0 %1542, %v1513
    %v1544 = vpop.permute.xlu0 %1543
    %1545 = vset.pattern.permute.xlu0 0
    %1546 = vperm.xlu0 %1545, %v1515
    %v1547 = vpop.permute.xlu0 %1546
    %v1548 = vlaneseq
    %v1549 = vshrl.u32 %v1548, 7
    %v1550 = vsub.s32 %v367, %v1549
    %v1551 = vrot.slane %v1526, %v1550
    %v1552 = vlaneseq
    %v1553 = vshrl.u32 %v1552, 7
    %v1554 = vsub.s32 %v372, %v1553
    %v1555 = vrot.slane %v1529, %v1554
    %v1556 = vsel %vm377, %v1555, %v1551
    %v1557 = vlaneseq
    %v1558 = vshrl.u32 %v1557, 7
    %v1559 = vsub.s32 %v367, %v1558
    %v1560 = vrot.slane %v1532, %v1559
    %v1561 = vlaneseq
    %v1562 = vshrl.u32 %v1561, 7
    %v1563 = vsub.s32 %v372, %v1562
    %v1564 = vrot.slane %v1535, %v1563
    %v1565 = vsel %vm377, %v1564, %v1560
    %v1566 = vlaneseq
    %v1567 = vshrl.u32 %v1566, 7
    %v1568 = vsub.s32 %v367, %v1567
    %v1569 = vrot.slane %v1538, %v1568
    %v1570 = vlaneseq
    %v1571 = vshrl.u32 %v1570, 7
    %v1572 = vsub.s32 %v372, %v1571
    %v1573 = vrot.slane %v1541, %v1572
    %v1574 = vsel %vm377, %v1573, %v1569
    %v1575 = vlaneseq
    %v1576 = vshrl.u32 %v1575, 7
    %v1577 = vsub.s32 %v367, %v1576
    %v1578 = vrot.slane %v1544, %v1577
    %v1579 = vlaneseq
    %v1580 = vshrl.u32 %v1579, 7
    %v1581 = vsub.s32 %v372, %v1580
    %v1582 = vrot.slane %v1547, %v1581
    %v1583 = vsel %vm377, %v1582, %v1578
    %v1584 = vsel %vm406, %v1565, %v1556
    %v1585 = vsel %vm408, %v1574, %v1584
    %v1586 = vsel %vm410, %v1583, %v1585
    %v1588 = vsel %vm413, %v1586, 0.0
    %1589 = vadd.xlane.f32.xlu0 %v1588
    %v1590 = vpop.xlane.xlu0 %1589
    %v1599 = vmul.f32 %v1526, %v1328
    %v1600 = vmul.f32 %v1529, %v1329
    %v1601 = vmul.f32 %v1532, %v1330
    %v1602 = vmul.f32 %v1535, %v1331
    %v1603 = vmul.f32 %v1538, %v1332
    %v1604 = vmul.f32 %v1541, %v1333
    %v1605 = vmul.f32 %v1544, %v1334
    %v1606 = vmul.f32 %v1547, %v1335
    %v1607 = vsel %vm74, %v1599, 0.0
    %v1608 = vsel %vm74, %v1600, 0.0
    %v1609 = vadd.f32 %v1607, %v1608
    %v1610 = vrot.slane %v1609, 4
    %v1611 = vadd.f32 %v1609, %v1610
    %v1612 = vrot.slane %v1611, 2
    %v1613 = vadd.f32 %v1611, %v1612
    %v1614 = vrot.slane %v1613, 1
    %v1615 = vadd.f32 %v1613, %v1614
    %v1616 = vsel %vm74, %v1601, 0.0
    %v1617 = vsel %vm74, %v1602, 0.0
    %v1618 = vadd.f32 %v1616, %v1617
    %v1619 = vrot.slane %v1618, 4
    %v1620 = vadd.f32 %v1618, %v1619
    %v1621 = vrot.slane %v1620, 2
    %v1622 = vadd.f32 %v1620, %v1621
    %v1623 = vrot.slane %v1622, 1
    %v1624 = vadd.f32 %v1622, %v1623
    %v1625 = vsel %vm74, %v1603, 0.0
    %v1626 = vsel %vm74, %v1604, 0.0
    %v1627 = vadd.f32 %v1625, %v1626
    %v1628 = vrot.slane %v1627, 4
    %v1629 = vadd.f32 %v1627, %v1628
    %v1630 = vrot.slane %v1629, 2
    %v1631 = vadd.f32 %v1629, %v1630
    %v1632 = vrot.slane %v1631, 1
    %v1633 = vadd.f32 %v1631, %v1632
    %v1634 = vsel %vm74, %v1605, 0.0
    %v1635 = vsel %vm74, %v1606, 0.0
    %v1636 = vadd.f32 %v1634, %v1635
    %v1637 = vrot.slane %v1636, 4
    %v1638 = vadd.f32 %v1636, %v1637
    %v1639 = vrot.slane %v1638, 2
    %v1640 = vadd.f32 %v1638, %v1639
    %v1641 = vrot.slane %v1640, 1
    %v1642 = vadd.f32 %v1640, %v1641
    %v1643 = vrcp.pop %v1590
    %v1645 = vrot.slane %v1643, 1
    %v1646 = vrot.slane %v1643, 2
    %v1647 = vrot.slane %v1643, 3
    %v1652 = vmul.f32 %v1615, %v1643
    %v1653 = vmul.f32 %v1624, %v1645
    %v1654 = vmul.f32 %v1633, %v1646
    %v1655 = vmul.f32 %v1642, %v1647
    %v1660 = vrot.slane %v1653, 7
    %v1661 = vsel %vm406, %v1660, %v1652
    %v1662 = vrot.slane %v1654, 6
    %v1663 = vsel %vm408, %v1662, %v1661
    %v1664 = vrot.slane %v1655, 5
    %v1665 = vsel %vm410, %v1664, %v1663
    %1667 = vst.msk [vmem:[#allocation4] sm:$0xf] %vm59, %v1665
    %v1668 = vld [vmem:[#allocation2] sm:$0xf]
    %v1669 = vld [vmem:[#allocation4] sm:$0xf]
    %v1671 = vsel %vm74, %v1669, 0
    %1673 = vmatprep.subr.mxu0 0.0
    %1674 = vmatpush1.msra.mxu0 0.0
    %1675 = vmatprep.subr.mxu0 0.0
    %1676 = vmatpush1.msra.mxu0 0.0
    %1677 = vmatprep.subr.mxu0 0.0
    %1678 = vmatpush1.msra.mxu0 0.0
    %1679 = vmatprep.subr.mxu0 0.0
    %1680 = vmatpush1.msra.mxu0 0.0
    %1681 = vmatprep.subr.mxu0 0.0
    %1682 = vmatpush1.msra.mxu0 0.0
    %1683 = vmatprep.subr.mxu0 0.0
    %1684 = vmatpush1.msra.mxu0 0.0
    %1685 = vmatprep.subr.mxu0 0.0
    %1686 = vmatpush1.msra.mxu0 0.0
    %1687 = vmatprep.subr.mxu0 0.0
    %1688 = vmatpush1.msra.mxu0 0.0
    %1689 = vmatprep.subr.mxu0 0.0
    %1690 = vmatpush1.msra.mxu0 0.0
    %1691 = vmatprep.subr.mxu0 0.0
    %1692 = vmatpush1.msra.mxu0 0.0
    %1693 = vmatprep.subr.mxu0 0.0
    %1694 = vmatpush1.msra.mxu0 0.0
    %1695 = vmatprep.subr.mxu0 0.0
    %1696 = vmatpush1.msra.mxu0 0.0
    %1697 = vmatprep.subr.mxu0 0.0
    %1698 = vmatpush1.msra.mxu0 %v70
    %1699 = vmatprep.subr.mxu0 0.0
    %1700 = vmatpush1.msra.mxu0 %v69
    %1701 = vmatprep.subr.mxu0 0.0
    %1702 = vmatpush1.msra.mxu0 %v68
    %1703 = vmatprep.subr.mxu0 0.0
    %1704 = vmatpush1.msra.mxu0 %v67
    %1705 = vmatprep.subr.mxu0 0.0
    %1706 = vmatpush2.msra.mxu0 0.0
    %1707 = vmatprep.subr.mxu0 0.0
    %1708 = vmatpush2.msra.mxu0 0.0
    %1709 = vmatprep.subr.mxu0 0.0
    %1710 = vmatpush2.msra.mxu0 0.0
    %1711 = vmatprep.subr.mxu0 0.0
    %1712 = vmatpush2.msra.mxu0 0.0
    %1713 = vmatprep.subr.mxu0 0.0
    %1714 = vmatpush2.msra.mxu0 0.0
    %1715 = vmatprep.subr.mxu0 0.0
    %1716 = vmatpush2.msra.mxu0 0.0
    %1717 = vmatprep.subr.mxu0 0.0
    %1718 = vmatpush2.msra.mxu0 0.0
    %1719 = vmatprep.subr.mxu0 0.0
    %1720 = vmatpush2.msra.mxu0 0.0
    %1721 = vmatprep.subr.mxu0 0.0
    %1722 = vmatpush2.msra.mxu0 0.0
    %1723 = vmatprep.subr.mxu0 0.0
    %1724 = vmatpush2.msra.mxu0 0.0
    %1725 = vmatprep.subr.mxu0 0.0
    %1726 = vmatpush2.msra.mxu0 0.0
    %1727 = vmatprep.subr.mxu0 0.0
    %1728 = vmatpush2.msra.mxu0 0.0
    %1729 = vmatprep.subr.mxu0 0.0
    %1730 = vmatpush2.msra.mxu0 0.0
    %1731 = vmatprep.subr.mxu0 0.0
    %1732 = vmatpush2.msra.mxu0 0.0
    %1733 = vmatprep.subr.mxu0 0.0
    %1734 = vmatpush2.msra.mxu0 0.0
    %1735 = vmatprep.subr.mxu0 0.0
    %1736 = vmatpush2.msra.mxu0 0.0
    %1737 = vmatprep.mubr.f32.mxu0 0.0
    %1738 = vmatmul.mubr.f32.gmra.mxu0 %v1671
    %v1739 = vpop.f32.mrf.mxu0
    %v1740 = vadd.f32 0.0, %v1739
    %v1741 = vpop.f32.mrf.mxu0
    %1742 = vdwg.mxu0
    %v1744 = vsel %vm74, %v1668, 0
    %1746 = vmatprep.subr.mxu0 0.0
    %1747 = vmatpush1.msra.mxu0 0.0
    %1748 = vmatprep.subr.mxu0 0.0
    %1749 = vmatpush1.msra.mxu0 0.0
    %1750 = vmatprep.subr.mxu0 0.0
    %1751 = vmatpush1.msra.mxu0 0.0
    %1752 = vmatprep.subr.mxu0 0.0
    %1753 = vmatpush1.msra.mxu0 0.0
    %1754 = vmatprep.subr.mxu0 0.0
    %1755 = vmatpush1.msra.mxu0 0.0
    %1756 = vmatprep.subr.mxu0 0.0
    %1757 = vmatpush1.msra.mxu0 0.0
    %1758 = vmatprep.subr.mxu0 0.0
    %1759 = vmatpush1.msra.mxu0 0.0
    %1760 = vmatprep.subr.mxu0 0.0
    %1761 = vmatpush1.msra.mxu0 0.0
    %1762 = vmatprep.subr.mxu0 0.0
    %1763 = vmatpush1.msra.mxu0 0.0
    %1764 = vmatprep.subr.mxu0 0.0
    %1765 = vmatpush1.msra.mxu0 0.0
    %1766 = vmatprep.subr.mxu0 0.0
    %1767 = vmatpush1.msra.mxu0 0.0
    %1768 = vmatprep.subr.mxu0 0.0
    %1769 = vmatpush1.msra.mxu0 0.0
    %1770 = vmatprep.subr.mxu0 0.0
    %1771 = vmatpush1.msra.mxu0 %v66
    %1772 = vmatprep.subr.mxu0 0.0
    %1773 = vmatpush1.msra.mxu0 %v65
    %1774 = vmatprep.subr.mxu0 0.0
    %1775 = vmatpush1.msra.mxu0 %v64
    %1776 = vmatprep.subr.mxu0 0.0
    %1777 = vmatpush1.msra.mxu0 %v63
    %1778 = vmatprep.subr.mxu0 0.0
    %1779 = vmatpush2.msra.mxu0 0.0
    %1780 = vmatprep.subr.mxu0 0.0
    %1781 = vmatpush2.msra.mxu0 0.0
    %1782 = vmatprep.subr.mxu0 0.0
    %1783 = vmatpush2.msra.mxu0 0.0
    %1784 = vmatprep.subr.mxu0 0.0
    %1785 = vmatpush2.msra.mxu0 0.0
    %1786 = vmatprep.subr.mxu0 0.0
    %1787 = vmatpush2.msra.mxu0 0.0
    %1788 = vmatprep.subr.mxu0 0.0
    %1789 = vmatpush2.msra.mxu0 0.0
    %1790 = vmatprep.subr.mxu0 0.0
    %1791 = vmatpush2.msra.mxu0 0.0
    %1792 = vmatprep.subr.mxu0 0.0
    %1793 = vmatpush2.msra.mxu0 0.0
    %1794 = vmatprep.subr.mxu0 0.0
    %1795 = vmatpush2.msra.mxu0 0.0
    %1796 = vmatprep.subr.mxu0 0.0
    %1797 = vmatpush2.msra.mxu0 0.0
    %1798 = vmatprep.subr.mxu0 0.0
    %1799 = vmatpush2.msra.mxu0 0.0
    %1800 = vmatprep.subr.mxu0 0.0
    %1801 = vmatpush2.msra.mxu0 0.0
    %1802 = vmatprep.subr.mxu0 0.0
    %1803 = vmatpush2.msra.mxu0 0.0
    %1804 = vmatprep.subr.mxu0 0.0
    %1805 = vmatpush2.msra.mxu0 0.0
    %1806 = vmatprep.subr.mxu0 0.0
    %1807 = vmatpush2.msra.mxu0 0.0
    %1808 = vmatprep.subr.mxu0 0.0
    %1809 = vmatpush2.msra.mxu0 0.0
    %1810 = vmatprep.mubr.f32.mxu0 0.0
    %1811 = vmatmul.mubr.f32.gmra.mxu0 %v1744
    %v1812 = vpop.f32.mrf.mxu0
    %v1813 = vadd.f32 %v1740, %v1812
    %v1814 = vpop.f32.mrf.mxu0
    %1815 = vdwg.mxu0
    %v1816 = vadd.f32 %v1813, %v225
    %v1817 = vsub.f32 0.0, %v1816
    %v1818 = vmul.f32 %v1817, 1.442695
    %v1819 = vpow.pop %v1818
    %v1820 = vadd.f32 %v1819, 1.0
    %v1821 = vrcp.pop %v1820
    %v1822 = vtanh.pop %v1816
    %v1823 = vld [vmem:[#allocation3] sm:$0xf]
    %1825 = vrot.lane.b32.xlu0 %v1823, 32
    %v1826 = vpop.permute.xlu0 %1825
    %v1828 = vmul.f32 %v1821, %v1826
    %1830 = vrot.lane.b32.xlu0 %v1822, 64
    %v1831 = vpop.permute.xlu0 %1830
    %v1833 = vmul.f32 %v1821, %v1831
    %1835 = vrot.lane.b32.xlu0 %v1833, 32
    %v1836 = vpop.permute.xlu0 %1835
    %v1838 = vadd.f32 %v1828, %v1836
    %v1839 = vtanh.pop %v1838
    %1841 = vrot.lane.b32.xlu0 %v1839, 64
    %v1842 = vpop.permute.xlu0 %1841
    %v1844 = vmul.f32 %v1821, %v1842
    %1846 = vrot.lane.b32.xlu0 %v1838, 96
    %v1847 = vpop.permute.xlu0 %1846
    %1849 = vst.msk [vmem:[#allocation3] sm:$0xf] %vm59, %v1847
    %1851 = vrot.lane.b32.xlu0 %v1844, 32
    %v1852 = vpop.permute.xlu0 %1851
    %1854 = vst.msk [vmem:[#allocation2] sm:$0xf] %vm59, %v1852
    %v1855 = vld [vmem:[#allocation5] sm:$0xff]
    %v1856 = vld [vmem:[#allocation5 + $0x8] sm:$0xff]
    %v1857 = vld [vmem:[#allocation5 + $0x10] sm:$0xff]
    %v1858 = vld [vmem:[#allocation5 + $0x18] sm:$0xff]
    %v1859 = vld [vmem:[#allocation5 + $0x20] sm:$0xff]
    %v1860 = vld [vmem:[#allocation5 + $0x28] sm:$0xff]
    %v1861 = vld [vmem:[#allocation5 + $0x30] sm:$0xff]
    %v1862 = vld [vmem:[#allocation5 + $0x38] sm:$0xff]
    %v1864 = vunpack.c.l.s4 1966171168
    %v1865 = vunpack.c.0.s8 %v1864
    %v1866 = vlaneseq
    %v1867 = vshrl.u32 %v1866, 7
    %v1868 = vsub.s32 %v1865, %v1867
    %v1869 = vrot.slane %v1844, %v1868
    %v1870 = vcombine.high %v1869, %v1869
    %v1872 = vunpack.c.l.s4 1966171168
    %v1873 = vunpack.c.0.s8 %v1872
    %v1874 = vlaneseq
    %v1875 = vshrl.u32 %v1874, 7
    %v1876 = vsub.s32 %v1873, %v1875
    %v1877 = vrot.slane %v1869, %v1876
    %v1879 = vunpack.c.l.s4 1966171168
    %v1880 = vunpack.c.0.s8 %v1879
    %v1881 = vlaneseq
    %v1882 = vshrl.u32 %v1881, 7
    %v1883 = vsub.s32 %v1880, %v1882
    %v1884 = vrot.slane %v1870, %v1883
    %v1885 = vcombine.high %v1877, %v1877
    %v1886 = vcombine.high %v1884, %v1884
    %v1887 = vlaneseq
    %v1888 = vshrl.u32 %v1887, 7
    %v1889 = vsub.s32 0, %v1888
    %v1890 = vrot.slane %v1877, %v1889
    %v1891 = vlaneseq
    %v1892 = vshrl.u32 %v1891, 7
    %v1893 = vsub.s32 0, %v1892
    %v1894 = vrot.slane %v1884, %v1893
    %v1895 = vlaneseq
    %v1896 = vshrl.u32 %v1895, 7
    %v1897 = vsub.s32 0, %v1896
    %v1898 = vrot.slane %v1885, %v1897
    %v1899 = vlaneseq
    %v1900 = vshrl.u32 %v1899, 7
    %v1901 = vsub.s32 0, %v1900
    %v1902 = vrot.slane %v1886, %v1901
    %1903 = vrot.lane.b32.xlu0 %v1890, 32
    %v1904 = vpop.permute.xlu0 %1903
    %1905 = vrot.lane.b32.xlu0 %v1894, 32
    %v1906 = vpop.permute.xlu0 %1905
    %1907 = vrot.lane.b32.xlu0 %v1898, 32
    %v1908 = vpop.permute.xlu0 %1907
    %1909 = vrot.lane.b32.xlu0 %v1902, 32
    %v1910 = vpop.permute.xlu0 %1909
    %v1915 = vmul.f32 %v1855, %v1904
    %v1916 = vmul.f32 %v1856, %v1904
    %v1917 = vmul.f32 %v1857, %v1906
    %v1918 = vmul.f32 %v1858, %v1906
    %v1919 = vmul.f32 %v1859, %v1908
    %v1920 = vmul.f32 %v1860, %v1908
    %v1921 = vmul.f32 %v1861, %v1910
    %v1922 = vmul.f32 %v1862, %v1910
    %v1923 = vsel %vm74, %v1915, 0.0
    %1924 = vadd.xlane.f32.xlu0 %v1923
    %v1925 = vpop.xlane.xlu0 %1924
    %v1926 = vsel %vm74, %v1916, 0.0
    %1927 = vadd.xlane.f32.xlu0 %v1926
    %v1928 = vpop.xlane.xlu0 %1927
    %v1929 = vsel %vm74, %v1917, 0.0
    %1930 = vadd.xlane.f32.xlu0 %v1929
    %v1931 = vpop.xlane.xlu0 %1930
    %v1932 = vsel %vm74, %v1918, 0.0
    %1933 = vadd.xlane.f32.xlu0 %v1932
    %v1934 = vpop.xlane.xlu0 %1933
    %v1935 = vsel %vm74, %v1919, 0.0
    %1936 = vadd.xlane.f32.xlu0 %v1935
    %v1937 = vpop.xlane.xlu0 %1936
    %v1938 = vsel %vm74, %v1920, 0.0
    %1939 = vadd.xlane.f32.xlu0 %v1938
    %v1940 = vpop.xlane.xlu0 %1939
    %v1941 = vsel %vm74, %v1921, 0.0
    %1942 = vadd.xlane.f32.xlu0 %v1941
    %v1943 = vpop.xlane.xlu0 %1942
    %v1944 = vsel %vm74, %v1922, 0.0
    %1945 = vadd.xlane.f32.xlu0 %v1944
    %v1946 = vpop.xlane.xlu0 %1945
    %v1955 = vlaneseq
    %v1956 = vshrl.u32 %v1955, 7
    %v1957 = vsub.s32 %v367, %v1956
    %v1958 = vrot.slane %v1925, %v1957
    %v1959 = vlaneseq
    %v1960 = vshrl.u32 %v1959, 7
    %v1961 = vsub.s32 %v372, %v1960
    %v1962 = vrot.slane %v1928, %v1961
    %v1963 = vsel %vm377, %v1962, %v1958
    %v1964 = vlaneseq
    %v1965 = vshrl.u32 %v1964, 7
    %v1966 = vsub.s32 %v367, %v1965
    %v1967 = vrot.slane %v1931, %v1966
    %v1968 = vlaneseq
    %v1969 = vshrl.u32 %v1968, 7
    %v1970 = vsub.s32 %v372, %v1969
    %v1971 = vrot.slane %v1934, %v1970
    %v1972 = vsel %vm377, %v1971, %v1967
    %v1973 = vlaneseq
    %v1974 = vshrl.u32 %v1973, 7
    %v1975 = vsub.s32 %v367, %v1974
    %v1976 = vrot.slane %v1937, %v1975
    %v1977 = vlaneseq
    %v1978 = vshrl.u32 %v1977, 7
    %v1979 = vsub.s32 %v372, %v1978
    %v1980 = vrot.slane %v1940, %v1979
    %v1981 = vsel %vm377, %v1980, %v1976
    %v1982 = vlaneseq
    %v1983 = vshrl.u32 %v1982, 7
    %v1984 = vsub.s32 %v367, %v1983
    %v1985 = vrot.slane %v1943, %v1984
    %v1986 = vlaneseq
    %v1987 = vshrl.u32 %v1986, 7
    %v1988 = vsub.s32 %v372, %v1987
    %v1989 = vrot.slane %v1946, %v1988
    %v1990 = vsel %vm377, %v1989, %v1985
    %v1991 = vsel %vm406, %v1972, %v1963
    %v1992 = vsel %vm408, %v1981, %v1991
    %v1993 = vsel %vm410, %v1990, %v1992
    %v1995 = vsel %vm413, %v1993, -inf
    %1996 = vmax.xlane.f32.xlu0 %v1995
    %v1997 = vpop.xlane.xlu0 %1996
    %v1999 = vlaneseq
    %v2000 = vshrl.u32 %v1999, 7
    %v2001 = vsub.s32 0, %v2000
    %v2002 = vrot.slane %v1997, %v2001
    %v2003 = vlaneseq
    %v2004 = vshrl.u32 %v2003, 7
    %v2005 = vsub.s32 1, %v2004
    %v2006 = vrot.slane %v1997, %v2005
    %v2007 = vlaneseq
    %v2008 = vshrl.u32 %v2007, 7
    %v2009 = vsub.s32 2, %v2008
    %v2010 = vrot.slane %v1997, %v2009
    %v2011 = vlaneseq
    %v2012 = vshrl.u32 %v2011, 7
    %v2013 = vsub.s32 3, %v2012
    %v2014 = vrot.slane %v1997, %v2013
    %v2019 = vsub.f32 %v1925, %v2002
    %v2020 = vsub.f32 %v1928, %v2002
    %v2021 = vsub.f32 %v1931, %v2006
    %v2022 = vsub.f32 %v1934, %v2006
    %v2023 = vsub.f32 %v1937, %v2010
    %v2024 = vsub.f32 %v1940, %v2010
    %v2025 = vsub.f32 %v1943, %v2014
    %v2026 = vsub.f32 %v1946, %v2014
    %v2027 = vmul.f32 %v2019, 1.442695
    %v2028 = vpow.pop %v2027
    %v2029 = vmul.f32 %v2020, 1.442695
    %v2030 = vpow.pop %v2029
    %v2031 = vmul.f32 %v2021, 1.442695
    %v2032 = vpow.pop %v2031
    %v2033 = vmul.f32 %v2022, 1.442695
    %v2034 = vpow.pop %v2033
    %v2035 = vmul.f32 %v2023, 1.442695
    %v2036 = vpow.pop %v2035
    %v2037 = vmul.f32 %v2024, 1.442695
    %v2038 = vpow.pop %v2037
    %v2039 = vmul.f32 %v2025, 1.442695
    %v2040 = vpow.pop %v2039
    %v2041 = vmul.f32 %v2026, 1.442695
    %v2042 = vpow.pop %v2041
    %2051 = vset.pattern.permute.xlu0 0
    %2052 = vperm.xlu0 %2051, %v2028
    %v2053 = vpop.permute.xlu0 %2052
    %2054 = vset.pattern.permute.xlu0 0
    %2055 = vperm.xlu0 %2054, %v2030
    %v2056 = vpop.permute.xlu0 %2055
    %2057 = vset.pattern.permute.xlu0 0
    %2058 = vperm.xlu0 %2057, %v2032
    %v2059 = vpop.permute.xlu0 %2058
    %2060 = vset.pattern.permute.xlu0 0
    %2061 = vperm.xlu0 %2060, %v2034
    %v2062 = vpop.permute.xlu0 %2061
    %2063 = vset.pattern.permute.xlu0 0
    %2064 = vperm.xlu0 %2063, %v2036
    %v2065 = vpop.permute.xlu0 %2064
    %2066 = vset.pattern.permute.xlu0 0
    %2067 = vperm.xlu0 %2066, %v2038
    %v2068 = vpop.permute.xlu0 %2067
    %2069 = vset.pattern.permute.xlu0 0
    %2070 = vperm.xlu0 %2069, %v2040
    %v2071 = vpop.permute.xlu0 %2070
    %2072 = vset.pattern.permute.xlu0 0
    %2073 = vperm.xlu0 %2072, %v2042
    %v2074 = vpop.permute.xlu0 %2073
    %v2075 = vlaneseq
    %v2076 = vshrl.u32 %v2075, 7
    %v2077 = vsub.s32 %v367, %v2076
    %v2078 = vrot.slane %v2053, %v2077
    %v2079 = vlaneseq
    %v2080 = vshrl.u32 %v2079, 7
    %v2081 = vsub.s32 %v372, %v2080
    %v2082 = vrot.slane %v2056, %v2081
    %v2083 = vsel %vm377, %v2082, %v2078
    %v2084 = vlaneseq
    %v2085 = vshrl.u32 %v2084, 7
    %v2086 = vsub.s32 %v367, %v2085
    %v2087 = vrot.slane %v2059, %v2086
    %v2088 = vlaneseq
    %v2089 = vshrl.u32 %v2088, 7
    %v2090 = vsub.s32 %v372, %v2089
    %v2091 = vrot.slane %v2062, %v2090
    %v2092 = vsel %vm377, %v2091, %v2087
    %v2093 = vlaneseq
    %v2094 = vshrl.u32 %v2093, 7
    %v2095 = vsub.s32 %v367, %v2094
    %v2096 = vrot.slane %v2065, %v2095
    %v2097 = vlaneseq
    %v2098 = vshrl.u32 %v2097, 7
    %v2099 = vsub.s32 %v372, %v2098
    %v2100 = vrot.slane %v2068, %v2099
    %v2101 = vsel %vm377, %v2100, %v2096
    %v2102 = vlaneseq
    %v2103 = vshrl.u32 %v2102, 7
    %v2104 = vsub.s32 %v367, %v2103
    %v2105 = vrot.slane %v2071, %v2104
    %v2106 = vlaneseq
    %v2107 = vshrl.u32 %v2106, 7
    %v2108 = vsub.s32 %v372, %v2107
    %v2109 = vrot.slane %v2074, %v2108
    %v2110 = vsel %vm377, %v2109, %v2105
    %v2111 = vsel %vm406, %v2092, %v2083
    %v2112 = vsel %vm408, %v2101, %v2111
    %v2113 = vsel %vm410, %v2110, %v2112
    %v2115 = vsel %vm413, %v2113, 0.0
    %2116 = vadd.xlane.f32.xlu0 %v2115
    %v2117 = vpop.xlane.xlu0 %2116
    %v2126 = vmul.f32 %v2053, %v1855
    %v2127 = vmul.f32 %v2056, %v1856
    %v2128 = vmul.f32 %v2059, %v1857
    %v2129 = vmul.f32 %v2062, %v1858
    %v2130 = vmul.f32 %v2065, %v1859
    %v2131 = vmul.f32 %v2068, %v1860
    %v2132 = vmul.f32 %v2071, %v1861
    %v2133 = vmul.f32 %v2074, %v1862
    %v2134 = vsel %vm74, %v2126, 0.0
    %v2135 = vsel %vm74, %v2127, 0.0
    %v2136 = vadd.f32 %v2134, %v2135
    %v2137 = vrot.slane %v2136, 4
    %v2138 = vadd.f32 %v2136, %v2137
    %v2139 = vrot.slane %v2138, 2
    %v2140 = vadd.f32 %v2138, %v2139
    %v2141 = vrot.slane %v2140, 1
    %v2142 = vadd.f32 %v2140, %v2141
    %v2143 = vsel %vm74, %v2128, 0.0
    %v2144 = vsel %vm74, %v2129, 0.0
    %v2145 = vadd.f32 %v2143, %v2144
    %v2146 = vrot.slane %v2145, 4
    %v2147 = vadd.f32 %v2145, %v2146
    %v2148 = vrot.slane %v2147, 2
    %v2149 = vadd.f32 %v2147, %v2148
    %v2150 = vrot.slane %v2149, 1
    %v2151 = vadd.f32 %v2149, %v2150
    %v2152 = vsel %vm74, %v2130, 0.0
    %v2153 = vsel %vm74, %v2131, 0.0
    %v2154 = vadd.f32 %v2152, %v2153
    %v2155 = vrot.slane %v2154, 4
    %v2156 = vadd.f32 %v2154, %v2155
    %v2157 = vrot.slane %v2156, 2
    %v2158 = vadd.f32 %v2156, %v2157
    %v2159 = vrot.slane %v2158, 1
    %v2160 = vadd.f32 %v2158, %v2159
    %v2161 = vsel %vm74, %v2132, 0.0
    %v2162 = vsel %vm74, %v2133, 0.0
    %v2163 = vadd.f32 %v2161, %v2162
    %v2164 = vrot.slane %v2163, 4
    %v2165 = vadd.f32 %v2163, %v2164
    %v2166 = vrot.slane %v2165, 2
    %v2167 = vadd.f32 %v2165, %v2166
    %v2168 = vrot.slane %v2167, 1
    %v2169 = vadd.f32 %v2167, %v2168
    %v2170 = vrcp.pop %v2117
    %v2172 = vrot.slane %v2170, 1
    %v2173 = vrot.slane %v2170, 2
    %v2174 = vrot.slane %v2170, 3
    %v2179 = vmul.f32 %v2142, %v2170
    %v2180 = vmul.f32 %v2151, %v2172
    %v2181 = vmul.f32 %v2160, %v2173
    %v2182 = vmul.f32 %v2169, %v2174
    %v2187 = vrot.slane %v2180, 7
    %v2188 = vsel %vm406, %v2187, %v2179
    %v2189 = vrot.slane %v2181, 6
    %v2190 = vsel %vm408, %v2189, %v2188
    %v2191 = vrot.slane %v2182, 5
    %v2192 = vsel %vm410, %v2191, %v2190
    %2194 = vst.msk [vmem:[#allocation4] sm:$0xf] %vm59, %v2192
    %v2195 = vld [vmem:[#allocation2] sm:$0xf]
    %v2196 = vld [vmem:[#allocation4] sm:$0xf]
    %v2198 = vsel %vm74, %v2196, 0
    %2200 = vmatprep.subr.mxu0 0.0
    %2201 = vmatpush1.msra.mxu0 0.0
    %2202 = vmatprep.subr.mxu0 0.0
    %2203 = vmatpush1.msra.mxu0 0.0
    %2204 = vmatprep.subr.mxu0 0.0
    %2205 = vmatpush1.msra.mxu0 0.0
    %2206 = vmatprep.subr.mxu0 0.0
    %2207 = vmatpush1.msra.mxu0 0.0
    %2208 = vmatprep.subr.mxu0 0.0
    %2209 = vmatpush1.msra.mxu0 0.0
    %2210 = vmatprep.subr.mxu0 0.0
    %2211 = vmatpush1.msra.mxu0 0.0
    %2212 = vmatprep.subr.mxu0 0.0
    %2213 = vmatpush1.msra.mxu0 0.0
    %2214 = vmatprep.subr.mxu0 0.0
    %2215 = vmatpush1.msra.mxu0 0.0
    %2216 = vmatprep.subr.mxu0 0.0
    %2217 = vmatpush1.msra.mxu0 0.0
    %2218 = vmatprep.subr.mxu0 0.0
    %2219 = vmatpush1.msra.mxu0 0.0
    %2220 = vmatprep.subr.mxu0 0.0
    %2221 = vmatpush1.msra.mxu0 0.0
    %2222 = vmatprep.subr.mxu0 0.0
    %2223 = vmatpush1.msra.mxu0 0.0
    %2224 = vmatprep.subr.mxu0 0.0
    %2225 = vmatpush1.msra.mxu0 %v70
    %2226 = vmatprep.subr.mxu0 0.0
    %2227 = vmatpush1.msra.mxu0 %v69
    %2228 = vmatprep.subr.mxu0 0.0
    %2229 = vmatpush1.msra.mxu0 %v68
    %2230 = vmatprep.subr.mxu0 0.0
    %2231 = vmatpush1.msra.mxu0 %v67
    %2232 = vmatprep.subr.mxu0 0.0
    %2233 = vmatpush2.msra.mxu0 0.0
    %2234 = vmatprep.subr.mxu0 0.0
    %2235 = vmatpush2.msra.mxu0 0.0
    %2236 = vmatprep.subr.mxu0 0.0
    %2237 = vmatpush2.msra.mxu0 0.0
    %2238 = vmatprep.subr.mxu0 0.0
    %2239 = vmatpush2.msra.mxu0 0.0
    %2240 = vmatprep.subr.mxu0 0.0
    %2241 = vmatpush2.msra.mxu0 0.0
    %2242 = vmatprep.subr.mxu0 0.0
    %2243 = vmatpush2.msra.mxu0 0.0
    %2244 = vmatprep.subr.mxu0 0.0
    %2245 = vmatpush2.msra.mxu0 0.0
    %2246 = vmatprep.subr.mxu0 0.0
    %2247 = vmatpush2.msra.mxu0 0.0
    %2248 = vmatprep.subr.mxu0 0.0
    %2249 = vmatpush2.msra.mxu0 0.0
    %2250 = vmatprep.subr.mxu0 0.0
    %2251 = vmatpush2.msra.mxu0 0.0
    %2252 = vmatprep.subr.mxu0 0.0
    %2253 = vmatpush2.msra.mxu0 0.0
    %2254 = vmatprep.subr.mxu0 0.0
    %2255 = vmatpush2.msra.mxu0 0.0
    %2256 = vmatprep.subr.mxu0 0.0
    %2257 = vmatpush2.msra.mxu0 0.0
    %2258 = vmatprep.subr.mxu0 0.0
    %2259 = vmatpush2.msra.mxu0 0.0
    %2260 = vmatprep.subr.mxu0 0.0
    %2261 = vmatpush2.msra.mxu0 0.0
    %2262 = vmatprep.subr.mxu0 0.0
    %2263 = vmatpush2.msra.mxu0 0.0
    %2264 = vmatprep.mubr.f32.mxu0 0.0
    %2265 = vmatmul.mubr.f32.gmra.mxu0 %v2198
    %v2266 = vpop.f32.mrf.mxu0
    %v2267 = vadd.f32 0.0, %v2266
    %v2268 = vpop.f32.mrf.mxu0
    %2269 = vdwg.mxu0
    %v2271 = vsel %vm74, %v2195, 0
    %2273 = vmatprep.subr.mxu0 0.0
    %2274 = vmatpush1.msra.mxu0 0.0
    %2275 = vmatprep.subr.mxu0 0.0
    %2276 = vmatpush1.msra.mxu0 0.0
    %2277 = vmatprep.subr.mxu0 0.0
    %2278 = vmatpush1.msra.mxu0 0.0
    %2279 = vmatprep.subr.mxu0 0.0
    %2280 = vmatpush1.msra.mxu0 0.0
    %2281 = vmatprep.subr.mxu0 0.0
    %2282 = vmatpush1.msra.mxu0 0.0
    %2283 = vmatprep.subr.mxu0 0.0
    %2284 = vmatpush1.msra.mxu0 0.0
    %2285 = vmatprep.subr.mxu0 0.0
    %2286 = vmatpush1.msra.mxu0 0.0
    %2287 = vmatprep.subr.mxu0 0.0
    %2288 = vmatpush1.msra.mxu0 0.0
    %2289 = vmatprep.subr.mxu0 0.0
    %2290 = vmatpush1.msra.mxu0 0.0
    %2291 = vmatprep.subr.mxu0 0.0
    %2292 = vmatpush1.msra.mxu0 0.0
    %2293 = vmatprep.subr.mxu0 0.0
    %2294 = vmatpush1.msra.mxu0 0.0
    %2295 = vmatprep.subr.mxu0 0.0
    %2296 = vmatpush1.msra.mxu0 0.0
    %2297 = vmatprep.subr.mxu0 0.0
    %2298 = vmatpush1.msra.mxu0 %v66
    %2299 = vmatprep.subr.mxu0 0.0
    %2300 = vmatpush1.msra.mxu0 %v65
    %2301 = vmatprep.subr.mxu0 0.0
    %2302 = vmatpush1.msra.mxu0 %v64
    %2303 = vmatprep.subr.mxu0 0.0
    %2304 = vmatpush1.msra.mxu0 %v63
    %2305 = vmatprep.subr.mxu0 0.0
    %2306 = vmatpush2.msra.mxu0 0.0
    %2307 = vmatprep.subr.mxu0 0.0
    %2308 = vmatpush2.msra.mxu0 0.0
    %2309 = vmatprep.subr.mxu0 0.0
    %2310 = vmatpush2.msra.mxu0 0.0
    %2311 = vmatprep.subr.mxu0 0.0
    %2312 = vmatpush2.msra.mxu0 0.0
    %2313 = vmatprep.subr.mxu0 0.0
    %2314 = vmatpush2.msra.mxu0 0.0
    %2315 = vmatprep.subr.mxu0 0.0
    %2316 = vmatpush2.msra.mxu0 0.0
    %2317 = vmatprep.subr.mxu0 0.0
    %2318 = vmatpush2.msra.mxu0 0.0
    %2319 = vmatprep.subr.mxu0 0.0
    %2320 = vmatpush2.msra.mxu0 0.0
    %2321 = vmatprep.subr.mxu0 0.0
    %2322 = vmatpush2.msra.mxu0 0.0
    %2323 = vmatprep.subr.mxu0 0.0
    %2324 = vmatpush2.msra.mxu0 0.0
    %2325 = vmatprep.subr.mxu0 0.0
    %2326 = vmatpush2.msra.mxu0 0.0
    %2327 = vmatprep.subr.mxu0 0.0
    %2328 = vmatpush2.msra.mxu0 0.0
    %2329 = vmatprep.subr.mxu0 0.0
    %2330 = vmatpush2.msra.mxu0 0.0
    %2331 = vmatprep.subr.mxu0 0.0
    %2332 = vmatpush2.msra.mxu0 0.0
    %2333 = vmatprep.subr.mxu0 0.0
    %2334 = vmatpush2.msra.mxu0 0.0
    %2335 = vmatprep.subr.mxu0 0.0
    %2336 = vmatpush2.msra.mxu0 0.0
    %2337 = vmatprep.mubr.f32.mxu0 0.0
    %2338 = vmatmul.mubr.f32.gmra.mxu0 %v2271
    %v2339 = vpop.f32.mrf.mxu0
    %v2340 = vadd.f32 %v2267, %v2339
    %v2341 = vpop.f32.mrf.mxu0
    %2342 = vdwg.mxu0
    %v2343 = vadd.f32 %v2340, %v225
    %v2344 = vsub.f32 0.0, %v2343
    %v2345 = vmul.f32 %v2344, 1.442695
    %v2346 = vpow.pop %v2345
    %v2347 = vadd.f32 %v2346, 1.0
    %v2348 = vrcp.pop %v2347
    %v2349 = vtanh.pop %v2343
    %v2350 = vld [vmem:[#allocation3] sm:$0xf]
    %2352 = vrot.lane.b32.xlu0 %v2350, 32
    %v2353 = vpop.permute.xlu0 %2352
    %v2355 = vmul.f32 %v2348, %v2353
    %2357 = vrot.lane.b32.xlu0 %v2349, 64
    %v2358 = vpop.permute.xlu0 %2357
    %v2360 = vmul.f32 %v2348, %v2358
    %2362 = vrot.lane.b32.xlu0 %v2360, 32
    %v2363 = vpop.permute.xlu0 %2362
    %v2365 = vadd.f32 %v2355, %v2363
    %v2366 = vtanh.pop %v2365
    %2368 = vrot.lane.b32.xlu0 %v2366, 64
    %v2369 = vpop.permute.xlu0 %2368
    %v2371 = vmul.f32 %v2348, %v2369
    %2373 = vrot.lane.b32.xlu0 %v2365, 96
    %v2374 = vpop.permute.xlu0 %2373
    %2376 = vst.msk [vmem:[#allocation3] sm:$0xf] %vm59, %v2374
    %2378 = vrot.lane.b32.xlu0 %v2371, 32
    %v2379 = vpop.permute.xlu0 %2378
    %2381 = vst.msk [vmem:[#allocation2] sm:$0xf] %vm59, %v2379
    %v2382 = vld [vmem:[#allocation5] sm:$0xff]
    %v2383 = vld [vmem:[#allocation5 + $0x8] sm:$0xff]
    %v2384 = vld [vmem:[#allocation5 + $0x10] sm:$0xff]
    %v2385 = vld [vmem:[#allocation5 + $0x18] sm:$0xff]
    %v2386 = vld [vmem:[#allocation5 + $0x20] sm:$0xff]
    %v2387 = vld [vmem:[#allocation5 + $0x28] sm:$0xff]
    %v2388 = vld [vmem:[#allocation5 + $0x30] sm:$0xff]
    %v2389 = vld [vmem:[#allocation5 + $0x38] sm:$0xff]
    %v2391 = vunpack.c.l.s4 1966171168
    %v2392 = vunpack.c.0.s8 %v2391
    %v2393 = vlaneseq
    %v2394 = vshrl.u32 %v2393, 7
    %v2395 = vsub.s32 %v2392, %v2394
    %v2396 = vrot.slane %v2371, %v2395
    %v2397 = vcombine.high %v2396, %v2396
    %v2399 = vunpack.c.l.s4 1966171168
    %v2400 = vunpack.c.0.s8 %v2399
    %v2401 = vlaneseq
    %v2402 = vshrl.u32 %v2401, 7
    %v2403 = vsub.s32 %v2400, %v2402
    %v2404 = vrot.slane %v2396, %v2403
    %v2406 = vunpack.c.l.s4 1966171168
    %v2407 = vunpack.c.0.s8 %v2406
    %v2408 = vlaneseq
    %v2409 = vshrl.u32 %v2408, 7
    %v2410 = vsub.s32 %v2407, %v2409
    %v2411 = vrot.slane %v2397, %v2410
    %v2412 = vcombine.high %v2404, %v2404
    %v2413 = vcombine.high %v2411, %v2411
    %v2414 = vlaneseq
    %v2415 = vshrl.u32 %v2414, 7
    %v2416 = vsub.s32 0, %v2415
    %v2417 = vrot.slane %v2404, %v2416
    %v2418 = vlaneseq
    %v2419 = vshrl.u32 %v2418, 7
    %v2420 = vsub.s32 0, %v2419
    %v2421 = vrot.slane %v2411, %v2420
    %v2422 = vlaneseq
    %v2423 = vshrl.u32 %v2422, 7
    %v2424 = vsub.s32 0, %v2423
    %v2425 = vrot.slane %v2412, %v2424
    %v2426 = vlaneseq
    %v2427 = vshrl.u32 %v2426, 7
    %v2428 = vsub.s32 0, %v2427
    %v2429 = vrot.slane %v2413, %v2428
    %2430 = vrot.lane.b32.xlu0 %v2417, 32
    %v2431 = vpop.permute.xlu0 %2430
    %2432 = vrot.lane.b32.xlu0 %v2421, 32
    %v2433 = vpop.permute.xlu0 %2432
    %2434 = vrot.lane.b32.xlu0 %v2425, 32
    %v2435 = vpop.permute.xlu0 %2434
    %2436 = vrot.lane.b32.xlu0 %v2429, 32
    %v2437 = vpop.permute.xlu0 %2436
    %v2442 = vmul.f32 %v2382, %v2431
    %v2443 = vmul.f32 %v2383, %v2431
    %v2444 = vmul.f32 %v2384, %v2433
    %v2445 = vmul.f32 %v2385, %v2433
    %v2446 = vmul.f32 %v2386, %v2435
    %v2447 = vmul.f32 %v2387, %v2435
    %v2448 = vmul.f32 %v2388, %v2437
    %v2449 = vmul.f32 %v2389, %v2437
    %v2450 = vsel %vm74, %v2442, 0.0
    %2451 = vadd.xlane.f32.xlu0 %v2450
    %v2452 = vpop.xlane.xlu0 %2451
    %v2453 = vsel %vm74, %v2443, 0.0
    %2454 = vadd.xlane.f32.xlu0 %v2453
    %v2455 = vpop.xlane.xlu0 %2454
    %v2456 = vsel %vm74, %v2444, 0.0
    %2457 = vadd.xlane.f32.xlu0 %v2456
    %v2458 = vpop.xlane.xlu0 %2457
    %v2459 = vsel %vm74, %v2445, 0.0
    %2460 = vadd.xlane.f32.xlu0 %v2459
    %v2461 = vpop.xlane.xlu0 %2460
    %v2462 = vsel %vm74, %v2446, 0.0
    %2463 = vadd.xlane.f32.xlu0 %v2462
    %v2464 = vpop.xlane.xlu0 %2463
    %v2465 = vsel %vm74, %v2447, 0.0
    %2466 = vadd.xlane.f32.xlu0 %v2465
    %v2467 = vpop.xlane.xlu0 %2466
    %v2468 = vsel %vm74, %v2448, 0.0
    %2469 = vadd.xlane.f32.xlu0 %v2468
    %v2470 = vpop.xlane.xlu0 %2469
    %v2471 = vsel %vm74, %v2449, 0.0
    %2472 = vadd.xlane.f32.xlu0 %v2471
    %v2473 = vpop.xlane.xlu0 %2472
    %v2482 = vlaneseq
    %v2483 = vshrl.u32 %v2482, 7
    %v2484 = vsub.s32 %v367, %v2483
    %v2485 = vrot.slane %v2452, %v2484
    %v2486 = vlaneseq
    %v2487 = vshrl.u32 %v2486, 7
    %v2488 = vsub.s32 %v372, %v2487
    %v2489 = vrot.slane %v2455, %v2488
    %v2490 = vsel %vm377, %v2489, %v2485
    %v2491 = vlaneseq
    %v2492 = vshrl.u32 %v2491, 7
    %v2493 = vsub.s32 %v367, %v2492
    %v2494 = vrot.slane %v2458, %v2493
    %v2495 = vlaneseq
    %v2496 = vshrl.u32 %v2495, 7
    %v2497 = vsub.s32 %v372, %v2496
    %v2498 = vrot.slane %v2461, %v2497
    %v2499 = vsel %vm377, %v2498, %v2494
    %v2500 = vlaneseq
    %v2501 = vshrl.u32 %v2500, 7
    %v2502 = vsub.s32 %v367, %v2501
    %v2503 = vrot.slane %v2464, %v2502
    %v2504 = vlaneseq
    %v2505 = vshrl.u32 %v2504, 7
    %v2506 = vsub.s32 %v372, %v2505
    %v2507 = vrot.slane %v2467, %v2506
    %v2508 = vsel %vm377, %v2507, %v2503
    %v2509 = vlaneseq
    %v2510 = vshrl.u32 %v2509, 7
    %v2511 = vsub.s32 %v367, %v2510
    %v2512 = vrot.slane %v2470, %v2511
    %v2513 = vlaneseq
    %v2514 = vshrl.u32 %v2513, 7
    %v2515 = vsub.s32 %v372, %v2514
    %v2516 = vrot.slane %v2473, %v2515
    %v2517 = vsel %vm377, %v2516, %v2512
    %v2518 = vsel %vm406, %v2499, %v2490
    %v2519 = vsel %vm408, %v2508, %v2518
    %v2520 = vsel %vm410, %v2517, %v2519
    %v2522 = vsel %vm413, %v2520, -inf
    %2523 = vmax.xlane.f32.xlu0 %v2522
    %v2524 = vpop.xlane.xlu0 %2523
    %v2526 = vlaneseq
    %v2527 = vshrl.u32 %v2526, 7
    %v2528 = vsub.s32 0, %v2527
    %v2529 = vrot.slane %v2524, %v2528
    %v2530 = vlaneseq
    %v2531 = vshrl.u32 %v2530, 7
    %v2532 = vsub.s32 1, %v2531
    %v2533 = vrot.slane %v2524, %v2532
    %v2534 = vlaneseq
    %v2535 = vshrl.u32 %v2534, 7
    %v2536 = vsub.s32 2, %v2535
    %v2537 = vrot.slane %v2524, %v2536
    %v2538 = vlaneseq
    %v2539 = vshrl.u32 %v2538, 7
    %v2540 = vsub.s32 3, %v2539
    %v2541 = vrot.slane %v2524, %v2540
    %v2546 = vsub.f32 %v2452, %v2529
    %v2547 = vsub.f32 %v2455, %v2529
    %v2548 = vsub.f32 %v2458, %v2533
    %v2549 = vsub.f32 %v2461, %v2533
    %v2550 = vsub.f32 %v2464, %v2537
    %v2551 = vsub.f32 %v2467, %v2537
    %v2552 = vsub.f32 %v2470, %v2541
    %v2553 = vsub.f32 %v2473, %v2541
    %v2554 = vmul.f32 %v2546, 1.442695
    %v2555 = vpow.pop %v2554
    %v2556 = vmul.f32 %v2547, 1.442695
    %v2557 = vpow.pop %v2556
    %v2558 = vmul.f32 %v2548, 1.442695
    %v2559 = vpow.pop %v2558
    %v2560 = vmul.f32 %v2549, 1.442695
    %v2561 = vpow.pop %v2560
    %v2562 = vmul.f32 %v2550, 1.442695
    %v2563 = vpow.pop %v2562
    %v2564 = vmul.f32 %v2551, 1.442695
    %v2565 = vpow.pop %v2564
    %v2566 = vmul.f32 %v2552, 1.442695
    %v2567 = vpow.pop %v2566
    %v2568 = vmul.f32 %v2553, 1.442695
    %v2569 = vpow.pop %v2568
    %2578 = vset.pattern.permute.xlu0 0
    %2579 = vperm.xlu0 %2578, %v2555
    %v2580 = vpop.permute.xlu0 %2579
    %2581 = vset.pattern.permute.xlu0 0
    %2582 = vperm.xlu0 %2581, %v2557
    %v2583 = vpop.permute.xlu0 %2582
    %2584 = vset.pattern.permute.xlu0 0
    %2585 = vperm.xlu0 %2584, %v2559
    %v2586 = vpop.permute.xlu0 %2585
    %2587 = vset.pattern.permute.xlu0 0
    %2588 = vperm.xlu0 %2587, %v2561
    %v2589 = vpop.permute.xlu0 %2588
    %2590 = vset.pattern.permute.xlu0 0
    %2591 = vperm.xlu0 %2590, %v2563
    %v2592 = vpop.permute.xlu0 %2591
    %2593 = vset.pattern.permute.xlu0 0
    %2594 = vperm.xlu0 %2593, %v2565
    %v2595 = vpop.permute.xlu0 %2594
    %2596 = vset.pattern.permute.xlu0 0
    %2597 = vperm.xlu0 %2596, %v2567
    %v2598 = vpop.permute.xlu0 %2597
    %2599 = vset.pattern.permute.xlu0 0
    %2600 = vperm.xlu0 %2599, %v2569
    %v2601 = vpop.permute.xlu0 %2600
    %v2602 = vlaneseq
    %v2603 = vshrl.u32 %v2602, 7
    %v2604 = vsub.s32 %v367, %v2603
    %v2605 = vrot.slane %v2580, %v2604
    %v2606 = vlaneseq
    %v2607 = vshrl.u32 %v2606, 7
    %v2608 = vsub.s32 %v372, %v2607
    %v2609 = vrot.slane %v2583, %v2608
    %v2610 = vsel %vm377, %v2609, %v2605
    %v2611 = vlaneseq
    %v2612 = vshrl.u32 %v2611, 7
    %v2613 = vsub.s32 %v367, %v2612
    %v2614 = vrot.slane %v2586, %v2613
    %v2615 = vlaneseq
    %v2616 = vshrl.u32 %v2615, 7
    %v2617 = vsub.s32 %v372, %v2616
    %v2618 = vrot.slane %v2589, %v2617
    %v2619 = vsel %vm377, %v2618, %v2614
    %v2620 = vlaneseq
    %v2621 = vshrl.u32 %v2620, 7
    %v2622 = vsub.s32 %v367, %v2621
    %v2623 = vrot.slane %v2592, %v2622
    %v2624 = vlaneseq
    %v2625 = vshrl.u32 %v2624, 7
    %v2626 = vsub.s32 %v372, %v2625
    %v2627 = vrot.slane %v2595, %v2626
    %v2628 = vsel %vm377, %v2627, %v2623
    %v2629 = vlaneseq
    %v2630 = vshrl.u32 %v2629, 7
    %v2631 = vsub.s32 %v367, %v2630
    %v2632 = vrot.slane %v2598, %v2631
    %v2633 = vlaneseq
    %v2634 = vshrl.u32 %v2633, 7
    %v2635 = vsub.s32 %v372, %v2634
    %v2636 = vrot.slane %v2601, %v2635
    %v2637 = vsel %vm377, %v2636, %v2632
    %v2638 = vsel %vm406, %v2619, %v2610
    %v2639 = vsel %vm408, %v2628, %v2638
    %v2640 = vsel %vm410, %v2637, %v2639
    %v2642 = vsel %vm413, %v2640, 0.0
    %2643 = vadd.xlane.f32.xlu0 %v2642
    %v2644 = vpop.xlane.xlu0 %2643
    %v2653 = vmul.f32 %v2580, %v2382
    %v2654 = vmul.f32 %v2583, %v2383
    %v2655 = vmul.f32 %v2586, %v2384
    %v2656 = vmul.f32 %v2589, %v2385
    %v2657 = vmul.f32 %v2592, %v2386
    %v2658 = vmul.f32 %v2595, %v2387
    %v2659 = vmul.f32 %v2598, %v2388
    %v2660 = vmul.f32 %v2601, %v2389
    %v2661 = vsel %vm74, %v2653, 0.0
    %v2662 = vsel %vm74, %v2654, 0.0
    %v2663 = vadd.f32 %v2661, %v2662
    %v2664 = vrot.slane %v2663, 4
    %v2665 = vadd.f32 %v2663, %v2664
    %v2666 = vrot.slane %v2665, 2
    %v2667 = vadd.f32 %v2665, %v2666
    %v2668 = vrot.slane %v2667, 1
    %v2669 = vadd.f32 %v2667, %v2668
    %v2670 = vsel %vm74, %v2655, 0.0
    %v2671 = vsel %vm74, %v2656, 0.0
    %v2672 = vadd.f32 %v2670, %v2671
    %v2673 = vrot.slane %v2672, 4
    %v2674 = vadd.f32 %v2672, %v2673
    %v2675 = vrot.slane %v2674, 2
    %v2676 = vadd.f32 %v2674, %v2675
    %v2677 = vrot.slane %v2676, 1
    %v2678 = vadd.f32 %v2676, %v2677
    %v2679 = vsel %vm74, %v2657, 0.0
    %v2680 = vsel %vm74, %v2658, 0.0
    %v2681 = vadd.f32 %v2679, %v2680
    %v2682 = vrot.slane %v2681, 4
    %v2683 = vadd.f32 %v2681, %v2682
    %v2684 = vrot.slane %v2683, 2
    %v2685 = vadd.f32 %v2683, %v2684
    %v2686 = vrot.slane %v2685, 1
    %v2687 = vadd.f32 %v2685, %v2686
    %v2688 = vsel %vm74, %v2659, 0.0
    %v2689 = vsel %vm74, %v2660, 0.0
    %v2690 = vadd.f32 %v2688, %v2689
    %v2691 = vrot.slane %v2690, 4
    %v2692 = vadd.f32 %v2690, %v2691
    %v2693 = vrot.slane %v2692, 2
    %v2694 = vadd.f32 %v2692, %v2693
    %v2695 = vrot.slane %v2694, 1
    %v2696 = vadd.f32 %v2694, %v2695
    %v2697 = vrcp.pop %v2644
    %v2699 = vrot.slane %v2697, 1
    %v2700 = vrot.slane %v2697, 2
    %v2701 = vrot.slane %v2697, 3
    %v2706 = vmul.f32 %v2669, %v2697
    %v2707 = vmul.f32 %v2678, %v2699
    %v2708 = vmul.f32 %v2687, %v2700
    %v2709 = vmul.f32 %v2696, %v2701
    %v2714 = vrot.slane %v2707, 7
    %v2715 = vsel %vm406, %v2714, %v2706
    %v2716 = vrot.slane %v2708, 6
    %v2717 = vsel %vm408, %v2716, %v2715
    %v2718 = vrot.slane %v2709, 5
    %v2719 = vsel %vm410, %v2718, %v2717
    %2721 = vst.msk [vmem:[#allocation4] sm:$0xf] %vm59, %v2719
    %v2722 = vld [vmem:[#allocation2] sm:$0xf]
    %v2723 = vld [vmem:[#allocation4] sm:$0xf]
    %v2725 = vsel %vm74, %v2723, 0
    %2727 = vmatprep.subr.mxu0 0.0
    %2728 = vmatpush1.msra.mxu0 0.0
    %2729 = vmatprep.subr.mxu0 0.0
    %2730 = vmatpush1.msra.mxu0 0.0
    %2731 = vmatprep.subr.mxu0 0.0
    %2732 = vmatpush1.msra.mxu0 0.0
    %2733 = vmatprep.subr.mxu0 0.0
    %2734 = vmatpush1.msra.mxu0 0.0
    %2735 = vmatprep.subr.mxu0 0.0
    %2736 = vmatpush1.msra.mxu0 0.0
    %2737 = vmatprep.subr.mxu0 0.0
    %2738 = vmatpush1.msra.mxu0 0.0
    %2739 = vmatprep.subr.mxu0 0.0
    %2740 = vmatpush1.msra.mxu0 0.0
    %2741 = vmatprep.subr.mxu0 0.0
    %2742 = vmatpush1.msra.mxu0 0.0
    %2743 = vmatprep.subr.mxu0 0.0
    %2744 = vmatpush1.msra.mxu0 0.0
    %2745 = vmatprep.subr.mxu0 0.0
    %2746 = vmatpush1.msra.mxu0 0.0
    %2747 = vmatprep.subr.mxu0 0.0
    %2748 = vmatpush1.msra.mxu0 0.0
    %2749 = vmatprep.subr.mxu0 0.0
    %2750 = vmatpush1.msra.mxu0 0.0
    %2751 = vmatprep.subr.mxu0 0.0
    %2752 = vmatpush1.msra.mxu0 %v70
    %2753 = vmatprep.subr.mxu0 0.0
    %2754 = vmatpush1.msra.mxu0 %v69
    %2755 = vmatprep.subr.mxu0 0.0
    %2756 = vmatpush1.msra.mxu0 %v68
    %2757 = vmatprep.subr.mxu0 0.0
    %2758 = vmatpush1.msra.mxu0 %v67
    %2759 = vmatprep.subr.mxu0 0.0
    %2760 = vmatpush2.msra.mxu0 0.0
    %2761 = vmatprep.subr.mxu0 0.0
    %2762 = vmatpush2.msra.mxu0 0.0
    %2763 = vmatprep.subr.mxu0 0.0
    %2764 = vmatpush2.msra.mxu0 0.0
    %2765 = vmatprep.subr.mxu0 0.0
    %2766 = vmatpush2.msra.mxu0 0.0
    %2767 = vmatprep.subr.mxu0 0.0
    %2768 = vmatpush2.msra.mxu0 0.0
    %2769 = vmatprep.subr.mxu0 0.0
    %2770 = vmatpush2.msra.mxu0 0.0
    %2771 = vmatprep.subr.mxu0 0.0
    %2772 = vmatpush2.msra.mxu0 0.0
    %2773 = vmatprep.subr.mxu0 0.0
    %2774 = vmatpush2.msra.mxu0 0.0
    %2775 = vmatprep.subr.mxu0 0.0
    %2776 = vmatpush2.msra.mxu0 0.0
    %2777 = vmatprep.subr.mxu0 0.0
    %2778 = vmatpush2.msra.mxu0 0.0
    %2779 = vmatprep.subr.mxu0 0.0
    %2780 = vmatpush2.msra.mxu0 0.0
    %2781 = vmatprep.subr.mxu0 0.0
    %2782 = vmatpush2.msra.mxu0 0.0
    %2783 = vmatprep.subr.mxu0 0.0
    %2784 = vmatpush2.msra.mxu0 0.0
    %2785 = vmatprep.subr.mxu0 0.0
    %2786 = vmatpush2.msra.mxu0 0.0
    %2787 = vmatprep.subr.mxu0 0.0
    %2788 = vmatpush2.msra.mxu0 0.0
    %2789 = vmatprep.subr.mxu0 0.0
    %2790 = vmatpush2.msra.mxu0 0.0
    %2791 = vmatprep.mubr.f32.mxu0 0.0
    %2792 = vmatmul.mubr.f32.gmra.mxu0 %v2725
    %v2793 = vpop.f32.mrf.mxu0
    %v2794 = vadd.f32 0.0, %v2793
    %v2795 = vpop.f32.mrf.mxu0
    %2796 = vdwg.mxu0
    %v2798 = vsel %vm74, %v2722, 0
    %2800 = vmatprep.subr.mxu0 0.0
    %2801 = vmatpush1.msra.mxu0 0.0
    %2802 = vmatprep.subr.mxu0 0.0
    %2803 = vmatpush1.msra.mxu0 0.0
    %2804 = vmatprep.subr.mxu0 0.0
    %2805 = vmatpush1.msra.mxu0 0.0
    %2806 = vmatprep.subr.mxu0 0.0
    %2807 = vmatpush1.msra.mxu0 0.0
    %2808 = vmatprep.subr.mxu0 0.0
    %2809 = vmatpush1.msra.mxu0 0.0
    %2810 = vmatprep.subr.mxu0 0.0
    %2811 = vmatpush1.msra.mxu0 0.0
    %2812 = vmatprep.subr.mxu0 0.0
    %2813 = vmatpush1.msra.mxu0 0.0
    %2814 = vmatprep.subr.mxu0 0.0
    %2815 = vmatpush1.msra.mxu0 0.0
    %2816 = vmatprep.subr.mxu0 0.0
    %2817 = vmatpush1.msra.mxu0 0.0
    %2818 = vmatprep.subr.mxu0 0.0
    %2819 = vmatpush1.msra.mxu0 0.0
    %2820 = vmatprep.subr.mxu0 0.0
    %2821 = vmatpush1.msra.mxu0 0.0
    %2822 = vmatprep.subr.mxu0 0.0
    %2823 = vmatpush1.msra.mxu0 0.0
    %2824 = vmatprep.subr.mxu0 0.0
    %2825 = vmatpush1.msra.mxu0 %v66
    %2826 = vmatprep.subr.mxu0 0.0
    %2827 = vmatpush1.msra.mxu0 %v65
    %2828 = vmatprep.subr.mxu0 0.0
    %2829 = vmatpush1.msra.mxu0 %v64
    %2830 = vmatprep.subr.mxu0 0.0
    %2831 = vmatpush1.msra.mxu0 %v63
    %2832 = vmatprep.subr.mxu0 0.0
    %2833 = vmatpush2.msra.mxu0 0.0
    %2834 = vmatprep.subr.mxu0 0.0
    %2835 = vmatpush2.msra.mxu0 0.0
    %2836 = vmatprep.subr.mxu0 0.0
    %2837 = vmatpush2.msra.mxu0 0.0
    %2838 = vmatprep.subr.mxu0 0.0
    %2839 = vmatpush2.msra.mxu0 0.0
    %2840 = vmatprep.subr.mxu0 0.0
    %2841 = vmatpush2.msra.mxu0 0.0
    %2842 = vmatprep.subr.mxu0 0.0
    %2843 = vmatpush2.msra.mxu0 0.0
    %2844 = vmatprep.subr.mxu0 0.0
    %2845 = vmatpush2.msra.mxu0 0.0
    %2846 = vmatprep.subr.mxu0 0.0
    %2847 = vmatpush2.msra.mxu0 0.0
    %2848 = vmatprep.subr.mxu0 0.0
    %2849 = vmatpush2.msra.mxu0 0.0
    %2850 = vmatprep.subr.mxu0 0.0
    %2851 = vmatpush2.msra.mxu0 0.0
    %2852 = vmatprep.subr.mxu0 0.0
    %2853 = vmatpush2.msra.mxu0 0.0
    %2854 = vmatprep.subr.mxu0 0.0
    %2855 = vmatpush2.msra.mxu0 0.0
    %2856 = vmatprep.subr.mxu0 0.0
    %2857 = vmatpush2.msra.mxu0 0.0
    %2858 = vmatprep.subr.mxu0 0.0
    %2859 = vmatpush2.msra.mxu0 0.0
    %2860 = vmatprep.subr.mxu0 0.0
    %2861 = vmatpush2.msra.mxu0 0.0
    %2862 = vmatprep.subr.mxu0 0.0
    %2863 = vmatpush2.msra.mxu0 0.0
    %2864 = vmatprep.mubr.f32.mxu0 0.0
    %2865 = vmatmul.mubr.f32.gmra.mxu0 %v2798
    %v2866 = vpop.f32.mrf.mxu0
    %v2867 = vadd.f32 %v2794, %v2866
    %v2868 = vpop.f32.mrf.mxu0
    %2869 = vdwg.mxu0
    %v2870 = vadd.f32 %v2867, %v225
    %v2871 = vsub.f32 0.0, %v2870
    %v2872 = vmul.f32 %v2871, 1.442695
    %v2873 = vpow.pop %v2872
    %v2874 = vadd.f32 %v2873, 1.0
    %v2875 = vrcp.pop %v2874
    %v2876 = vtanh.pop %v2870
    %v2877 = vld [vmem:[#allocation3] sm:$0xf]
    %2879 = vrot.lane.b32.xlu0 %v2877, 32
    %v2880 = vpop.permute.xlu0 %2879
    %v2882 = vmul.f32 %v2875, %v2880
    %2884 = vrot.lane.b32.xlu0 %v2876, 64
    %v2885 = vpop.permute.xlu0 %2884
    %v2887 = vmul.f32 %v2875, %v2885
    %2889 = vrot.lane.b32.xlu0 %v2887, 32
    %v2890 = vpop.permute.xlu0 %2889
    %v2892 = vadd.f32 %v2882, %v2890
    %v2893 = vtanh.pop %v2892
    %2895 = vrot.lane.b32.xlu0 %v2893, 64
    %v2896 = vpop.permute.xlu0 %2895
    %v2898 = vmul.f32 %v2875, %v2896
    %2900 = vrot.lane.b32.xlu0 %v2892, 96
    %v2901 = vpop.permute.xlu0 %2900
    %2903 = vst.msk [vmem:[#allocation3] sm:$0xf] %vm59, %v2901
    %2905 = vrot.lane.b32.xlu0 %v2898, 32
    %v2906 = vpop.permute.xlu0 %2905
    %2908 = vst.msk [vmem:[#allocation2] sm:$0xf] %vm59, %v2906
    %v2909 = vld [vmem:[#allocation5] sm:$0xff]
    %v2910 = vld [vmem:[#allocation5 + $0x8] sm:$0xff]
    %v2911 = vld [vmem:[#allocation5 + $0x10] sm:$0xff]
    %v2912 = vld [vmem:[#allocation5 + $0x18] sm:$0xff]
    %v2913 = vld [vmem:[#allocation5 + $0x20] sm:$0xff]
    %v2914 = vld [vmem:[#allocation5 + $0x28] sm:$0xff]
    %v2915 = vld [vmem:[#allocation5 + $0x30] sm:$0xff]
    %v2916 = vld [vmem:[#allocation5 + $0x38] sm:$0xff]
    %v2918 = vunpack.c.l.s4 1966171168
    %v2919 = vunpack.c.0.s8 %v2918
    %v2920 = vlaneseq
    %v2921 = vshrl.u32 %v2920, 7
    %v2922 = vsub.s32 %v2919, %v2921
    %v2923 = vrot.slane %v2898, %v2922
    %v2924 = vcombine.high %v2923, %v2923
    %v2926 = vunpack.c.l.s4 1966171168
    %v2927 = vunpack.c.0.s8 %v2926
    %v2928 = vlaneseq
    %v2929 = vshrl.u32 %v2928, 7
    %v2930 = vsub.s32 %v2927, %v2929
    %v2931 = vrot.slane %v2923, %v2930
    %v2933 = vunpack.c.l.s4 1966171168
    %v2934 = vunpack.c.0.s8 %v2933
    %v2935 = vlaneseq
    %v2936 = vshrl.u32 %v2935, 7
    %v2937 = vsub.s32 %v2934, %v2936
    %v2938 = vrot.slane %v2924, %v2937
    %v2939 = vcombine.high %v2931, %v2931
    %v2940 = vcombine.high %v2938, %v2938
    %v2941 = vlaneseq
    %v2942 = vshrl.u32 %v2941, 7
    %v2943 = vsub.s32 0, %v2942
    %v2944 = vrot.slane %v2931, %v2943
    %v2945 = vlaneseq
    %v2946 = vshrl.u32 %v2945, 7
    %v2947 = vsub.s32 0, %v2946
    %v2948 = vrot.slane %v2938, %v2947
    %v2949 = vlaneseq
    %v2950 = vshrl.u32 %v2949, 7
    %v2951 = vsub.s32 0, %v2950
    %v2952 = vrot.slane %v2939, %v2951
    %v2953 = vlaneseq
    %v2954 = vshrl.u32 %v2953, 7
    %v2955 = vsub.s32 0, %v2954
    %v2956 = vrot.slane %v2940, %v2955
    %2957 = vrot.lane.b32.xlu0 %v2944, 32
    %v2958 = vpop.permute.xlu0 %2957
    %2959 = vrot.lane.b32.xlu0 %v2948, 32
    %v2960 = vpop.permute.xlu0 %2959
    %2961 = vrot.lane.b32.xlu0 %v2952, 32
    %v2962 = vpop.permute.xlu0 %2961
    %2963 = vrot.lane.b32.xlu0 %v2956, 32
    %v2964 = vpop.permute.xlu0 %2963
    %v2969 = vmul.f32 %v2909, %v2958
    %v2970 = vmul.f32 %v2910, %v2958
    %v2971 = vmul.f32 %v2911, %v2960
    %v2972 = vmul.f32 %v2912, %v2960
    %v2973 = vmul.f32 %v2913, %v2962
    %v2974 = vmul.f32 %v2914, %v2962
    %v2975 = vmul.f32 %v2915, %v2964
    %v2976 = vmul.f32 %v2916, %v2964
    %v2977 = vsel %vm74, %v2969, 0.0
    %2978 = vadd.xlane.f32.xlu0 %v2977
    %v2979 = vpop.xlane.xlu0 %2978
    %v2980 = vsel %vm74, %v2970, 0.0
    %2981 = vadd.xlane.f32.xlu0 %v2980
    %v2982 = vpop.xlane.xlu0 %2981
    %v2983 = vsel %vm74, %v2971, 0.0
    %2984 = vadd.xlane.f32.xlu0 %v2983
    %v2985 = vpop.xlane.xlu0 %2984
    %v2986 = vsel %vm74, %v2972, 0.0
    %2987 = vadd.xlane.f32.xlu0 %v2986
    %v2988 = vpop.xlane.xlu0 %2987
    %v2989 = vsel %vm74, %v2973, 0.0
    %2990 = vadd.xlane.f32.xlu0 %v2989
    %v2991 = vpop.xlane.xlu0 %2990
    %v2992 = vsel %vm74, %v2974, 0.0
    %2993 = vadd.xlane.f32.xlu0 %v2992
    %v2994 = vpop.xlane.xlu0 %2993
    %v2995 = vsel %vm74, %v2975, 0.0
    %2996 = vadd.xlane.f32.xlu0 %v2995
    %v2997 = vpop.xlane.xlu0 %2996
    %v2998 = vsel %vm74, %v2976, 0.0
    %2999 = vadd.xlane.f32.xlu0 %v2998
    %v3000 = vpop.xlane.xlu0 %2999
    %v3009 = vlaneseq
    %v3010 = vshrl.u32 %v3009, 7
    %v3011 = vsub.s32 %v367, %v3010
    %v3012 = vrot.slane %v2979, %v3011
    %v3013 = vlaneseq
    %v3014 = vshrl.u32 %v3013, 7
    %v3015 = vsub.s32 %v372, %v3014
    %v3016 = vrot.slane %v2982, %v3015
    %v3017 = vsel %vm377, %v3016, %v3012
    %v3018 = vlaneseq
    %v3019 = vshrl.u32 %v3018, 7
    %v3020 = vsub.s32 %v367, %v3019
    %v3021 = vrot.slane %v2985, %v3020
    %v3022 = vlaneseq
    %v3023 = vshrl.u32 %v3022, 7
    %v3024 = vsub.s32 %v372, %v3023
    %v3025 = vrot.slane %v2988, %v3024
    %v3026 = vsel %vm377, %v3025, %v3021
    %v3027 = vlaneseq
    %v3028 = vshrl.u32 %v3027, 7
    %v3029 = vsub.s32 %v367, %v3028
    %v3030 = vrot.slane %v2991, %v3029
    %v3031 = vlaneseq
    %v3032 = vshrl.u32 %v3031, 7
    %v3033 = vsub.s32 %v372, %v3032
    %v3034 = vrot.slane %v2994, %v3033
    %v3035 = vsel %vm377, %v3034, %v3030
    %v3036 = vlaneseq
    %v3037 = vshrl.u32 %v3036, 7
    %v3038 = vsub.s32 %v367, %v3037
    %v3039 = vrot.slane %v2997, %v3038
    %v3040 = vlaneseq
    %v3041 = vshrl.u32 %v3040, 7
    %v3042 = vsub.s32 %v372, %v3041
    %v3043 = vrot.slane %v3000, %v3042
    %v3044 = vsel %vm377, %v3043, %v3039
    %v3045 = vsel %vm406, %v3026, %v3017
    %v3046 = vsel %vm408, %v3035, %v3045
    %v3047 = vsel %vm410, %v3044, %v3046
    %v3049 = vsel %vm413, %v3047, -inf
    %3050 = vmax.xlane.f32.xlu0 %v3049
    %v3051 = vpop.xlane.xlu0 %3050
    %v3053 = vlaneseq
    %v3054 = vshrl.u32 %v3053, 7
    %v3055 = vsub.s32 0, %v3054
    %v3056 = vrot.slane %v3051, %v3055
    %v3057 = vlaneseq
    %v3058 = vshrl.u32 %v3057, 7
    %v3059 = vsub.s32 1, %v3058
    %v3060 = vrot.slane %v3051, %v3059
    %v3061 = vlaneseq
    %v3062 = vshrl.u32 %v3061, 7
    %v3063 = vsub.s32 2, %v3062
    %v3064 = vrot.slane %v3051, %v3063
    %v3065 = vlaneseq
    %v3066 = vshrl.u32 %v3065, 7
    %v3067 = vsub.s32 3, %v3066
    %v3068 = vrot.slane %v3051, %v3067
    %v3073 = vsub.f32 %v2979, %v3056
    %v3074 = vsub.f32 %v2982, %v3056
    %v3075 = vsub.f32 %v2985, %v3060
    %v3076 = vsub.f32 %v2988, %v3060
    %v3077 = vsub.f32 %v2991, %v3064
    %v3078 = vsub.f32 %v2994, %v3064
    %v3079 = vsub.f32 %v2997, %v3068
    %v3080 = vsub.f32 %v3000, %v3068
    %v3081 = vmul.f32 %v3073, 1.442695
    %v3082 = vpow.pop %v3081
    %v3083 = vmul.f32 %v3074, 1.442695
    %v3084 = vpow.pop %v3083
    %v3085 = vmul.f32 %v3075, 1.442695
    %v3086 = vpow.pop %v3085
    %v3087 = vmul.f32 %v3076, 1.442695
    %v3088 = vpow.pop %v3087
    %v3089 = vmul.f32 %v3077, 1.442695
    %v3090 = vpow.pop %v3089
    %v3091 = vmul.f32 %v3078, 1.442695
    %v3092 = vpow.pop %v3091
    %v3093 = vmul.f32 %v3079, 1.442695
    %v3094 = vpow.pop %v3093
    %v3095 = vmul.f32 %v3080, 1.442695
    %v3096 = vpow.pop %v3095
    %3105 = vset.pattern.permute.xlu0 0
    %3106 = vperm.xlu0 %3105, %v3082
    %v3107 = vpop.permute.xlu0 %3106
    %3108 = vset.pattern.permute.xlu0 0
    %3109 = vperm.xlu0 %3108, %v3084
    %v3110 = vpop.permute.xlu0 %3109
    %3111 = vset.pattern.permute.xlu0 0
    %3112 = vperm.xlu0 %3111, %v3086
    %v3113 = vpop.permute.xlu0 %3112
    %3114 = vset.pattern.permute.xlu0 0
    %3115 = vperm.xlu0 %3114, %v3088
    %v3116 = vpop.permute.xlu0 %3115
    %3117 = vset.pattern.permute.xlu0 0
    %3118 = vperm.xlu0 %3117, %v3090
    %v3119 = vpop.permute.xlu0 %3118
    %3120 = vset.pattern.permute.xlu0 0
    %3121 = vperm.xlu0 %3120, %v3092
    %v3122 = vpop.permute.xlu0 %3121
    %3123 = vset.pattern.permute.xlu0 0
    %3124 = vperm.xlu0 %3123, %v3094
    %v3125 = vpop.permute.xlu0 %3124
    %3126 = vset.pattern.permute.xlu0 0
    %3127 = vperm.xlu0 %3126, %v3096
    %v3128 = vpop.permute.xlu0 %3127
    %v3129 = vlaneseq
    %v3130 = vshrl.u32 %v3129, 7
    %v3131 = vsub.s32 %v367, %v3130
    %v3132 = vrot.slane %v3107, %v3131
    %v3133 = vlaneseq
    %v3134 = vshrl.u32 %v3133, 7
    %v3135 = vsub.s32 %v372, %v3134
    %v3136 = vrot.slane %v3110, %v3135
    %v3137 = vsel %vm377, %v3136, %v3132
    %v3138 = vlaneseq
    %v3139 = vshrl.u32 %v3138, 7
    %v3140 = vsub.s32 %v367, %v3139
    %v3141 = vrot.slane %v3113, %v3140
    %v3142 = vlaneseq
    %v3143 = vshrl.u32 %v3142, 7
    %v3144 = vsub.s32 %v372, %v3143
    %v3145 = vrot.slane %v3116, %v3144
    %v3146 = vsel %vm377, %v3145, %v3141
    %v3147 = vlaneseq
    %v3148 = vshrl.u32 %v3147, 7
    %v3149 = vsub.s32 %v367, %v3148
    %v3150 = vrot.slane %v3119, %v3149
    %v3151 = vlaneseq
    %v3152 = vshrl.u32 %v3151, 7
    %v3153 = vsub.s32 %v372, %v3152
    %v3154 = vrot.slane %v3122, %v3153
    %v3155 = vsel %vm377, %v3154, %v3150
    %v3156 = vlaneseq
    %v3157 = vshrl.u32 %v3156, 7
    %v3158 = vsub.s32 %v367, %v3157
    %v3159 = vrot.slane %v3125, %v3158
    %v3160 = vlaneseq
    %v3161 = vshrl.u32 %v3160, 7
    %v3162 = vsub.s32 %v372, %v3161
    %v3163 = vrot.slane %v3128, %v3162
    %v3164 = vsel %vm377, %v3163, %v3159
    %v3165 = vsel %vm406, %v3146, %v3137
    %v3166 = vsel %vm408, %v3155, %v3165
    %v3167 = vsel %vm410, %v3164, %v3166
    %v3169 = vsel %vm413, %v3167, 0.0
    %3170 = vadd.xlane.f32.xlu0 %v3169
    %v3171 = vpop.xlane.xlu0 %3170
    %v3180 = vmul.f32 %v3107, %v2909
    %v3181 = vmul.f32 %v3110, %v2910
    %v3182 = vmul.f32 %v3113, %v2911
    %v3183 = vmul.f32 %v3116, %v2912
    %v3184 = vmul.f32 %v3119, %v2913
    %v3185 = vmul.f32 %v3122, %v2914
    %v3186 = vmul.f32 %v3125, %v2915
    %v3187 = vmul.f32 %v3128, %v2916
    %v3188 = vsel %vm74, %v3180, 0.0
    %v3189 = vsel %vm74, %v3181, 0.0
    %v3190 = vadd.f32 %v3188, %v3189
    %v3191 = vrot.slane %v3190, 4
    %v3192 = vadd.f32 %v3190, %v3191
    %v3193 = vrot.slane %v3192, 2
    %v3194 = vadd.f32 %v3192, %v3193
    %v3195 = vrot.slane %v3194, 1
    %v3196 = vadd.f32 %v3194, %v3195
    %v3197 = vsel %vm74, %v3182, 0.0
    %v3198 = vsel %vm74, %v3183, 0.0
    %v3199 = vadd.f32 %v3197, %v3198
    %v3200 = vrot.slane %v3199, 4
    %v3201 = vadd.f32 %v3199, %v3200
    %v3202 = vrot.slane %v3201, 2
    %v3203 = vadd.f32 %v3201, %v3202
    %v3204 = vrot.slane %v3203, 1
    %v3205 = vadd.f32 %v3203, %v3204
    %v3206 = vsel %vm74, %v3184, 0.0
    %v3207 = vsel %vm74, %v3185, 0.0
    %v3208 = vadd.f32 %v3206, %v3207
    %v3209 = vrot.slane %v3208, 4
    %v3210 = vadd.f32 %v3208, %v3209
    %v3211 = vrot.slane %v3210, 2
    %v3212 = vadd.f32 %v3210, %v3211
    %v3213 = vrot.slane %v3212, 1
    %v3214 = vadd.f32 %v3212, %v3213
    %v3215 = vsel %vm74, %v3186, 0.0
    %v3216 = vsel %vm74, %v3187, 0.0
    %v3217 = vadd.f32 %v3215, %v3216
    %v3218 = vrot.slane %v3217, 4
    %v3219 = vadd.f32 %v3217, %v3218
    %v3220 = vrot.slane %v3219, 2
    %v3221 = vadd.f32 %v3219, %v3220
    %v3222 = vrot.slane %v3221, 1
    %v3223 = vadd.f32 %v3221, %v3222
    %v3224 = vrcp.pop %v3171
    %v3226 = vrot.slane %v3224, 1
    %v3227 = vrot.slane %v3224, 2
    %v3228 = vrot.slane %v3224, 3
    %v3233 = vmul.f32 %v3196, %v3224
    %v3234 = vmul.f32 %v3205, %v3226
    %v3235 = vmul.f32 %v3214, %v3227
    %v3236 = vmul.f32 %v3223, %v3228
    %v3241 = vrot.slane %v3234, 7
    %v3242 = vsel %vm406, %v3241, %v3233
    %v3243 = vrot.slane %v3235, 6
    %v3244 = vsel %vm408, %v3243, %v3242
    %v3245 = vrot.slane %v3236, 5
    %v3246 = vsel %vm410, %v3245, %v3244
    %3248 = vst.msk [vmem:[#allocation4] sm:$0xf] %vm59, %v3246
    %v3249 = vld [vmem:[#allocation2] sm:$0xf]
    %3250 = vst.msk [vmem:[#allocation11] sm:$0xf] %vm59, %v3249
    %v3251 = vld [vmem:[#allocation4] sm:$0xf]
    %3253 = vrot.lane.b32.xlu0 %v3251, 32
    %v3254 = vpop.permute.xlu0 %3253
    %vm3256 = vcmask 519424
    %3257 = vst.msk [vmem:[#allocation11] sm:$0xf] %vm3256, %v3254
    // Predicated region
    $region30: #{tpu_custom_call.1} parent=1 // pred_check
      _
    $region31: #{tpu_custom_call.1} parent=1 // pred_check_branch
      %3259 = sbr.rel (0) target = $region33
    $region32: #{tpu_custom_call.1} parent=1 // pred_region
      %s3261 = ssub.s32 64, 64
      %3262 = vsyncadd [#allocation7], %s3261
      %s3264 = sshll.u32 [#allocation11], 4
      %s3265 = int_to_ptr.vmem [resolvable:$true] %s3264
      %3267 = dma.vmem_to_hbm [thread:$0]  %s3265, 64, %s4, [#allocation7]
    $region33: #{tpu_custom_call.1} parent=1 // pred_fallthru
      _
    // Predicated region
    $region34: #{tpu_custom_call.1} parent=1 // pred_check
      _
    $region35: #{tpu_custom_call.1} parent=1 // pred_check_branch
      %3269 = sbr.rel (0) target = $region37
    $region36: #{tpu_custom_call.1} parent=1 // pred_region
      %3270 = dma.done [#allocation7], 64
    $region37: #{tpu_custom_call.1} parent=1 // pred_fallthru
      _
    %3271 = vsyncpa [#allocation6], 1
    %3272 = vsyncpa [#allocation9], 1
    %3273 = vsyncpa [#allocation7], 1

</llo_original>
